<compile_context>
chip_gen: v5e
topology: v5e:2x2
jax: 0.10.0
libtpu: 0.0.40
codegen_flags: <defaults>
</compile_context>

<pallas_src>
import math
import jax
import jax.numpy as jnp
from jax.experimental import pallas as pl
from jax.experimental.pallas import tpu as pltpu

_EPS = 1e-5
_LANE = 128
_VMEM_LIMIT = 32 * 1024 * 1024


# ---------------------------------------------------------------------------
# Kernels
# ---------------------------------------------------------------------------
def _conv1x1_stats_kernel(x_ref, w_ref, y_ref, sum_ref, sq_ref):
    """y = x @ w (1x1 conv); per-image partial channel sum / sum-of-squares."""
    _, hh, ww, cin = x_ref.shape
    x = x_ref[0].reshape(hh * ww, cin).astype(w_ref.dtype)
    y = jnp.dot(x, w_ref[...], preferred_element_type=jnp.float32)
    y_ref[0] = y.reshape(hh, ww, -1).astype(y_ref.dtype)
    sum_ref[0] = jnp.sum(y, axis=0, keepdims=True)
    sq_ref[0] = jnp.sum(y * y, axis=0, keepdims=True)


def _shift_rows(a, dh, zero_row):
    # a: (H, W, C) value; t[i] = a[i + dh], zero outside range (aligned concat
    # along the untiled leading axis).
    if dh == 0:
        return a
    if dh > 0:
        return jnp.concatenate([a[dh:], zero_row], axis=0)
    return jnp.concatenate([zero_row, a[:dh]], axis=0)


def _shift_cols(a, dw, zero_col):
    # a: (H, W, C) value; t[:, j] = a[:, j + dw], zero outside range.
    if dw == 0:
        return a
    if dw > 0:
        return jnp.concatenate([a[:, dw:, :], zero_col], axis=1)
    return jnp.concatenate([zero_col, a[:, :dw, :]], axis=1)


def _bn_relu_conv3x3_stats_kernel(y_ref, s_ref, t_ref, w_ref,
                                  o_ref, sum_ref, sq_ref):
    """z = relu(scale*y + shift); o = conv3x3(z) via one im2col matmul."""
    _, hh, ww, c = y_ref.shape
    z = jnp.maximum(y_ref[0] * s_ref[...] + t_ref[...], 0.0)   # f32 BN math
    z = z.astype(w_ref.dtype)                                  # MXU dtype

    zero_col = jnp.zeros((hh, 1, c), z.dtype)
    zero_row = jnp.zeros((1, ww, c), z.dtype)
    # Only 2 sublane-shifted copies total; row (H) shifts are tile-aligned.
    z_by_dw = [_shift_cols(z, dw, zero_col) for dw in (-1, 0, 1)]
    taps = [
        _shift_rows(z_by_dw[dw + 1], dh, zero_row).reshape(hh * ww, c)
        for dh in (-1, 0, 1) for dw in (-1, 0, 1)
    ]
    patch = jnp.concatenate(taps, axis=1)                      # (H*W, 9*C)
    o = jnp.dot(patch, w_ref[...], preferred_element_type=jnp.float32)
    o_ref[0] = o.reshape(hh, ww, -1).astype(o_ref.dtype)
    sum_ref[0] = jnp.sum(o, axis=0, keepdims=True)
    sq_ref[0] = jnp.sum(o * o, axis=0, keepdims=True)


def _bn_relu_conv1x1_stats_kernel(y_ref, s_ref, t_ref, w_ref,
                                  o_ref, sum_ref, sq_ref):
    """z = relu(scale*y + shift); o = z @ w (1x1 conv); partial stats."""
    _, hh, ww, c = y_ref.shape
    z = jnp.maximum(y_ref[0] * s_ref[...] + t_ref[...], 0.0)
    z = z.reshape(hh * ww, c).astype(w_ref.dtype)
    o = jnp.dot(z, w_ref[...], preferred_element_type=jnp.float32)
    o_ref[0] = o.reshape(hh, ww, -1).astype(o_ref.dtype)
    sum_ref[0] = jnp.sum(o, axis=0, keepdims=True)
    sq_ref[0] = jnp.sum(o * o, axis=0, keepdims=True)


def _bn_residual_relu_kernel(y_ref, x_ref, s_ref, t_ref, o_ref):
    """out = relu(scale*y + shift + identity)."""
    o = y_ref[0] * s_ref[...] + t_ref[...] + x_ref[0]
    o_ref[0] = jnp.maximum(o, 0.0).astype(o_ref.dtype)


# ---------------------------------------------------------------------------
# Wrapper
# ---------------------------------------------------------------------------
def _round_up(n, m):
    return (n + m - 1) // m * m


def _pad_last(a, target):
    pad = [(0, 0)] * a.ndim
    pad[-1] = (0, target - a.shape[-1])
    return jnp.pad(a, pad)


def _pad2(a, r, c):
    return jnp.pad(a, ((0, r - a.shape[0]), (0, c - a.shape[1])))


def _fold_bn(psum, psq, gamma, beta, count):
    # Training-mode BatchNorm2d: biased variance, eps=1e-5; folded so the
    # in-kernel per-pixel work is a single fused multiply-add.
    total = jnp.sum(psum, axis=0)          # (1, C)  reduce per-image partials
    total_sq = jnp.sum(psq, axis=0)        # (1, C)
    mean = total / count
    var = jnp.maximum(total_sq / count - mean * mean, 0.0)
    scale = gamma * jax.lax.rsqrt(var + _EPS)
    shift = beta - mean * scale
    return scale, shift


def conv_block_forward(x_nchw, params, compute_dtype=jnp.bfloat16):
    """x_nchw: (N, C, H, W) float32 (PyTorch layout). Returns (N, C, H, W)."""
    n, c, h, w = x_nchw.shape
    width = params["w1"].shape[1]
    c_out = params["w3"].shape[1]
    if c_out != c:
        raise ValueError("ConvBlock residual path requires in_channel == out_channel")
    # TODO(synk): stride>1 / groups>1 conv2 variants (and projection shortcut)
    # are not implemented; the residual add in this module requires stride=1.

    cp = _round_up(c, _LANE)        # lane-dense in/out channels
    wp = _round_up(width, _LANE)    # lane-dense bottleneck width
    count = float(n * h * w)        # BN pixel count
    f32 = jnp.float32
    act_bytes = jnp.dtype(compute_dtype).itemsize

    # NHWC + zero-pad channels to a lane multiple.
    # TODO(synk): keep the surrounding model in NHWC end-to-end to avoid this
    # HBM-level transpose (a full extra read+write of the activation).
    x = jnp.transpose(x_nchw, (0, 2, 3, 1)).astype(f32)
    x = _pad_last(x, cp)

    w1 = _pad2(params["w1"], cp, wp).astype(compute_dtype)            # (Cp, Wp)
    w2 = jnp.pad(params["w2"],
                 ((0, 0), (0, 0), (0, wp - width), (0, wp - width)))
    w2 = w2.reshape(9 * wp, wp).astype(compute_dtype)                 # im2col weight
    w3 = _pad2(params["w3"], wp, cp).astype(compute_dtype)            # (Wp, Cp)
    g1, b1 = _pad_last(params["g1"], wp), _pad_last(params["b1"], wp)
    g2, b2 = _pad_last(params["g2"], wp), _pad_last(params["b2"], wp)
    g3, b3 = _pad_last(params["g3"], cp), _pad_last(params["b3"], cp)

    # Grid: one image per step.  Every output block (activation tile AND
    # per-image partial stats) is indexed by the grid step, so the axis is
    # fully "parallel" -> megacore sharding on v7x, no serialization anywhere.
    # TODO(synk): for large H (56x56+ ResNet stages) add an H-band grid axis
    # with a 1-row halo so the per-step block stays within v7x's 64 MiB VMEM.
    img = lambda ch: pl.BlockSpec((1, h, w, ch), lambda i: (i, 0, 0, 0))
    chan = lambda ch: pl.BlockSpec((1, ch), lambda i: (0, 0))
    pstat = lambda ch: pl.BlockSpec((1, 1, ch), lambda i: (i, 0, 0))
    full = lambda arr: pl.BlockSpec(arr.shape, lambda i: (0,) * arr.ndim)

    cparams = pltpu.CompilerParams(dimension_semantics=("parallel",),
                                   vmem_limit_bytes=_VMEM_LIMIT)

    def cost(flops, nbytes):
        return pl.CostEstimate(flops=int(flops), transcendentals=0,
                               bytes_accessed=int(nbytes))

    npix = n * h * w

    # ---- stage 1: conv1 (1x1) + per-image stats of its output ---------------
    y1, s1, q1 = pl.pallas_call(
        _conv1x1_stats_kernel,
        grid=(n,),
        in_specs=[img(cp), full(w1)],
        out_specs=[img(wp), pstat(wp), pstat(wp)],
        out_shape=[jax.ShapeDtypeStruct((n, h, w, wp), compute_dtype),
                   jax.ShapeDtypeStruct((n, 1, wp), f32),
                   jax.ShapeDtypeStruct((n, 1, wp), f32)],
        compiler_params=cparams,
        cost_estimate=cost(2 * npix * cp * wp,
                           npix * cp * 4 + npix * wp * act_bytes
                           + w1.size * act_bytes + 2 * n * wp * 4),
    )(x, w1)
    sc1, sh1 = _fold_bn(s1, q1, g1, b1, count)

    # ---- stage 2: bn1 + relu -> conv2 (3x3, single im2col matmul) + stats ---
    y2, s2, q2 = pl.pallas_call(
        _bn_relu_conv3x3_stats_kernel,
        grid=(n,),
        in_specs=[img(wp), chan(wp), chan(wp), full(w2)],
        out_specs=[img(wp), pstat(wp), pstat(wp)],
        out_shape=[jax.ShapeDtypeStruct((n, h, w, wp), compute_dtype),
                   jax.ShapeDtypeStruct((n, 1, wp), f32),
                   jax.ShapeDtypeStruct((n, 1, wp), f32)],
        compiler_params=cparams,
        cost_estimate=cost(2 * npix * 9 * wp * wp,
                           2 * npix * wp * act_bytes + w2.size * act_bytes
                           + 2 * n * wp * 4),
    )(y1, sc1, sh1, w2)
    sc2, sh2 = _fold_bn(s2, q2, g2, b2, count)

    # ---- stage 3: bn2 + relu -> conv3 (1x1) + stats --------------------------
    y3, s3, q3 = pl.pallas_call(
        _bn_relu_conv1x1_stats_kernel,
        grid=(n,),
        in_specs=[img(wp), chan(wp), chan(wp), full(w3)],
        out_specs=[img(cp), pstat(cp), pstat(cp)],
        out_shape=[jax.ShapeDtypeStruct((n, h, w, cp), compute_dtype),
                   jax.ShapeDtypeStruct((n, 1, cp), f32),
                   jax.ShapeDtypeStruct((n, 1, cp), f32)],
        compiler_params=cparams,
        cost_estimate=cost(2 * npix * wp * cp,
                           npix * (wp + cp) * act_bytes + w3.size * act_bytes
                           + 2 * n * cp * 4),
    )(y2, sc2, sh2, w3)
    sc3, sh3 = _fold_bn(s3, q3, g3, b3, count)

    # ---- stage 4: bn3 + residual add + relu ----------------------------------
    out = pl.pallas_call(
        _bn_residual_relu_kernel,
        grid=(n,),
        in_specs=[img(cp), img(cp), chan(cp), chan(cp)],
        out_specs=img(cp),
        out_shape=jax.ShapeDtypeStruct((n, h, w, cp), f32),
        compiler_params=cparams,
        cost_estimate=cost(3 * npix * cp, npix * cp * (act_bytes + 4 + 4)),
    )(y3, x, sc3, sh3)

    out = out[..., :c_out]
    return jnp.transpose(out, (0, 3, 1, 2))


# ---------------------------------------------------------------------------
# Pure-JAX reference (training-mode BatchNorm, f32, HIGHEST matmul precision)
# ---------------------------------------------------------------------------
def conv_block_reference(x_nchw, params):
    hp = jax.lax.Precision.HIGHEST
    x = jnp.transpose(x_nchw, (0, 2, 3, 1)).astype(jnp.float32)

    def bn(y, g, b):
        mean = jnp.mean(y, axis=(0, 1, 2), keepdims=True)
        var = jnp.mean(jnp.square(y - mean), axis=(0, 1, 2), keepdims=True)
        return ((y - mean) * jax.lax.rsqrt(var + _EPS)
                * g.reshape(1, 1, 1, -1) + b.reshape(1, 1, 1, -1))

    y = jnp.einsum("nhwc,cd->nhwd", x, params["w1"], precision=hp)
    y = jnp.maximum(bn(y, params["g1"], params["b1"]), 0.0)
    y = jax.lax.conv_general_dilated(
        y, params["w2"], window_strides=(1, 1), padding="SAME",
        dimension_numbers=("NHWC", "HWIO", "NHWC"), precision=hp)
    y = jnp.maximum(bn(y, params["g2"], params["b2"]), 0.0)
    y = jnp.einsum("nhwc,cd->nhwd", y, params["w3"], precision=hp)
    y = bn(y, params["g3"], params["b3"])
    y = jnp.maximum(y + x, 0.0)
    return jnp.transpose(y, (0, 3, 1, 2))


def init_params(key, in_channel, out_channel, groups=1, width_per_group=64):
    # Same shape logic as the PyTorch module; weights stored kernel-friendly:
    #   w1: (Cin, width)          [conv1.weight (width, Cin, 1, 1) transposed]
    #   w2: (3, 3, width, width)  HWIO
    #   w3: (width, Cout)
    width = int(out_channel * (width_per_group / 64.0)) * groups
    ks = jax.random.split(key, 9)

    def nrm(k, shape, fan_in):
        return jax.random.normal(k, shape, jnp.float32) / math.sqrt(fan_in)

    return {
        "w1": nrm(ks[0], (in_channel, width), in_channel),
        "g1": 1.0 + 0.1 * jax.random.normal(ks[1], (1, width), jnp.float32),
        "b1": 0.1 * jax.random.normal(ks[2], (1, width), jnp.float32),
        "w2": nrm(ks[3], (3, 3, width, width), 9 * width),
        "g2": 1.0 + 0.1 * jax.random.normal(ks[4], (1, width), jnp.float32),
        "b2": 0.1 * jax.random.normal(ks[5], (1, width), jnp.float32),
        "w3": nrm(ks[6], (width, out_channel), width),
        "g3": 1.0 + 0.1 * jax.random.normal(ks[7], (1, out_channel), jnp.float32),
        "b3": 0.1 * jax.random.normal(ks[8], (1, out_channel), jnp.float32),
    }


if __name__ == "__main__":
    key = jax.random.PRNGKey(0)
    kx, kp = jax.random.split(key)

    N, C, H, W = 2, 4, 16, 16                 # in_channel == out_channel, stride=1
    x = jax.random.normal(kx, (N, C, H, W), jnp.float32)
    params = init_params(kp, in_channel=C, out_channel=C)

    ref = conv_block_reference(x, params)
    scale = max(1.0, float(jnp.max(jnp.abs(ref))))

    # f32 compute path: validates the 4-pass structure / BN semantics.
    out_f32 = jax.block_until_ready(
        jax.jit(lambda a, p: conv_block_forward(a, p, jnp.float32))(x, params))
    assert out_f32.shape == (N, C, H, W)
    err_f32 = float(jnp.max(jnp.abs(out_f32 - ref)))
    if not err_f32 < 2e-2 * scale:
        raise AssertionError(f"f32 path mismatch vs reference: max abs err {err_f32}")

    # bf16-matmul path (default perf configuration; f32 accumulate + f32 BN).
    out_bf16 = jax.block_until_ready(jax.jit(conv_block_forward)(x, params))
    err_bf16 = float(jnp.max(jnp.abs(out_bf16 - ref)))
    if not err_bf16 < 4e-2 * scale:
        raise AssertionError(f"bf16 path mismatch vs reference: max abs err {err_bf16}")

    print("KERNEL_OK")
</pallas_src>

<mosaic_0001>
module attributes {stable_mosaic.version = 11 : i64} {
  func.func @_bn_relu_conv3x3_stats_kernel(%arg0: i32, %arg1: memref<1x16x16x128xf32, #tpu.memory_space<vmem>>, %arg2: memref<1x128xf32, #tpu.memory_space<vmem>>, %arg3: memref<1x128xf32, #tpu.memory_space<vmem>>, %arg4: memref<1152x128xf32, #tpu.memory_space<vmem>>, %arg5: memref<1x16x16x128xf32, #tpu.memory_space<vmem>>, %arg6: memref<1x1x128xf32, #tpu.memory_space<vmem>>, %arg7: memref<1x1x128xf32, #tpu.memory_space<vmem>>) attributes {dimension_semantics = [#tpu.dimension_semantics<parallel>], iteration_bounds = array<i64: 2>, scalar_prefetch = 0 : i64, scratch_operands = 0 : i64, tpu.core_type = #tpu.core_type<tc>, window_params = [{transform_indices = @transform_0, window_bounds = array<i64: 1, 16, 16, 128>}, {pipeline_mode = #tpu.pipeline_mode<synchronous>, transform_indices = @transform_1, window_bounds = array<i64: 1, 128>}, {pipeline_mode = #tpu.pipeline_mode<synchronous>, transform_indices = @transform_2, window_bounds = array<i64: 1, 128>}, {pipeline_mode = #tpu.pipeline_mode<synchronous>, transform_indices = @transform_3, window_bounds = array<i64: 1152, 128>}, {transform_indices = @transform_4, window_bounds = array<i64: 1, 16, 16, 128>}, {transform_indices = @transform_5, window_bounds = array<i64: 1, 1, 128>}, {transform_indices = @transform_6, window_bounds = array<i64: 1, 1, 128>}]} {
    %c0 = arith.constant 0 : index
    %c0_0 = arith.constant 0 : index
    %c0_1 = arith.constant 0 : index
    %c0_2 = arith.constant 0 : index
    %0 = vector.load %arg1[%c0, %c0_0, %c0_1, %c0_2] : memref<1x16x16x128xf32, #tpu.memory_space<vmem>>, vector<1x16x16x128xf32>
    %1 = vector.shape_cast %0 : vector<1x16x16x128xf32> to vector<16x16x128xf32>
    %c0_3 = arith.constant 0 : index
    %c0_4 = arith.constant 0 : index
    %2 = vector.load %arg2[%c0_3, %c0_4] : memref<1x128xf32, #tpu.memory_space<vmem>>, vector<1x128xf32>
    %3 = vector.shape_cast %2 : vector<1x128xf32> to vector<1x1x128xf32>
    %4 = vector.broadcast %3 : vector<1x1x128xf32> to vector<16x16x128xf32>
    %5 = arith.mulf %1, %4 : vector<16x16x128xf32>
    %c0_5 = arith.constant 0 : index
    %c0_6 = arith.constant 0 : index
    %6 = vector.load %arg3[%c0_5, %c0_6] : memref<1x128xf32, #tpu.memory_space<vmem>>, vector<1x128xf32>
    %7 = vector.shape_cast %6 : vector<1x128xf32> to vector<1x1x128xf32>
    %8 = vector.broadcast %7 : vector<1x1x128xf32> to vector<16x16x128xf32>
    %9 = arith.addf %5, %8 : vector<16x16x128xf32>
    %cst = arith.constant 0.000000e+00 : f32
    %10 = vector.broadcast %cst : f32 to vector<16x16x128xf32>
    %11 = arith.maximumf %9, %10 : vector<16x16x128xf32>
    %cst_7 = arith.constant 0.000000e+00 : f32
    %12 = vector.broadcast %cst_7 : f32 to vector<16x1x128xf32>
    %cst_8 = arith.constant 0.000000e+00 : f32
    %13 = vector.broadcast %cst_8 : f32 to vector<1x16x128xf32>
    %14 = vector.extract_strided_slice %11 {offsets = [0, 0, 0], sizes = [16, 15, 128], strides = [1, 1, 1]} : vector<16x16x128xf32> to vector<16x15x128xf32>
    %15 = tpu.concatenate %12, %14 in 1 : vector<16x1x128xf32>, vector<16x15x128xf32> -> vector<16x16x128xf32>
    %16 = vector.extract_strided_slice %11 {offsets = [0, 1, 0], sizes = [16, 15, 128], strides = [1, 1, 1]} : vector<16x16x128xf32> to vector<16x15x128xf32>
    %17 = tpu.concatenate %16, %12 in 1 : vector<16x15x128xf32>, vector<16x1x128xf32> -> vector<16x16x128xf32>
    %18 = vector.extract_strided_slice %15 {offsets = [0, 0, 0], sizes = [15, 16, 128], strides = [1, 1, 1]} : vector<16x16x128xf32> to vector<15x16x128xf32>
    %19 = tpu.concatenate %13, %18 in 0 : vector<1x16x128xf32>, vector<15x16x128xf32> -> vector<16x16x128xf32>
    %20 = vector.shape_cast %19 : vector<16x16x128xf32> to vector<256x128xf32>
    %21 = vector.extract_strided_slice %11 {offsets = [0, 0, 0], sizes = [15, 16, 128], strides = [1, 1, 1]} : vector<16x16x128xf32> to vector<15x16x128xf32>
    %22 = tpu.concatenate %13, %21 in 0 : vector<1x16x128xf32>, vector<15x16x128xf32> -> vector<16x16x128xf32>
    %23 = vector.shape_cast %22 : vector<16x16x128xf32> to vector<256x128xf32>
    %24 = vector.extract_strided_slice %17 {offsets = [0, 0, 0], sizes = [15, 16, 128], strides = [1, 1, 1]} : vector<16x16x128xf32> to vector<15x16x128xf32>
    %25 = tpu.concatenate %13, %24 in 0 : vector<1x16x128xf32>, vector<15x16x128xf32> -> vector<16x16x128xf32>
    %26 = vector.shape_cast %25 : vector<16x16x128xf32> to vector<256x128xf32>
    %27 = vector.shape_cast %15 : vector<16x16x128xf32> to vector<256x128xf32>
    %28 = vector.shape_cast %11 : vector<16x16x128xf32> to vector<256x128xf32>
    %29 = vector.shape_cast %17 : vector<16x16x128xf32> to vector<256x128xf32>
    %30 = vector.extract_strided_slice %15 {offsets = [1, 0, 0], sizes = [15, 16, 128], strides = [1, 1, 1]} : vector<16x16x128xf32> to vector<15x16x128xf32>
    %31 = tpu.concatenate %30, %13 in 0 : vector<15x16x128xf32>, vector<1x16x128xf32> -> vector<16x16x128xf32>
    %32 = vector.shape_cast %31 : vector<16x16x128xf32> to vector<256x128xf32>
    %33 = vector.extract_strided_slice %11 {offsets = [1, 0, 0], sizes = [15, 16, 128], strides = [1, 1, 1]} : vector<16x16x128xf32> to vector<15x16x128xf32>
    %34 = tpu.concatenate %33, %13 in 0 : vector<15x16x128xf32>, vector<1x16x128xf32> -> vector<16x16x128xf32>
    %35 = vector.shape_cast %34 : vector<16x16x128xf32> to vector<256x128xf32>
    %36 = vector.extract_strided_slice %17 {offsets = [1, 0, 0], sizes = [15, 16, 128], strides = [1, 1, 1]} : vector<16x16x128xf32> to vector<15x16x128xf32>
    %37 = tpu.concatenate %36, %13 in 0 : vector<15x16x128xf32>, vector<1x16x128xf32> -> vector<16x16x128xf32>
    %38 = vector.shape_cast %37 : vector<16x16x128xf32> to vector<256x128xf32>
    %39 = tpu.concatenate %20, %23, %26, %27, %28, %29, %32, %35, %38 in 1 : vector<256x128xf32>, vector<256x128xf32>, vector<256x128xf32>, vector<256x128xf32>, vector<256x128xf32>, vector<256x128xf32>, vector<256x128xf32>, vector<256x128xf32>, vector<256x128xf32> -> vector<256x1152xf32>
    %c0_9 = arith.constant 0 : index
    %c0_10 = arith.constant 0 : index
    %40 = vector.load %arg4[%c0_9, %c0_10] : memref<1152x128xf32, #tpu.memory_space<vmem>>, vector<1152x128xf32>
    %cst_11 = arith.constant dense<0.000000e+00> : vector<256x128xf32>
    %41 = tpu.matmul %39, %40, %cst_11 {dimension_numbers = #tpu.dot_dimension_numbers<[1], [0], [0], [1], [0, 0, 1, 1], [], []>} : vector<256x1152xf32>, vector<1152x128xf32>, vector<256x128xf32> -> vector<256x128xf32>
    %42 = vector.shape_cast %41 : vector<256x128xf32> to vector<16x16x128xf32>
    %c0_12 = arith.constant 0 : index
    %c0_13 = arith.constant 0 : index
    %c0_14 = arith.constant 0 : index
    %c0_15 = arith.constant 0 : index
    %43 = vector.load %arg5[%c0_12, %c0_13, %c0_14, %c0_15] : memref<1x16x16x128xf32, #tpu.memory_space<vmem>>, vector<1x16x16x128xf32>
    %44 = vector.shape_cast %43 : vector<1x16x16x128xf32> to vector<16x16x128xf32>
    %45 = vector.shape_cast %42 : vector<16x16x128xf32> to vector<1x16x16x128xf32>
    tpu.vector_store %arg5[%c0_12, %c0_13, %c0_14, %c0_15], %45 {strides = array<i32>} : memref<1x16x16x128xf32, #tpu.memory_space<vmem>>, vector<1x16x16x128xf32>,
    %cst_16 = arith.constant dense<0.000000e+00> : vector<128xf32>
    %46 = vector.multi_reduction <add>, %41, %cst_16 [0] : vector<256x128xf32> to vector<128xf32>
    %47 = vector.shape_cast %46 : vector<128xf32> to vector<1x128xf32>
    %c0_17 = arith.constant 0 : index
    %c0_18 = arith.constant 0 : index
    %c0_19 = arith.constant 0 : index
    %48 = vector.load %arg6[%c0_17, %c0_18, %c0_19] : memref<1x1x128xf32, #tpu.memory_space<vmem>>, vector<1x1x128xf32>
    %49 = vector.shape_cast %48 : vector<1x1x128xf32> to vector<1x128xf32>
    %50 = vector.shape_cast %47 : vector<1x128xf32> to vector<1x1x128xf32>
    tpu.vector_store %arg6[%c0_17, %c0_18, %c0_19], %50 {strides = array<i32>} : memref<1x1x128xf32, #tpu.memory_space<vmem>>, vector<1x1x128xf32>,
    %51 = arith.mulf %41, %41 : vector<256x128xf32>
    %cst_20 = arith.constant dense<0.000000e+00> : vector<128xf32>
    %52 = vector.multi_reduction <add>, %51, %cst_20 [0] : vector<256x128xf32> to vector<128xf32>
    %53 = vector.shape_cast %52 : vector<128xf32> to vector<1x128xf32>
    %c0_21 = arith.constant 0 : index
    %c0_22 = arith.constant 0 : index
    %c0_23 = arith.constant 0 : index
    %54 = vector.load %arg7[%c0_21, %c0_22, %c0_23] : memref<1x1x128xf32, #tpu.memory_space<vmem>>, vector<1x1x128xf32>
    %55 = vector.shape_cast %54 : vector<1x1x128xf32> to vector<1x128xf32>
    %56 = vector.shape_cast %53 : vector<1x128xf32> to vector<1x1x128xf32>
    tpu.vector_store %arg7[%c0_21, %c0_22, %c0_23], %56 {strides = array<i32>} : memref<1x1x128xf32, #tpu.memory_space<vmem>>, vector<1x1x128xf32>,
    return
  }
  func.func @transform_0(%arg0: i32) -> (i32, i32, i32, i32) {
    %c0_i32 = arith.constant 0 : i32
    %c0_i32_0 = arith.constant 0 : i32
    %c0_i32_1 = arith.constant 0 : i32
    %c0_i32_2 = arith.constant 0 : i32
    return %arg0, %c0_i32, %c0_i32_0, %c0_i32_1 : i32, i32, i32, i32
  }
  func.func @transform_1(%arg0: i32) -> (i32, i32) {
    %c0_i32 = arith.constant 0 : i32
    %c0_i32_0 = arith.constant 0 : i32
    %c0_i32_1 = arith.constant 0 : i32
    return %c0_i32, %c0_i32_0 : i32, i32
  }
  func.func @transform_2(%arg0: i32) -> (i32, i32) {
    %c0_i32 = arith.constant 0 : i32
    %c0_i32_0 = arith.constant 0 : i32
    %c0_i32_1 = arith.constant 0 : i32
    return %c0_i32, %c0_i32_0 : i32, i32
  }
  func.func @transform_3(%arg0: i32) -> (i32, i32) {
    %c0_i32 = arith.constant 0 : i32
    %c0_i32_0 = arith.constant 0 : i32
    %c0_i32_1 = arith.constant 0 : i32
    return %c0_i32, %c0_i32_0 : i32, i32
  }
  func.func @transform_4(%arg0: i32) -> (i32, i32, i32, i32) {
    %c0_i32 = arith.constant 0 : i32
    %c0_i32_0 = arith.constant 0 : i32
    %c0_i32_1 = arith.constant 0 : i32
    %c0_i32_2 = arith.constant 0 : i32
    return %arg0, %c0_i32, %c0_i32_0, %c0_i32_1 : i32, i32, i32, i32
  }
  func.func @transform_5(%arg0: i32) -> (i32, i32, i32) {
    %c0_i32 = arith.constant 0 : i32
    %c0_i32_0 = arith.constant 0 : i32
    %c0_i32_1 = arith.constant 0 : i32
    return %arg0, %c0_i32, %c0_i32_0 : i32, i32, i32
  }
  func.func @transform_6(%arg0: i32) -> (i32, i32, i32) {
    %c0_i32 = arith.constant 0 : i32
    %c0_i32_0 = arith.constant 0 : i32
    %c0_i32_1 = arith.constant 0 : i32
    return %arg0, %c0_i32, %c0_i32_0 : i32, i32, i32
  }
}

module attributes {stable_mosaic.version = 11 : i64} {
  func.func @_conv1x1_stats_kernel(%arg0: i32, %arg1: memref<1x16x16x128xf32, #tpu.memory_space<vmem>>, %arg2: memref<128x128xf32, #tpu.memory_space<vmem>>, %arg3: memref<1x16x16x128xf32, #tpu.memory_space<vmem>>, %arg4: memref<1x1x128xf32, #tpu.memory_space<vmem>>, %arg5: memref<1x1x128xf32, #tpu.memory_space<vmem>>) attributes {dimension_semantics = [#tpu.dimension_semantics<parallel>], iteration_bounds = array<i64: 2>, scalar_prefetch = 0 : i64, scratch_operands = 0 : i64, tpu.core_type = #tpu.core_type<tc>, window_params = [{transform_indices = @transform_0, window_bounds = array<i64: 1, 16, 16, 128>}, {pipeline_mode = #tpu.pipeline_mode<synchronous>, transform_indices = @transform_1, window_bounds = array<i64: 128, 128>}, {transform_indices = @transform_2, window_bounds = array<i64: 1, 16, 16, 128>}, {transform_indices = @transform_3, window_bounds = array<i64: 1, 1, 128>}, {transform_indices = @transform_4, window_bounds = array<i64: 1, 1, 128>}]} {
    %c0 = arith.constant 0 : index
    %c0_0 = arith.constant 0 : index
    %c0_1 = arith.constant 0 : index
    %c0_2 = arith.constant 0 : index
    %0 = vector.load %arg1[%c0, %c0_0, %c0_1, %c0_2] : memref<1x16x16x128xf32, #tpu.memory_space<vmem>>, vector<1x16x16x128xf32>
    %1 = vector.shape_cast %0 : vector<1x16x16x128xf32> to vector<16x16x128xf32>
    %2 = vector.shape_cast %1 : vector<16x16x128xf32> to vector<256x128xf32>
    %c0_3 = arith.constant 0 : index
    %c0_4 = arith.constant 0 : index
    %3 = vector.load %arg2[%c0_3, %c0_4] : memref<128x128xf32, #tpu.memory_space<vmem>>, vector<128x128xf32>
    %cst = arith.constant dense<0.000000e+00> : vector<256x128xf32>
    %4 = tpu.matmul %2, %3, %cst {dimension_numbers = #tpu.dot_dimension_numbers<[1], [0], [0], [1], [0, 0, 1, 1], [], []>} : vector<256x128xf32>, vector<128x128xf32>, vector<256x128xf32> -> vector<256x128xf32>
    %5 = vector.shape_cast %4 : vector<256x128xf32> to vector<16x16x128xf32>
    %c0_5 = arith.constant 0 : index
    %c0_6 = arith.constant 0 : index
    %c0_7 = arith.constant 0 : index
    %c0_8 = arith.constant 0 : index
    %6 = vector.load %arg3[%c0_5, %c0_6, %c0_7, %c0_8] : memref<1x16x16x128xf32, #tpu.memory_space<vmem>>, vector<1x16x16x128xf32>
    %7 = vector.shape_cast %6 : vector<1x16x16x128xf32> to vector<16x16x128xf32>
    %8 = vector.shape_cast %5 : vector<16x16x128xf32> to vector<1x16x16x128xf32>
    tpu.vector_store %arg3[%c0_5, %c0_6, %c0_7, %c0_8], %8 {strides = array<i32>} : memref<1x16x16x128xf32, #tpu.memory_space<vmem>>, vector<1x16x16x128xf32>,
    %cst_9 = arith.constant dense<0.000000e+00> : vector<128xf32>
    %9 = vector.multi_reduction <add>, %4, %cst_9 [0] : vector<256x128xf32> to vector<128xf32>
    %10 = vector.shape_cast %9 : vector<128xf32> to vector<1x128xf32>
    %c0_10 = arith.constant 0 : index
    %c0_11 = arith.constant 0 : index
    %c0_12 = arith.constant 0 : index
    %11 = vector.load %arg4[%c0_10, %c0_11, %c0_12] : memref<1x1x128xf32, #tpu.memory_space<vmem>>, vector<1x1x128xf32>
    %12 = vector.shape_cast %11 : vector<1x1x128xf32> to vector<1x128xf32>
    %13 = vector.shape_cast %10 : vector<1x128xf32> to vector<1x1x128xf32>
    tpu.vector_store %arg4[%c0_10, %c0_11, %c0_12], %13 {strides = array<i32>} : memref<1x1x128xf32, #tpu.memory_space<vmem>>, vector<1x1x128xf32>,
    %14 = arith.mulf %4, %4 : vector<256x128xf32>
    %cst_13 = arith.constant dense<0.000000e+00> : vector<128xf32>
    %15 = vector.multi_reduction <add>, %14, %cst_13 [0] : vector<256x128xf32> to vector<128xf32>
    %16 = vector.shape_cast %15 : vector<128xf32> to vector<1x128xf32>
    %c0_14 = arith.constant 0 : index
    %c0_15 = arith.constant 0 : index
    %c0_16 = arith.constant 0 : index
    %17 = vector.load %arg5[%c0_14, %c0_15, %c0_16] : memref<1x1x128xf32, #tpu.memory_space<vmem>>, vector<1x1x128xf32>
    %18 = vector.shape_cast %17 : vector<1x1x128xf32> to vector<1x128xf32>
    %19 = vector.shape_cast %16 : vector<1x128xf32> to vector<1x1x128xf32>
    tpu.vector_store %arg5[%c0_14, %c0_15, %c0_16], %19 {strides = array<i32>} : memref<1x1x128xf32, #tpu.memory_space<vmem>>, vector<1x1x128xf32>,
    return
  }
  func.func @transform_0(%arg0: i32) -> (i32, i32, i32, i32) {
    %c0_i32 = arith.constant 0 : i32
    %c0_i32_0 = arith.constant 0 : i32
    %c0_i32_1 = arith.constant 0 : i32
    %c0_i32_2 = arith.constant 0 : i32
    return %arg0, %c0_i32, %c0_i32_0, %c0_i32_1 : i32, i32, i32, i32
  }
  func.func @transform_1(%arg0: i32) -> (i32, i32) {
    %c0_i32 = arith.constant 0 : i32
    %c0_i32_0 = arith.constant 0 : i32
    %c0_i32_1 = arith.constant 0 : i32
    return %c0_i32, %c0_i32_0 : i32, i32
  }
  func.func @transform_2(%arg0: i32) -> (i32, i32, i32, i32) {
    %c0_i32 = arith.constant 0 : i32
    %c0_i32_0 = arith.constant 0 : i32
    %c0_i32_1 = arith.constant 0 : i32
    %c0_i32_2 = arith.constant 0 : i32
    return %arg0, %c0_i32, %c0_i32_0, %c0_i32_1 : i32, i32, i32, i32
  }
  func.func @transform_3(%arg0: i32) -> (i32, i32, i32) {
    %c0_i32 = arith.constant 0 : i32
    %c0_i32_0 = arith.constant 0 : i32
    %c0_i32_1 = arith.constant 0 : i32
    return %arg0, %c0_i32, %c0_i32_0 : i32, i32, i32
  }
  func.func @transform_4(%arg0: i32) -> (i32, i32, i32) {
    %c0_i32 = arith.constant 0 : i32
    %c0_i32_0 = arith.constant 0 : i32
    %c0_i32_1 = arith.constant 0 : i32
    return %arg0, %c0_i32, %c0_i32_0 : i32, i32, i32
  }
}

module attributes {stable_mosaic.version = 11 : i64} {
  func.func @_bn_relu_conv1x1_stats_kernel(%arg0: i32, %arg1: memref<1x16x16x128xf32, #tpu.memory_space<vmem>>, %arg2: memref<1x128xf32, #tpu.memory_space<vmem>>, %arg3: memref<1x128xf32, #tpu.memory_space<vmem>>, %arg4: memref<128x128xf32, #tpu.memory_space<vmem>>, %arg5: memref<1x16x16x128xf32, #tpu.memory_space<vmem>>, %arg6: memref<1x1x128xf32, #tpu.memory_space<vmem>>, %arg7: memref<1x1x128xf32, #tpu.memory_space<vmem>>) attributes {dimension_semantics = [#tpu.dimension_semantics<parallel>], iteration_bounds = array<i64: 2>, scalar_prefetch = 0 : i64, scratch_operands = 0 : i64, tpu.core_type = #tpu.core_type<tc>, window_params = [{transform_indices = @transform_0, window_bounds = array<i64: 1, 16, 16, 128>}, {pipeline_mode = #tpu.pipeline_mode<synchronous>, transform_indices = @transform_1, window_bounds = array<i64: 1, 128>}, {pipeline_mode = #tpu.pipeline_mode<synchronous>, transform_indices = @transform_2, window_bounds = array<i64: 1, 128>}, {pipeline_mode = #tpu.pipeline_mode<synchronous>, transform_indices = @transform_3, window_bounds = array<i64: 128, 128>}, {transform_indices = @transform_4, window_bounds = array<i64: 1, 16, 16, 128>}, {transform_indices = @transform_5, window_bounds = array<i64: 1, 1, 128>}, {transform_indices = @transform_6, window_bounds = array<i64: 1, 1, 128>}]} {
    %c0 = arith.constant 0 : index
    %c0_0 = arith.constant 0 : index
    %c0_1 = arith.constant 0 : index
    %c0_2 = arith.constant 0 : index
    %0 = vector.load %arg1[%c0, %c0_0, %c0_1, %c0_2] : memref<1x16x16x128xf32, #tpu.memory_space<vmem>>, vector<1x16x16x128xf32>
    %1 = vector.shape_cast %0 : vector<1x16x16x128xf32> to vector<16x16x128xf32>
    %c0_3 = arith.constant 0 : index
    %c0_4 = arith.constant 0 : index
    %2 = vector.load %arg2[%c0_3, %c0_4] : memref<1x128xf32, #tpu.memory_space<vmem>>, vector<1x128xf32>
    %3 = vector.shape_cast %2 : vector<1x128xf32> to vector<1x1x128xf32>
    %4 = vector.broadcast %3 : vector<1x1x128xf32> to vector<16x16x128xf32>
    %5 = arith.mulf %1, %4 : vector<16x16x128xf32>
    %c0_5 = arith.constant 0 : index
    %c0_6 = arith.constant 0 : index
    %6 = vector.load %arg3[%c0_5, %c0_6] : memref<1x128xf32, #tpu.memory_space<vmem>>, vector<1x128xf32>
    %7 = vector.shape_cast %6 : vector<1x128xf32> to vector<1x1x128xf32>
    %8 = vector.broadcast %7 : vector<1x1x128xf32> to vector<16x16x128xf32>
    %9 = arith.addf %5, %8 : vector<16x16x128xf32>
    %cst = arith.constant 0.000000e+00 : f32
    %10 = vector.broadcast %cst : f32 to vector<16x16x128xf32>
    %11 = arith.maximumf %9, %10 : vector<16x16x128xf32>
    %12 = vector.shape_cast %11 : vector<16x16x128xf32> to vector<256x128xf32>
    %c0_7 = arith.constant 0 : index
    %c0_8 = arith.constant 0 : index
    %13 = vector.load %arg4[%c0_7, %c0_8] : memref<128x128xf32, #tpu.memory_space<vmem>>, vector<128x128xf32>
    %cst_9 = arith.constant dense<0.000000e+00> : vector<256x128xf32>
    %14 = tpu.matmul %12, %13, %cst_9 {dimension_numbers = #tpu.dot_dimension_numbers<[1], [0], [0], [1], [0, 0, 1, 1], [], []>} : vector<256x128xf32>, vector<128x128xf32>, vector<256x128xf32> -> vector<256x128xf32>
    %15 = vector.shape_cast %14 : vector<256x128xf32> to vector<16x16x128xf32>
    %c0_10 = arith.constant 0 : index
    %c0_11 = arith.constant 0 : index
    %c0_12 = arith.constant 0 : index
    %c0_13 = arith.constant 0 : index
    %16 = vector.load %arg5[%c0_10, %c0_11, %c0_12, %c0_13] : memref<1x16x16x128xf32, #tpu.memory_space<vmem>>, vector<1x16x16x128xf32>
    %17 = vector.shape_cast %16 : vector<1x16x16x128xf32> to vector<16x16x128xf32>
    %18 = vector.shape_cast %15 : vector<16x16x128xf32> to vector<1x16x16x128xf32>
    tpu.vector_store %arg5[%c0_10, %c0_11, %c0_12, %c0_13], %18 {strides = array<i32>} : memref<1x16x16x128xf32, #tpu.memory_space<vmem>>, vector<1x16x16x128xf32>,
    %cst_14 = arith.constant dense<0.000000e+00> : vector<128xf32>
    %19 = vector.multi_reduction <add>, %14, %cst_14 [0] : vector<256x128xf32> to vector<128xf32>
    %20 = vector.shape_cast %19 : vector<128xf32> to vector<1x128xf32>
    %c0_15 = arith.constant 0 : index
    %c0_16 = arith.constant 0 : index
    %c0_17 = arith.constant 0 : index
    %21 = vector.load %arg6[%c0_15, %c0_16, %c0_17] : memref<1x1x128xf32, #tpu.memory_space<vmem>>, vector<1x1x128xf32>
    %22 = vector.shape_cast %21 : vector<1x1x128xf32> to vector<1x128xf32>
    %23 = vector.shape_cast %20 : vector<1x128xf32> to vector<1x1x128xf32>
    tpu.vector_store %arg6[%c0_15, %c0_16, %c0_17], %23 {strides = array<i32>} : memref<1x1x128xf32, #tpu.memory_space<vmem>>, vector<1x1x128xf32>,
    %24 = arith.mulf %14, %14 : vector<256x128xf32>
    %cst_18 = arith.constant dense<0.000000e+00> : vector<128xf32>
    %25 = vector.multi_reduction <add>, %24, %cst_18 [0] : vector<256x128xf32> to vector<128xf32>
    %26 = vector.shape_cast %25 : vector<128xf32> to vector<1x128xf32>
    %c0_19 = arith.constant 0 : index
    %c0_20 = arith.constant 0 : index
    %c0_21 = arith.constant 0 : index
    %27 = vector.load %arg7[%c0_19, %c0_20, %c0_21] : memref<1x1x128xf32, #tpu.memory_space<vmem>>, vector<1x1x128xf32>
    %28 = vector.shape_cast %27 : vector<1x1x128xf32> to vector<1x128xf32>
    %29 = vector.shape_cast %26 : vector<1x128xf32> to vector<1x1x128xf32>
    tpu.vector_store %arg7[%c0_19, %c0_20, %c0_21], %29 {strides = array<i32>} : memref<1x1x128xf32, #tpu.memory_space<vmem>>, vector<1x1x128xf32>,
    return
  }
  func.func @transform_0(%arg0: i32) -> (i32, i32, i32, i32) {
    %c0_i32 = arith.constant 0 : i32
    %c0_i32_0 = arith.constant 0 : i32
    %c0_i32_1 = arith.constant 0 : i32
    %c0_i32_2 = arith.constant 0 : i32
    return %arg0, %c0_i32, %c0_i32_0, %c0_i32_1 : i32, i32, i32, i32
  }
  func.func @transform_1(%arg0: i32) -> (i32, i32) {
    %c0_i32 = arith.constant 0 : i32
    %c0_i32_0 = arith.constant 0 : i32
    %c0_i32_1 = arith.constant 0 : i32
    return %c0_i32, %c0_i32_0 : i32, i32
  }
  func.func @transform_2(%arg0: i32) -> (i32, i32) {
    %c0_i32 = arith.constant 0 : i32
    %c0_i32_0 = arith.constant 0 : i32
    %c0_i32_1 = arith.constant 0 : i32
    return %c0_i32, %c0_i32_0 : i32, i32
  }
  func.func @transform_3(%arg0: i32) -> (i32, i32) {
    %c0_i32 = arith.constant 0 : i32
    %c0_i32_0 = arith.constant 0 : i32
    %c0_i32_1 = arith.constant 0 : i32
    return %c0_i32, %c0_i32_0 : i32, i32
  }
  func.func @transform_4(%arg0: i32) -> (i32, i32, i32, i32) {
    %c0_i32 = arith.constant 0 : i32
    %c0_i32_0 = arith.constant 0 : i32
    %c0_i32_1 = arith.constant 0 : i32
    %c0_i32_2 = arith.constant 0 : i32
    return %arg0, %c0_i32, %c0_i32_0, %c0_i32_1 : i32, i32, i32, i32
  }
  func.func @transform_5(%arg0: i32) -> (i32, i32, i32) {
    %c0_i32 = arith.constant 0 : i32
    %c0_i32_0 = arith.constant 0 : i32
    %c0_i32_1 = arith.constant 0 : i32
    return %arg0, %c0_i32, %c0_i32_0 : i32, i32, i32
  }
  func.func @transform_6(%arg0: i32) -> (i32, i32, i32) {
    %c0_i32 = arith.constant 0 : i32
    %c0_i32_0 = arith.constant 0 : i32
    %c0_i32_1 = arith.constant 0 : i32
    return %arg0, %c0_i32, %c0_i32_0 : i32, i32, i32
  }
}

module attributes {stable_mosaic.version = 11 : i64} {
  func.func @_bn_residual_relu_kernel(%arg0: i32, %arg1: memref<1x16x16x128xf32, #tpu.memory_space<vmem>>, %arg2: memref<1x16x16x128xf32, #tpu.memory_space<vmem>>, %arg3: memref<1x128xf32, #tpu.memory_space<vmem>>, %arg4: memref<1x128xf32, #tpu.memory_space<vmem>>, %arg5: memref<1x16x16x128xf32, #tpu.memory_space<vmem>>) attributes {dimension_semantics = [#tpu.dimension_semantics<parallel>], iteration_bounds = array<i64: 2>, scalar_prefetch = 0 : i64, scratch_operands = 0 : i64, tpu.core_type = #tpu.core_type<tc>, window_params = [{transform_indices = @transform_0, window_bounds = array<i64: 1, 16, 16, 128>}, {transform_indices = @transform_1, window_bounds = array<i64: 1, 16, 16, 128>}, {pipeline_mode = #tpu.pipeline_mode<synchronous>, transform_indices = @transform_2, window_bounds = array<i64: 1, 128>}, {pipeline_mode = #tpu.pipeline_mode<synchronous>, transform_indices = @transform_3, window_bounds = array<i64: 1, 128>}, {transform_indices = @transform_4, window_bounds = array<i64: 1, 16, 16, 128>}]} {
    %c0 = arith.constant 0 : index
    %c0_0 = arith.constant 0 : index
    %c0_1 = arith.constant 0 : index
    %c0_2 = arith.constant 0 : index
    %0 = vector.load %arg1[%c0, %c0_0, %c0_1, %c0_2] : memref<1x16x16x128xf32, #tpu.memory_space<vmem>>, vector<1x16x16x128xf32>
    %1 = vector.shape_cast %0 : vector<1x16x16x128xf32> to vector<16x16x128xf32>
    %c0_3 = arith.constant 0 : index
    %c0_4 = arith.constant 0 : index
    %2 = vector.load %arg3[%c0_3, %c0_4] : memref<1x128xf32, #tpu.memory_space<vmem>>, vector<1x128xf32>
    %3 = vector.shape_cast %2 : vector<1x128xf32> to vector<1x1x128xf32>
    %4 = vector.broadcast %3 : vector<1x1x128xf32> to vector<16x16x128xf32>
    %5 = arith.mulf %1, %4 : vector<16x16x128xf32>
    %c0_5 = arith.constant 0 : index
    %c0_6 = arith.constant 0 : index
    %6 = vector.load %arg4[%c0_5, %c0_6] : memref<1x128xf32, #tpu.memory_space<vmem>>, vector<1x128xf32>
    %7 = vector.shape_cast %6 : vector<1x128xf32> to vector<1x1x128xf32>
    %8 = vector.broadcast %7 : vector<1x1x128xf32> to vector<16x16x128xf32>
    %9 = arith.addf %5, %8 : vector<16x16x128xf32>
    %c0_7 = arith.constant 0 : index
    %c0_8 = arith.constant 0 : index
    %c0_9 = arith.constant 0 : index
    %c0_10 = arith.constant 0 : index
    %10 = vector.load %arg2[%c0_7, %c0_8, %c0_9, %c0_10] : memref<1x16x16x128xf32, #tpu.memory_space<vmem>>, vector<1x16x16x128xf32>
    %11 = vector.shape_cast %10 : vector<1x16x16x128xf32> to vector<16x16x128xf32>
    %12 = arith.addf %9, %11 : vector<16x16x128xf32>
    %cst = arith.constant 0.000000e+00 : f32
    %13 = vector.broadcast %cst : f32 to vector<16x16x128xf32>
    %14 = arith.maximumf %12, %13 : vector<16x16x128xf32>
    %c0_11 = arith.constant 0 : index
    %c0_12 = arith.constant 0 : index
    %c0_13 = arith.constant 0 : index
    %c0_14 = arith.constant 0 : index
    %15 = vector.load %arg5[%c0_11, %c0_12, %c0_13, %c0_14] : memref<1x16x16x128xf32, #tpu.memory_space<vmem>>, vector<1x16x16x128xf32>
    %16 = vector.shape_cast %15 : vector<1x16x16x128xf32> to vector<16x16x128xf32>
    %17 = vector.shape_cast %14 : vector<16x16x128xf32> to vector<1x16x16x128xf32>
    tpu.vector_store %arg5[%c0_11, %c0_12, %c0_13, %c0_14], %17 {strides = array<i32>} : memref<1x16x16x128xf32, #tpu.memory_space<vmem>>, vector<1x16x16x128xf32>,
    return
  }
  func.func @transform_0(%arg0: i32) -> (i32, i32, i32, i32) {
    %c0_i32 = arith.constant 0 : i32
    %c0_i32_0 = arith.constant 0 : i32
    %c0_i32_1 = arith.constant 0 : i32
    %c0_i32_2 = arith.constant 0 : i32
    return %arg0, %c0_i32, %c0_i32_0, %c0_i32_1 : i32, i32, i32, i32
  }
  func.func @transform_1(%arg0: i32) -> (i32, i32, i32, i32) {
    %c0_i32 = arith.constant 0 : i32
    %c0_i32_0 = arith.constant 0 : i32
    %c0_i32_1 = arith.constant 0 : i32
    %c0_i32_2 = arith.constant 0 : i32
    return %arg0, %c0_i32, %c0_i32_0, %c0_i32_1 : i32, i32, i32, i32
  }
  func.func @transform_2(%arg0: i32) -> (i32, i32) {
    %c0_i32 = arith.constant 0 : i32
    %c0_i32_0 = arith.constant 0 : i32
    %c0_i32_1 = arith.constant 0 : i32
    return %c0_i32, %c0_i32_0 : i32, i32
  }
  func.func @transform_3(%arg0: i32) -> (i32, i32) {
    %c0_i32 = arith.constant 0 : i32
    %c0_i32_0 = arith.constant 0 : i32
    %c0_i32_1 = arith.constant 0 : i32
    return %c0_i32, %c0_i32_0 : i32, i32
  }
  func.func @transform_4(%arg0: i32) -> (i32, i32, i32, i32) {
    %c0_i32 = arith.constant 0 : i32
    %c0_i32_0 = arith.constant 0 : i32
    %c0_i32_1 = arith.constant 0 : i32
    %c0_i32_2 = arith.constant 0 : i32
    return %arg0, %c0_i32, %c0_i32_0, %c0_i32_1 : i32, i32, i32, i32
  }
}

</mosaic_0001>

<llo_original>
// kernel: _lambda_.6
$region0: #{_lambda_.6}
  #allocation0 [shape = 'u32[]', space=smem, size = 0x4, offset = 0x4, fixed_abs, tag = 'smem constant byte address 0x4 - core index']
  #allocation1 [shape = 'u32[72,128]{1,0:T(1,128)}', space=vmem, size = 0x9000, scoped, tag = 'internal scratch']
  %s0 = inlined_call_operand.vmem [shape: f32[2,16,16,128], index: 0, kind: input, shape index: {}]
  %s1 = inlined_call_operand.vmem [shape: f32[1,128], index: 1, kind: input, shape index: {}]
  %s2 = inlined_call_operand.vmem [shape: f32[1,128], index: 2, kind: input, shape index: {}]
  %s3 = inlined_call_operand.vmem [shape: f32[128,128], index: 3, kind: input, shape index: {}]
  %s4 = inlined_call_operand.vmem [shape: f32[2,16,16,128], index: 4, kind: output, shape index: {0}]
  %s5 = inlined_call_operand.vmem [shape: f32[2,1,128], index: 5, kind: output, shape index: {1}]
  %s6 = inlined_call_operand.vmem [shape: f32[2,1,128], index: 6, kind: output, shape index: {2}]
  %7 = xla_tuple %s4, %s5, %s6
  %s8 = sld [smem:[#allocation0]]
  $region65: #{_lambda_.6} parent=0
    _
  %s10 = ssub.s32 1, %s8
  %s11 = scalar_select 0, %s10, %s8
  loop: start=0, step=1, limit=4
  $region2: #{_lambda_.6} parent=0 // loop_pre_header
    _
  $region3: #{_lambda_.6} parent=0 // loop_header
    %s13 = sphi 0, %s17
    %p14 = scmp.ge.s32.totalorder %s13, 4
    %s23 = sphi 0, %s25
    %s26 = sphi 0, %s23
    %s27 = sphi 0, %s26
    %s43 = sphi 0, %s27
    %s47 = sphi 0, %s47
    %s49 = sphi 0, %s47
    %s50 = sphi 0, %s49
    %s64 = sphi 0, %s50
    %s68 = sphi 0, %s68
    %s70 = sphi 0, %s68
    %s71 = sphi 0, %s70
    %s85 = sphi 0, %s71
    %s89 = sphi 0, %s89
    %s91 = sphi 0, %s89
    %s92 = sphi 0, %s91
    %s106 = sphi 0, %s92
    %s112 = sphi 0, %s114
    %s115 = sphi 0, %s112
    %s116 = sphi 0, %s115
    %s132 = sphi 0, %s116
    %s138 = sphi 0, %s140
    %s141 = sphi 0, %s138
    %s142 = sphi 0, %s141
    %s158 = sphi 0, %s142
    %s164 = sphi 0, %s166
    %s167 = sphi 0, %s164
    %s168 = sphi 0, %s167
    %s184 = sphi 0, %s168
  $region4: #{_lambda_.6} parent=0 // loop_header_branch
    %16 = sbr.rel (%p14) target = $region8
  $region5: #{_lambda_.6} parent=0 // loop_body
    %s18 = ssub.s32 %s13, 1
    %s19 = ssub.s32 %s13, 2
    %s20 = sadd.s32 %s13, 1
    %s21 = ssub.s32 %s13, %s20
    %p22 = scmp.eq.s32.totalorder %s21, 0
    %s24 = sadd.s32 %s23, 1
    %s25 = scalar_select %p22, %s23, %s24
    %p28 = pneg %p22
    %p29 = scmp.eq.s32.totalorder %s13, 1
    %p30 = por %p28, %p29
    %p31 = scmp.ne.s32.totalorder %s23, %s26
    %p32 = scmp.eq.s32.totalorder %s13, 0
    %p33 = por %p31, %p32
    %p34 = scmp.ne.s32.totalorder %s23, %s26
    %p35 = scmp.eq.s32.totalorder %s18, 1
    %p36 = por %p34, %p35
    %p37 = scmp.ne.s32.totalorder %s26, %s27
    %p38 = scmp.eq.s32.totalorder %s18, 0
    %p39 = por %p37, %p38
    %p40 = scmp.ne.s32.totalorder %s26, %s27
    %p41 = scmp.eq.s32.totalorder %s19, 1
    %p42 = por %p40, %p41
    %p44 = scmp.ne.s32.totalorder %s27, %s43
    %p45 = scmp.eq.s32.totalorder %s19, 0
    %p46 = por %p44, %p45
    %s48 = sadd.s32 %s47, 1
    %p51 = scmp.eq.s32.totalorder %s13, 1
    %p52 = scmp.ne.s32.totalorder %s47, %s49
    %p53 = scmp.eq.s32.totalorder %s13, 0
    %p54 = por %p52, %p53
    %p55 = scmp.ne.s32.totalorder %s47, %s49
    %p56 = scmp.eq.s32.totalorder %s18, 1
    %p57 = por %p55, %p56
    %p58 = scmp.ne.s32.totalorder %s49, %s50
    %p59 = scmp.eq.s32.totalorder %s18, 0
    %p60 = por %p58, %p59
    %p61 = scmp.ne.s32.totalorder %s49, %s50
    %p62 = scmp.eq.s32.totalorder %s19, 1
    %p63 = por %p61, %p62
    %p65 = scmp.ne.s32.totalorder %s50, %s64
    %p66 = scmp.eq.s32.totalorder %s19, 0
    %p67 = por %p65, %p66
    %s69 = sadd.s32 %s68, 1
    %p72 = scmp.eq.s32.totalorder %s13, 1
    %p73 = scmp.ne.s32.totalorder %s68, %s70
    %p74 = scmp.eq.s32.totalorder %s13, 0
    %p75 = por %p73, %p74
    %p76 = scmp.ne.s32.totalorder %s68, %s70
    %p77 = scmp.eq.s32.totalorder %s18, 1
    %p78 = por %p76, %p77
    %p79 = scmp.ne.s32.totalorder %s70, %s71
    %p80 = scmp.eq.s32.totalorder %s18, 0
    %p81 = por %p79, %p80
    %p82 = scmp.ne.s32.totalorder %s70, %s71
    %p83 = scmp.eq.s32.totalorder %s19, 1
    %p84 = por %p82, %p83
    %p86 = scmp.ne.s32.totalorder %s71, %s85
    %p87 = scmp.eq.s32.totalorder %s19, 0
    %p88 = por %p86, %p87
    %s90 = sadd.s32 %s89, 1
    %p93 = scmp.eq.s32.totalorder %s13, 1
    %p94 = scmp.ne.s32.totalorder %s89, %s91
    %p95 = scmp.eq.s32.totalorder %s13, 0
    %p96 = por %p94, %p95
    %p97 = scmp.ne.s32.totalorder %s89, %s91
    %p98 = scmp.eq.s32.totalorder %s18, 1
    %p99 = por %p97, %p98
    %p100 = scmp.ne.s32.totalorder %s91, %s92
    %p101 = scmp.eq.s32.totalorder %s18, 0
    %p102 = por %p100, %p101
    %p103 = scmp.ne.s32.totalorder %s91, %s92
    %p104 = scmp.eq.s32.totalorder %s19, 1
    %p105 = por %p103, %p104
    %p107 = scmp.ne.s32.totalorder %s92, %s106
    %p108 = scmp.eq.s32.totalorder %s19, 0
    %p109 = por %p107, %p108
    %s110 = ssub.s32 %s13, %s20
    %p111 = scmp.eq.s32.totalorder %s110, 0
    %s113 = sadd.s32 %s112, 1
    %s114 = scalar_select %p111, %s112, %s113
    %p117 = pneg %p111
    %p118 = scmp.eq.s32.totalorder %s13, 1
    %p119 = por %p117, %p118
    %p120 = scmp.ne.s32.totalorder %s112, %s115
    %p121 = scmp.eq.s32.totalorder %s13, 0
    %p122 = por %p120, %p121
    %p123 = scmp.ne.s32.totalorder %s112, %s115
    %p124 = scmp.eq.s32.totalorder %s18, 1
    %p125 = por %p123, %p124
    %p126 = scmp.ne.s32.totalorder %s115, %s116
    %p127 = scmp.eq.s32.totalorder %s18, 0
    %p128 = por %p126, %p127
    %p129 = scmp.ne.s32.totalorder %s115, %s116
    %p130 = scmp.eq.s32.totalorder %s19, 1
    %p131 = por %p129, %p130
    %p133 = scmp.ne.s32.totalorder %s116, %s132
    %p134 = scmp.eq.s32.totalorder %s19, 0
    %p135 = por %p133, %p134
    %s136 = ssub.s32 %s13, %s20
    %p137 = scmp.eq.s32.totalorder %s136, 0
    %s139 = sadd.s32 %s138, 1
    %s140 = scalar_select %p137, %s138, %s139
    %p143 = pneg %p137
    %p144 = scmp.eq.s32.totalorder %s13, 1
    %p145 = por %p143, %p144
    %p146 = scmp.ne.s32.totalorder %s138, %s141
    %p147 = scmp.eq.s32.totalorder %s13, 0
    %p148 = por %p146, %p147
    %p149 = scmp.ne.s32.totalorder %s138, %s141
    %p150 = scmp.eq.s32.totalorder %s18, 1
    %p151 = por %p149, %p150
    %p152 = scmp.ne.s32.totalorder %s141, %s142
    %p153 = scmp.eq.s32.totalorder %s18, 0
    %p154 = por %p152, %p153
    %p155 = scmp.ne.s32.totalorder %s141, %s142
    %p156 = scmp.eq.s32.totalorder %s19, 1
    %p157 = por %p155, %p156
    %p159 = scmp.ne.s32.totalorder %s142, %s158
    %p160 = scmp.eq.s32.totalorder %s19, 0
    %p161 = por %p159, %p160
    %s162 = ssub.s32 %s13, %s20
    %p163 = scmp.eq.s32.totalorder %s162, 0
    %s165 = sadd.s32 %s164, 1
    %s166 = scalar_select %p163, %s164, %s165
    %p169 = pneg %p163
    %p170 = scmp.eq.s32.totalorder %s13, 1
    %p171 = por %p169, %p170
    %p172 = scmp.ne.s32.totalorder %s164, %s167
    %p173 = scmp.eq.s32.totalorder %s13, 0
    %p174 = por %p172, %p173
    %p175 = scmp.ne.s32.totalorder %s164, %s167
    %p176 = scmp.eq.s32.totalorder %s18, 1
    %p177 = por %p175, %p176
    %p178 = scmp.ne.s32.totalorder %s167, %s168
    %p179 = scmp.eq.s32.totalorder %s18, 0
    %p180 = por %p178, %p179
    %p181 = scmp.ne.s32.totalorder %s167, %s168
    %p182 = scmp.eq.s32.totalorder %s19, 1
    %p183 = por %p181, %p182
    %p185 = scmp.ne.s32.totalorder %s168, %s184
    %p186 = scmp.eq.s32.totalorder %s19, 0
    %p187 = por %p185, %p186
    %p188 = scmp.le.s32.totalorder 1, %s13
    %p189 = scmp.lt.s32.totalorder %s13, 3
    %p190 = pnand %p188, %p189
    %p191 = pneg %p190
    // Predicated region
    $region9: #{_lambda_.6} parent=5 // pred_check
      _
    $region10: #{_lambda_.6} parent=5 // pred_check_branch
      %193 = sbr.rel (%p190) target = $region12
    $region11: #{_lambda_.6} parent=5 // pred_region
      %s194 = ssub.s32 %s13, 1
      // Predicated region
      $region13: #{_lambda_.6} parent=11 // pred_check
        %p195 = pneg %p60
      $region14: #{_lambda_.6} parent=11 // pred_check_branch
        %197 = sbr.rel (%p195) target = $region16
      $region15: #{_lambda_.6} parent=11 // pred_region
        _
      $region16: #{_lambda_.6} parent=11 // pred_fallthru
        _
      // Predicated region
      $region17: #{_lambda_.6} parent=11 // pred_check
        %p198 = pneg %p81
      $region18: #{_lambda_.6} parent=11 // pred_check_branch
        %200 = sbr.rel (%p198) target = $region20
      $region19: #{_lambda_.6} parent=11 // pred_region
        _
      $region20: #{_lambda_.6} parent=11 // pred_fallthru
        _
      // Predicated region
      $region21: #{_lambda_.6} parent=11 // pred_check
        %p201 = pneg %p102
      $region22: #{_lambda_.6} parent=11 // pred_check_branch
        %203 = sbr.rel (%p201) target = $region24
      $region23: #{_lambda_.6} parent=11 // pred_region
        _
      $region24: #{_lambda_.6} parent=11 // pred_fallthru
        _
    $region12: #{_lambda_.6} parent=5 // pred_fallthru
      _
    %p204 = scmp.lt.s32.totalorder %s13, 2
    // Predicated region
    $region25: #{_lambda_.6} parent=5 // pred_check
      %p205 = pneg %p204
    $region26: #{_lambda_.6} parent=5 // pred_check_branch
      %207 = sbr.rel (%p205) target = $region28
    $region27: #{_lambda_.6} parent=5 // pred_region
      // Predicated region
      $region29: #{_lambda_.6} parent=27 // pred_check
        %p208 = pneg %p33
      $region30: #{_lambda_.6} parent=27 // pred_check_branch
        %210 = sbr.rel (%p208) target = $region32
      $region31: #{_lambda_.6} parent=27 // pred_region
        %p211 = scmp.lt.s32.totalorder %s13, 1
        %s212 = scalar_select %p211, %s13, 1
        %s213 = smul.addr %s212, 32
        %s214 = smul.addr %s213, 8
        %s215 = scalar_lea.vmem %s0, %s214
      $region32: #{_lambda_.6} parent=27 // pred_fallthru
        _
    $region28: #{_lambda_.6} parent=5 // pred_fallthru
      _
    %p216 = scmp.le.s32.totalorder 1, %s13
    %p217 = scmp.lt.s32.totalorder %s13, 3
    %p218 = pnand %p216, %p217
    %p219 = pneg %p218
    // Predicated region
    $region33: #{_lambda_.6} parent=5 // pred_check
      _
    $region34: #{_lambda_.6} parent=5 // pred_check_branch
      %221 = sbr.rel (%p218) target = $region36
    $region35: #{_lambda_.6} parent=5 // pred_region
      %s222 = ssub.s32 %s13, 1
      %p223 = scmp.lt.s32.totalorder %s18, 1
      %s224 = scalar_select %p223, %s18, 1
      %s225 = smul.addr %s224, 32
      %s226 = smul.addr %s225, 8
      %s227 = scalar_lea.vmem %s0, %s226
      %p228 = pneg %p39
      %p229 = pneg %p36
      %p230 = pneg %p60
      %p231 = pneg %p57
      %p232 = pneg %p81
      %p233 = pneg %p78
      %p234 = pneg %p102
      %p235 = pneg %p99
      %p236 = pneg %p128
      %p237 = pneg %p125
      %p238 = scmp.lt.s32.totalorder %s18, 1
      %s239 = scalar_select %p238, %s18, 1
      %s240 = smul.addr %s239, 32
      %s241 = smul.addr %s240, 8
      %s242 = scalar_lea.vmem %s4, %s241
      %p243 = pneg %p154
      %p244 = pneg %p151
      %p245 = scmp.lt.s32.totalorder %s18, 1
      %s246 = scalar_select %p245, %s18, 1
      %s247 = scalar_lea.vmem %s5, %s246
      %p248 = pneg %p180
      %p249 = pneg %p177
      %p250 = scmp.lt.s32.totalorder %s18, 1
      %s251 = scalar_select %p250, %s18, 1
      %s252 = scalar_lea.vmem %s6, %s251
      %p253 = scmp.lt.s32.totalorder %s18, 1
      %s254 = scalar_select %p253, %s18, 1
      %s255 = smul.addr %s254, 32
      %s256 = smul.addr %s255, 8
      %s257 = scalar_lea.vmem %s0, %s256
      %p258 = scmp.lt.s32.totalorder %s18, 1
      %s259 = scalar_select %p258, %s18, 1
      %s260 = smul.addr %s259, 32
      %s261 = smul.addr %s260, 8
      %s262 = scalar_lea.vmem %s4, %s261
      %p263 = scmp.lt.s32.totalorder %s18, 1
      %s264 = scalar_select %p263, %s18, 1
      %s265 = scalar_lea.vmem %s5, %s264
      %p266 = scmp.lt.s32.totalorder %s18, 1
      %s267 = scalar_select %p266, %s18, 1
      %s268 = scalar_lea.vmem %s6, %s267
      %v269 = vld [vmem:[%s257] sm:$0xff]
      %v270 = vld [vmem:[%s257 + $0x8] sm:$0xff]
      %v271 = vld [vmem:[%s257 + $0x10] sm:$0xff]
      %v272 = vld [vmem:[%s257 + $0x18] sm:$0xff]
      %v273 = vld [vmem:[%s257 + $0x20] sm:$0xff]
      %v274 = vld [vmem:[%s257 + $0x28] sm:$0xff]
      %v275 = vld [vmem:[%s257 + $0x30] sm:$0xff]
      %v276 = vld [vmem:[%s257 + $0x38] sm:$0xff]
      %v277 = vld [vmem:[%s257 + $0x40] sm:$0xff]
      %v278 = vld [vmem:[%s257 + $0x48] sm:$0xff]
      %v279 = vld [vmem:[%s257 + $0x50] sm:$0xff]
      %v280 = vld [vmem:[%s257 + $0x58] sm:$0xff]
      %v281 = vld [vmem:[%s257 + $0x60] sm:$0xff]
      %v282 = vld [vmem:[%s257 + $0x68] sm:$0xff]
      %v283 = vld [vmem:[%s257 + $0x70] sm:$0xff]
      %v284 = vld [vmem:[%s257 + $0x78] sm:$0xff]
      %v285 = vld [vmem:[%s257 + $0x80] sm:$0xff]
      %v286 = vld [vmem:[%s257 + $0x88] sm:$0xff]
      %v287 = vld [vmem:[%s257 + $0x90] sm:$0xff]
      %v288 = vld [vmem:[%s257 + $0x98] sm:$0xff]
      %v289 = vld [vmem:[%s257 + $0xa0] sm:$0xff]
      %v290 = vld [vmem:[%s257 + $0xa8] sm:$0xff]
      %v291 = vld [vmem:[%s257 + $0xb0] sm:$0xff]
      %v292 = vld [vmem:[%s257 + $0xb8] sm:$0xff]
      %v293 = vld [vmem:[%s257 + $0xc0] sm:$0xff]
      %v294 = vld [vmem:[%s257 + $0xc8] sm:$0xff]
      %v295 = vld [vmem:[%s257 + $0xd0] sm:$0xff]
      %v296 = vld [vmem:[%s257 + $0xd8] sm:$0xff]
      %v297 = vld [vmem:[%s257 + $0xe0] sm:$0xff]
      %v298 = vld [vmem:[%s257 + $0xe8] sm:$0xff]
      %v299 = vld [vmem:[%s257 + $0xf0] sm:$0xff]
      %v300 = vld [vmem:[%s257 + $0xf8] sm:$0xff]
      %v301 = vld [vmem:[%s1] sm:$0x1]
      %v303 = vperm.slane %v301, 0
      %v305 = vmul.f32 %v269, %v303
      %v306 = vmul.f32 %v270, %v303
      %v307 = vmul.f32 %v271, %v303
      %v308 = vmul.f32 %v272, %v303
      %v309 = vmul.f32 %v273, %v303
      %v310 = vmul.f32 %v274, %v303
      %v311 = vmul.f32 %v275, %v303
      %v312 = vmul.f32 %v276, %v303
      %v313 = vmul.f32 %v277, %v303
      %v314 = vmul.f32 %v278, %v303
      %v315 = vmul.f32 %v279, %v303
      %v316 = vmul.f32 %v280, %v303
      %v317 = vmul.f32 %v281, %v303
      %v318 = vmul.f32 %v282, %v303
      %v319 = vmul.f32 %v283, %v303
      %v320 = vmul.f32 %v284, %v303
      %v321 = vmul.f32 %v285, %v303
      %v322 = vmul.f32 %v286, %v303
      %v323 = vmul.f32 %v287, %v303
      %v324 = vmul.f32 %v288, %v303
      %v325 = vmul.f32 %v289, %v303
      %v326 = vmul.f32 %v290, %v303
      %v327 = vmul.f32 %v291, %v303
      %v328 = vmul.f32 %v292, %v303
      %v329 = vmul.f32 %v293, %v303
      %v330 = vmul.f32 %v294, %v303
      %v331 = vmul.f32 %v295, %v303
      %v332 = vmul.f32 %v296, %v303
      %v333 = vmul.f32 %v297, %v303
      %v334 = vmul.f32 %v298, %v303
      %v335 = vmul.f32 %v299, %v303
      %v336 = vmul.f32 %v300, %v303
      %v337 = vld [vmem:[%s2] sm:$0x1]
      %v339 = vperm.slane %v337, 0
      %v341 = vadd.f32 %v305, %v339
      %v342 = vadd.f32 %v306, %v339
      %v343 = vadd.f32 %v307, %v339
      %v344 = vadd.f32 %v308, %v339
      %v345 = vadd.f32 %v309, %v339
      %v346 = vadd.f32 %v310, %v339
      %v347 = vadd.f32 %v311, %v339
      %v348 = vadd.f32 %v312, %v339
      %v349 = vadd.f32 %v313, %v339
      %v350 = vadd.f32 %v314, %v339
      %v351 = vadd.f32 %v315, %v339
      %v352 = vadd.f32 %v316, %v339
      %v353 = vadd.f32 %v317, %v339
      %v354 = vadd.f32 %v318, %v339
      %v355 = vadd.f32 %v319, %v339
      %v356 = vadd.f32 %v320, %v339
      %v357 = vadd.f32 %v321, %v339
      %v358 = vadd.f32 %v322, %v339
      %v359 = vadd.f32 %v323, %v339
      %v360 = vadd.f32 %v324, %v339
      %v361 = vadd.f32 %v325, %v339
      %v362 = vadd.f32 %v326, %v339
      %v363 = vadd.f32 %v327, %v339
      %v364 = vadd.f32 %v328, %v339
      %v365 = vadd.f32 %v329, %v339
      %v366 = vadd.f32 %v330, %v339
      %v367 = vadd.f32 %v331, %v339
      %v368 = vadd.f32 %v332, %v339
      %v369 = vadd.f32 %v333, %v339
      %v370 = vadd.f32 %v334, %v339
      %v371 = vadd.f32 %v335, %v339
      %v372 = vadd.f32 %v336, %v339
      %v373 = vmax.f32 %v341, 0.0
      %v374 = vmax.f32 %v342, 0.0
      %v375 = vmax.f32 %v343, 0.0
      %v376 = vmax.f32 %v344, 0.0
      %v377 = vmax.f32 %v345, 0.0
      %v378 = vmax.f32 %v346, 0.0
      %v379 = vmax.f32 %v347, 0.0
      %v380 = vmax.f32 %v348, 0.0
      %v381 = vmax.f32 %v349, 0.0
      %v382 = vmax.f32 %v350, 0.0
      %v383 = vmax.f32 %v351, 0.0
      %v384 = vmax.f32 %v352, 0.0
      %v385 = vmax.f32 %v353, 0.0
      %v386 = vmax.f32 %v354, 0.0
      %v387 = vmax.f32 %v355, 0.0
      %v388 = vmax.f32 %v356, 0.0
      %v389 = vmax.f32 %v357, 0.0
      %v390 = vmax.f32 %v358, 0.0
      %v391 = vmax.f32 %v359, 0.0
      %v392 = vmax.f32 %v360, 0.0
      %v393 = vmax.f32 %v361, 0.0
      %v394 = vmax.f32 %v362, 0.0
      %v395 = vmax.f32 %v363, 0.0
      %v396 = vmax.f32 %v364, 0.0
      %v397 = vmax.f32 %v365, 0.0
      %v398 = vmax.f32 %v366, 0.0
      %v399 = vmax.f32 %v367, 0.0
      %v400 = vmax.f32 %v368, 0.0
      %v401 = vmax.f32 %v369, 0.0
      %v402 = vmax.f32 %v370, 0.0
      %v403 = vmax.f32 %v371, 0.0
      %v404 = vmax.f32 %v372, 0.0
      %v405 = vld [vmem:[%s3] sm:$0xff]
      %v406 = vld [vmem:[%s3 + $0x8] sm:$0xff]
      %v407 = vld [vmem:[%s3 + $0x10] sm:$0xff]
      %v408 = vld [vmem:[%s3 + $0x18] sm:$0xff]
      %v409 = vld [vmem:[%s3 + $0x20] sm:$0xff]
      %v410 = vld [vmem:[%s3 + $0x28] sm:$0xff]
      %v411 = vld [vmem:[%s3 + $0x30] sm:$0xff]
      %v412 = vld [vmem:[%s3 + $0x38] sm:$0xff]
      %v413 = vld [vmem:[%s3 + $0x40] sm:$0xff]
      %v414 = vld [vmem:[%s3 + $0x48] sm:$0xff]
      %v415 = vld [vmem:[%s3 + $0x50] sm:$0xff]
      %v416 = vld [vmem:[%s3 + $0x58] sm:$0xff]
      %v417 = vld [vmem:[%s3 + $0x60] sm:$0xff]
      %v418 = vld [vmem:[%s3 + $0x68] sm:$0xff]
      %v419 = vld [vmem:[%s3 + $0x70] sm:$0xff]
      %v420 = vld [vmem:[%s3 + $0x78] sm:$0xff]
      %421 = vmatpush.msra.mxu0 %v420
      %422 = vmatpush.msra.mxu0 %v419
      %423 = vmatpush.msra.mxu0 %v418
      %424 = vmatpush.msra.mxu0 %v417
      %425 = vmatpush.msra.mxu0 %v416
      %426 = vmatpush.msra.mxu0 %v415
      %427 = vmatpush.msra.mxu0 %v414
      %428 = vmatpush.msra.mxu0 %v413
      %429 = vmatpush.msra.mxu0 %v412
      %430 = vmatpush.msra.mxu0 %v411
      %431 = vmatpush.msra.mxu0 %v410
      %432 = vmatpush.msra.mxu0 %v409
      %433 = vmatpush.msra.mxu0 %v408
      %434 = vmatpush.msra.mxu0 %v407
      %435 = vmatpush.msra.mxu0 %v406
      %436 = vmatpush.msra.mxu0 %v405
      %437 = vmatmul.f32.gmra.mxu0 %v373
      %v438 = vpop.f32.mrf.mxu0
      %v439 = vadd.f32 0.0, %v438
      %440 = vmatmul.f32.gmra.mxu0 %v374
      %v441 = vpop.f32.mrf.mxu0
      %v442 = vadd.f32 0.0, %v441
      %443 = vmatmul.f32.gmra.mxu0 %v375
      %v444 = vpop.f32.mrf.mxu0
      %v445 = vadd.f32 0.0, %v444
      %446 = vmatmul.f32.gmra.mxu0 %v376
      %v447 = vpop.f32.mrf.mxu0
      %v448 = vadd.f32 0.0, %v447
      %449 = vmatmul.f32.gmra.mxu0 %v377
      %v450 = vpop.f32.mrf.mxu0
      %v451 = vadd.f32 0.0, %v450
      %452 = vmatmul.f32.gmra.mxu0 %v378
      %v453 = vpop.f32.mrf.mxu0
      %v454 = vadd.f32 0.0, %v453
      %455 = vmatmul.f32.gmra.mxu0 %v379
      %v456 = vpop.f32.mrf.mxu0
      %v457 = vadd.f32 0.0, %v456
      %458 = vmatmul.f32.gmra.mxu0 %v380
      %v459 = vpop.f32.mrf.mxu0
      %v460 = vadd.f32 0.0, %v459
      %461 = vmatmul.f32.gmra.mxu0 %v381
      %v462 = vpop.f32.mrf.mxu0
      %v463 = vadd.f32 0.0, %v462
      %464 = vmatmul.f32.gmra.mxu0 %v382
      %v465 = vpop.f32.mrf.mxu0
      %v466 = vadd.f32 0.0, %v465
      %467 = vmatmul.f32.gmra.mxu0 %v383
      %v468 = vpop.f32.mrf.mxu0
      %v469 = vadd.f32 0.0, %v468
      %470 = vmatmul.f32.gmra.mxu0 %v384
      %v471 = vpop.f32.mrf.mxu0
      %v472 = vadd.f32 0.0, %v471
      %473 = vmatmul.f32.gmra.mxu0 %v385
      %v474 = vpop.f32.mrf.mxu0
      %v475 = vadd.f32 0.0, %v474
      %476 = vmatmul.f32.gmra.mxu0 %v386
      %v477 = vpop.f32.mrf.mxu0
      %v478 = vadd.f32 0.0, %v477
      %479 = vmatmul.f32.gmra.mxu0 %v387
      %v480 = vpop.f32.mrf.mxu0
      %v481 = vadd.f32 0.0, %v480
      %482 = vmatmul.f32.gmra.mxu0 %v388
      %v483 = vpop.f32.mrf.mxu0
      %v484 = vadd.f32 0.0, %v483
      %485 = vmatmul.f32.gmra.mxu0 %v389
      %v486 = vpop.f32.mrf.mxu0
      %v487 = vadd.f32 0.0, %v486
      %488 = vmatmul.f32.gmra.mxu0 %v390
      %v489 = vpop.f32.mrf.mxu0
      %v490 = vadd.f32 0.0, %v489
      %491 = vmatmul.f32.gmra.mxu0 %v391
      %v492 = vpop.f32.mrf.mxu0
      %v493 = vadd.f32 0.0, %v492
      %494 = vmatmul.f32.gmra.mxu0 %v392
      %v495 = vpop.f32.mrf.mxu0
      %v496 = vadd.f32 0.0, %v495
      %497 = vmatmul.f32.gmra.mxu0 %v393
      %v498 = vpop.f32.mrf.mxu0
      %v499 = vadd.f32 0.0, %v498
      %500 = vmatmul.f32.gmra.mxu0 %v394
      %v501 = vpop.f32.mrf.mxu0
      %v502 = vadd.f32 0.0, %v501
      %503 = vmatmul.f32.gmra.mxu0 %v395
      %v504 = vpop.f32.mrf.mxu0
      %v505 = vadd.f32 0.0, %v504
      %506 = vmatmul.f32.gmra.mxu0 %v396
      %v507 = vpop.f32.mrf.mxu0
      %v508 = vadd.f32 0.0, %v507
      %509 = vmatmul.f32.gmra.mxu0 %v397
      %v510 = vpop.f32.mrf.mxu0
      %v511 = vadd.f32 0.0, %v510
      %512 = vmatmul.f32.gmra.mxu0 %v398
      %v513 = vpop.f32.mrf.mxu0
      %v514 = vadd.f32 0.0, %v513
      %515 = vmatmul.f32.gmra.mxu0 %v399
      %v516 = vpop.f32.mrf.mxu0
      %v517 = vadd.f32 0.0, %v516
      %518 = vmatmul.f32.gmra.mxu0 %v400
      %v519 = vpop.f32.mrf.mxu0
      %v520 = vadd.f32 0.0, %v519
      %521 = vmatmul.f32.gmra.mxu0 %v401
      %v522 = vpop.f32.mrf.mxu0
      %v523 = vadd.f32 0.0, %v522
      %524 = vmatmul.f32.gmra.mxu0 %v402
      %v525 = vpop.f32.mrf.mxu0
      %v526 = vadd.f32 0.0, %v525
      %527 = vmatmul.f32.gmra.mxu0 %v403
      %v528 = vpop.f32.mrf.mxu0
      %v529 = vadd.f32 0.0, %v528
      %530 = vmatmul.f32.gmra.mxu0 %v404
      %v531 = vpop.f32.mrf.mxu0
      %v532 = vadd.f32 0.0, %v531
      %533 = vdwg.mxu0
      %534 = vst [vmem:[%s262] sm:$0xff] %v439
      %535 = vst [vmem:[%s262 + $0x8] sm:$0xff] %v442
      %536 = vst [vmem:[%s262 + $0x10] sm:$0xff] %v445
      %537 = vst [vmem:[%s262 + $0x18] sm:$0xff] %v448
      %538 = vst [vmem:[%s262 + $0x20] sm:$0xff] %v451
      %539 = vst [vmem:[%s262 + $0x28] sm:$0xff] %v454
      %540 = vst [vmem:[%s262 + $0x30] sm:$0xff] %v457
      %541 = vst [vmem:[%s262 + $0x38] sm:$0xff] %v460
      %542 = vst [vmem:[%s262 + $0x40] sm:$0xff] %v463
      %543 = vst [vmem:[%s262 + $0x48] sm:$0xff] %v466
      %544 = vst [vmem:[%s262 + $0x50] sm:$0xff] %v469
      %545 = vst [vmem:[%s262 + $0x58] sm:$0xff] %v472
      %546 = vst [vmem:[%s262 + $0x60] sm:$0xff] %v475
      %547 = vst [vmem:[%s262 + $0x68] sm:$0xff] %v478
      %548 = vst [vmem:[%s262 + $0x70] sm:$0xff] %v481
      %549 = vst [vmem:[%s262 + $0x78] sm:$0xff] %v484
      %550 = vst [vmem:[%s262 + $0x80] sm:$0xff] %v487
      %551 = vst [vmem:[%s262 + $0x88] sm:$0xff] %v490
      %552 = vst [vmem:[%s262 + $0x90] sm:$0xff] %v493
      %553 = vst [vmem:[%s262 + $0x98] sm:$0xff] %v496
      %554 = vst [vmem:[%s262 + $0xa0] sm:$0xff] %v499
      %555 = vst [vmem:[%s262 + $0xa8] sm:$0xff] %v502
      %556 = vst [vmem:[%s262 + $0xb0] sm:$0xff] %v505
      %557 = vst [vmem:[%s262 + $0xb8] sm:$0xff] %v508
      %558 = vst [vmem:[%s262 + $0xc0] sm:$0xff] %v511
      %559 = vst [vmem:[%s262 + $0xc8] sm:$0xff] %v514
      %560 = vst [vmem:[%s262 + $0xd0] sm:$0xff] %v517
      %561 = vst [vmem:[%s262 + $0xd8] sm:$0xff] %v520
      %562 = vst [vmem:[%s262 + $0xe0] sm:$0xff] %v523
      %563 = vst [vmem:[%s262 + $0xe8] sm:$0xff] %v526
      %564 = vst [vmem:[%s262 + $0xf0] sm:$0xff] %v529
      %565 = vst [vmem:[%s262 + $0xf8] sm:$0xff] %v532
      %v566 = vadd.f32 %v439, %v442
      %v567 = vadd.f32 %v566, %v445
      %v568 = vadd.f32 %v567, %v448
      %v569 = vadd.f32 %v568, %v451
      %v570 = vadd.f32 %v569, %v454
      %v571 = vadd.f32 %v570, %v457
      %v572 = vadd.f32 %v571, %v460
      %v573 = vadd.f32 %v572, %v463
      %v574 = vadd.f32 %v573, %v466
      %v575 = vadd.f32 %v574, %v469
      %v576 = vadd.f32 %v575, %v472
      %v577 = vadd.f32 %v576, %v475
      %v578 = vadd.f32 %v577, %v478
      %v579 = vadd.f32 %v578, %v481
      %v580 = vadd.f32 %v579, %v484
      %v581 = vadd.f32 %v580, %v487
      %v582 = vadd.f32 %v581, %v490
      %v583 = vadd.f32 %v582, %v493
      %v584 = vadd.f32 %v583, %v496
      %v585 = vadd.f32 %v584, %v499
      %v586 = vadd.f32 %v585, %v502
      %v587 = vadd.f32 %v586, %v505
      %v588 = vadd.f32 %v587, %v508
      %v589 = vadd.f32 %v588, %v511
      %v590 = vadd.f32 %v589, %v514
      %v591 = vadd.f32 %v590, %v517
      %v592 = vadd.f32 %v591, %v520
      %v593 = vadd.f32 %v592, %v523
      %v594 = vadd.f32 %v593, %v526
      %v595 = vadd.f32 %v594, %v529
      %v596 = vadd.f32 %v595, %v532
      %v597 = vrot.slane %v596, 4
      %v598 = vadd.f32 %v596, %v597
      %v599 = vrot.slane %v598, 2
      %v600 = vadd.f32 %v598, %v599
      %v601 = vrot.slane %v600, 1
      %v602 = vadd.f32 %v600, %v601
      %603 = vst [vmem:[%s265] sm:$0x1] %v602
      %v604 = vmul.f32 %v439, %v439
      %v605 = vmul.f32 %v442, %v442
      %v606 = vmul.f32 %v445, %v445
      %v607 = vmul.f32 %v448, %v448
      %v608 = vmul.f32 %v451, %v451
      %v609 = vmul.f32 %v454, %v454
      %v610 = vmul.f32 %v457, %v457
      %v611 = vmul.f32 %v460, %v460
      %v612 = vmul.f32 %v463, %v463
      %v613 = vmul.f32 %v466, %v466
      %v614 = vmul.f32 %v469, %v469
      %v615 = vmul.f32 %v472, %v472
      %v616 = vmul.f32 %v475, %v475
      %v617 = vmul.f32 %v478, %v478
      %v618 = vmul.f32 %v481, %v481
      %v619 = vmul.f32 %v484, %v484
      %v620 = vmul.f32 %v487, %v487
      %v621 = vmul.f32 %v490, %v490
      %v622 = vmul.f32 %v493, %v493
      %v623 = vmul.f32 %v496, %v496
      %v624 = vmul.f32 %v499, %v499
      %v625 = vmul.f32 %v502, %v502
      %v626 = vmul.f32 %v505, %v505
      %v627 = vmul.f32 %v508, %v508
      %v628 = vmul.f32 %v511, %v511
      %v629 = vmul.f32 %v514, %v514
      %v630 = vmul.f32 %v517, %v517
      %v631 = vmul.f32 %v520, %v520
      %v632 = vmul.f32 %v523, %v523
      %v633 = vmul.f32 %v526, %v526
      %v634 = vmul.f32 %v529, %v529
      %v635 = vmul.f32 %v532, %v532
      %v636 = vadd.f32 %v604, %v605
      %v637 = vadd.f32 %v636, %v606
      %v638 = vadd.f32 %v637, %v607
      %v639 = vadd.f32 %v638, %v608
      %v640 = vadd.f32 %v639, %v609
      %v641 = vadd.f32 %v640, %v610
      %v642 = vadd.f32 %v641, %v611
      %v643 = vadd.f32 %v642, %v612
      %v644 = vadd.f32 %v643, %v613
      %v645 = vadd.f32 %v644, %v614
      %v646 = vadd.f32 %v645, %v615
      %v647 = vadd.f32 %v646, %v616
      %v648 = vadd.f32 %v647, %v617
      %v649 = vadd.f32 %v648, %v618
      %v650 = vadd.f32 %v649, %v619
      %v651 = vadd.f32 %v650, %v620
      %v652 = vadd.f32 %v651, %v621
      %v653 = vadd.f32 %v652, %v622
      %v654 = vadd.f32 %v653, %v623
      %v655 = vadd.f32 %v654, %v624
      %v656 = vadd.f32 %v655, %v625
      %v657 = vadd.f32 %v656, %v626
      %v658 = vadd.f32 %v657, %v627
      %v659 = vadd.f32 %v658, %v628
      %v660 = vadd.f32 %v659, %v629
      %v661 = vadd.f32 %v660, %v630
      %v662 = vadd.f32 %v661, %v631
      %v663 = vadd.f32 %v662, %v632
      %v664 = vadd.f32 %v663, %v633
      %v665 = vadd.f32 %v664, %v634
      %v666 = vadd.f32 %v665, %v635
      %v667 = vrot.slane %v666, 4
      %v668 = vadd.f32 %v666, %v667
      %v669 = vrot.slane %v668, 2
      %v670 = vadd.f32 %v668, %v669
      %v671 = vrot.slane %v670, 1
      %v672 = vadd.f32 %v670, %v671
      %673 = vst [vmem:[%s268] sm:$0x1] %v672
      %p674 = scmp.lt.s32.totalorder %s18, 1
      %s675 = scalar_select %p674, %s18, 1
      %s676 = smul.addr %s675, 32
      %s677 = smul.addr %s676, 8
      %s678 = scalar_lea.vmem %s4, %s677
      %p679 = scmp.lt.s32.totalorder %s18, 1
      %s680 = scalar_select %p679, %s18, 1
      %s681 = scalar_lea.vmem %s5, %s680
      %p682 = scmp.lt.s32.totalorder %s18, 1
      %s683 = scalar_select %p682, %s18, 1
      %s684 = scalar_lea.vmem %s6, %s683
      // Predicated region
      $region37: #{_lambda_.6} parent=35 // pred_check
        %p685 = pneg %p125
      $region38: #{_lambda_.6} parent=35 // pred_check_branch
        %687 = sbr.rel (%p685) target = $region40
      $region39: #{_lambda_.6} parent=35 // pred_region
        _
      $region40: #{_lambda_.6} parent=35 // pred_fallthru
        _
      // Predicated region
      $region41: #{_lambda_.6} parent=35 // pred_check
        %p688 = pneg %p151
      $region42: #{_lambda_.6} parent=35 // pred_check_branch
        %690 = sbr.rel (%p688) target = $region44
      $region43: #{_lambda_.6} parent=35 // pred_region
        _
      $region44: #{_lambda_.6} parent=35 // pred_fallthru
        _
      // Predicated region
      $region45: #{_lambda_.6} parent=35 // pred_check
        %p691 = pneg %p177
      $region46: #{_lambda_.6} parent=35 // pred_check_branch
        %693 = sbr.rel (%p691) target = $region48
      $region47: #{_lambda_.6} parent=35 // pred_region
        _
      $region48: #{_lambda_.6} parent=35 // pred_fallthru
        _
    $region36: #{_lambda_.6} parent=5 // pred_fallthru
      _
    %p694 = scmp.le.s32.totalorder 2, %s13
    // Predicated region
    $region49: #{_lambda_.6} parent=5 // pred_check
      %p695 = pneg %p694
    $region50: #{_lambda_.6} parent=5 // pred_check_branch
      %697 = sbr.rel (%p695) target = $region52
    $region51: #{_lambda_.6} parent=5 // pred_region
      %s698 = ssub.s32 %s13, 2
      // Predicated region
      $region53: #{_lambda_.6} parent=51 // pred_check
        %p699 = pneg %p131
      $region54: #{_lambda_.6} parent=51 // pred_check_branch
        %701 = sbr.rel (%p699) target = $region56
      $region55: #{_lambda_.6} parent=51 // pred_region
        %p702 = scmp.lt.s32.totalorder %s19, 1
        %s703 = scalar_select %p702, %s19, 1
        %s704 = smul.addr %s703, 32
        %s705 = smul.addr %s704, 8
        %s706 = scalar_lea.vmem %s4, %s705
      $region56: #{_lambda_.6} parent=51 // pred_fallthru
        _
      // Predicated region
      $region57: #{_lambda_.6} parent=51 // pred_check
        %p707 = pneg %p157
      $region58: #{_lambda_.6} parent=51 // pred_check_branch
        %709 = sbr.rel (%p707) target = $region60
      $region59: #{_lambda_.6} parent=51 // pred_region
        %p710 = scmp.lt.s32.totalorder %s19, 1
        %s711 = scalar_select %p710, %s19, 1
        %s712 = scalar_lea.vmem %s5, %s711
      $region60: #{_lambda_.6} parent=51 // pred_fallthru
        _
      // Predicated region
      $region61: #{_lambda_.6} parent=51 // pred_check
        %p713 = pneg %p183
      $region62: #{_lambda_.6} parent=51 // pred_check_branch
        %715 = sbr.rel (%p713) target = $region64
      $region63: #{_lambda_.6} parent=51 // pred_region
        %p716 = scmp.lt.s32.totalorder %s19, 1
        %s717 = scalar_select %p716, %s19, 1
        %s718 = scalar_lea.vmem %s6, %s717
      $region64: #{_lambda_.6} parent=51 // pred_fallthru
        _
    $region52: #{_lambda_.6} parent=5 // pred_fallthru
      _
  $region6: #{_lambda_.6} parent=0 // loop_footer
    %s17 = sadd.s32 1, %s13
  $region7: #{_lambda_.6} parent=0 // loop_footer_branch
    %12 = sbr.rel target = $region3
  $region8: #{_lambda_.6} parent=0 // loop_exit
    _

// kernel: _lambda_.4
$region0: #{_lambda_.4}
  #allocation0 [shape = 'u32[]', space=smem, size = 0x4, offset = 0x4, fixed_abs, tag = 'smem constant byte address 0x4 - core index']
  #allocation1 [shape = 'u32[72,128]{1,0:T(1,128)}', space=vmem, size = 0x9000, scoped, tag = 'internal scratch']
  %s0 = inlined_call_operand.vmem [shape: f32[2,16,16,128], index: 0, kind: input, shape index: {}]
  %s1 = inlined_call_operand.vmem [shape: f32[128,128], index: 1, kind: input, shape index: {}]
  %s2 = inlined_call_operand.vmem [shape: f32[2,16,16,128], index: 2, kind: output, shape index: {0}]
  %s3 = inlined_call_operand.vmem [shape: f32[2,1,128], index: 3, kind: output, shape index: {1}]
  %s4 = inlined_call_operand.vmem [shape: f32[2,1,128], index: 4, kind: output, shape index: {2}]
  %5 = xla_tuple %s2, %s3, %s4
  %s6 = sld [smem:[#allocation0]]
  $region57: #{_lambda_.4} parent=0
    _
  %s8 = ssub.s32 1, %s6
  %s9 = scalar_select 0, %s8, %s6
  loop: start=0, step=1, limit=4
  $region2: #{_lambda_.4} parent=0 // loop_pre_header
    _
  $region3: #{_lambda_.4} parent=0 // loop_header
    %s11 = sphi 0, %s15
    %p12 = scmp.ge.s32.totalorder %s11, 4
    %s21 = sphi 0, %s23
    %s24 = sphi 0, %s21
    %s25 = sphi 0, %s24
    %s41 = sphi 0, %s25
    %s45 = sphi 0, %s45
    %s47 = sphi 0, %s45
    %s48 = sphi 0, %s47
    %s62 = sphi 0, %s48
    %s68 = sphi 0, %s70
    %s71 = sphi 0, %s68
    %s72 = sphi 0, %s71
    %s88 = sphi 0, %s72
    %s94 = sphi 0, %s96
    %s97 = sphi 0, %s94
    %s98 = sphi 0, %s97
    %s114 = sphi 0, %s98
    %s120 = sphi 0, %s122
    %s123 = sphi 0, %s120
    %s124 = sphi 0, %s123
    %s140 = sphi 0, %s124
  $region4: #{_lambda_.4} parent=0 // loop_header_branch
    %14 = sbr.rel (%p12) target = $region8
  $region5: #{_lambda_.4} parent=0 // loop_body
    %s16 = ssub.s32 %s11, 1
    %s17 = ssub.s32 %s11, 2
    %s18 = sadd.s32 %s11, 1
    %s19 = ssub.s32 %s11, %s18
    %p20 = scmp.eq.s32.totalorder %s19, 0
    %s22 = sadd.s32 %s21, 1
    %s23 = scalar_select %p20, %s21, %s22
    %p26 = pneg %p20
    %p27 = scmp.eq.s32.totalorder %s11, 1
    %p28 = por %p26, %p27
    %p29 = scmp.ne.s32.totalorder %s21, %s24
    %p30 = scmp.eq.s32.totalorder %s11, 0
    %p31 = por %p29, %p30
    %p32 = scmp.ne.s32.totalorder %s21, %s24
    %p33 = scmp.eq.s32.totalorder %s16, 1
    %p34 = por %p32, %p33
    %p35 = scmp.ne.s32.totalorder %s24, %s25
    %p36 = scmp.eq.s32.totalorder %s16, 0
    %p37 = por %p35, %p36
    %p38 = scmp.ne.s32.totalorder %s24, %s25
    %p39 = scmp.eq.s32.totalorder %s17, 1
    %p40 = por %p38, %p39
    %p42 = scmp.ne.s32.totalorder %s25, %s41
    %p43 = scmp.eq.s32.totalorder %s17, 0
    %p44 = por %p42, %p43
    %s46 = sadd.s32 %s45, 1
    %p49 = scmp.eq.s32.totalorder %s11, 1
    %p50 = scmp.ne.s32.totalorder %s45, %s47
    %p51 = scmp.eq.s32.totalorder %s11, 0
    %p52 = por %p50, %p51
    %p53 = scmp.ne.s32.totalorder %s45, %s47
    %p54 = scmp.eq.s32.totalorder %s16, 1
    %p55 = por %p53, %p54
    %p56 = scmp.ne.s32.totalorder %s47, %s48
    %p57 = scmp.eq.s32.totalorder %s16, 0
    %p58 = por %p56, %p57
    %p59 = scmp.ne.s32.totalorder %s47, %s48
    %p60 = scmp.eq.s32.totalorder %s17, 1
    %p61 = por %p59, %p60
    %p63 = scmp.ne.s32.totalorder %s48, %s62
    %p64 = scmp.eq.s32.totalorder %s17, 0
    %p65 = por %p63, %p64
    %s66 = ssub.s32 %s11, %s18
    %p67 = scmp.eq.s32.totalorder %s66, 0
    %s69 = sadd.s32 %s68, 1
    %s70 = scalar_select %p67, %s68, %s69
    %p73 = pneg %p67
    %p74 = scmp.eq.s32.totalorder %s11, 1
    %p75 = por %p73, %p74
    %p76 = scmp.ne.s32.totalorder %s68, %s71
    %p77 = scmp.eq.s32.totalorder %s11, 0
    %p78 = por %p76, %p77
    %p79 = scmp.ne.s32.totalorder %s68, %s71
    %p80 = scmp.eq.s32.totalorder %s16, 1
    %p81 = por %p79, %p80
    %p82 = scmp.ne.s32.totalorder %s71, %s72
    %p83 = scmp.eq.s32.totalorder %s16, 0
    %p84 = por %p82, %p83
    %p85 = scmp.ne.s32.totalorder %s71, %s72
    %p86 = scmp.eq.s32.totalorder %s17, 1
    %p87 = por %p85, %p86
    %p89 = scmp.ne.s32.totalorder %s72, %s88
    %p90 = scmp.eq.s32.totalorder %s17, 0
    %p91 = por %p89, %p90
    %s92 = ssub.s32 %s11, %s18
    %p93 = scmp.eq.s32.totalorder %s92, 0
    %s95 = sadd.s32 %s94, 1
    %s96 = scalar_select %p93, %s94, %s95
    %p99 = pneg %p93
    %p100 = scmp.eq.s32.totalorder %s11, 1
    %p101 = por %p99, %p100
    %p102 = scmp.ne.s32.totalorder %s94, %s97
    %p103 = scmp.eq.s32.totalorder %s11, 0
    %p104 = por %p102, %p103
    %p105 = scmp.ne.s32.totalorder %s94, %s97
    %p106 = scmp.eq.s32.totalorder %s16, 1
    %p107 = por %p105, %p106
    %p108 = scmp.ne.s32.totalorder %s97, %s98
    %p109 = scmp.eq.s32.totalorder %s16, 0
    %p110 = por %p108, %p109
    %p111 = scmp.ne.s32.totalorder %s97, %s98
    %p112 = scmp.eq.s32.totalorder %s17, 1
    %p113 = por %p111, %p112
    %p115 = scmp.ne.s32.totalorder %s98, %s114
    %p116 = scmp.eq.s32.totalorder %s17, 0
    %p117 = por %p115, %p116
    %s118 = ssub.s32 %s11, %s18
    %p119 = scmp.eq.s32.totalorder %s118, 0
    %s121 = sadd.s32 %s120, 1
    %s122 = scalar_select %p119, %s120, %s121
    %p125 = pneg %p119
    %p126 = scmp.eq.s32.totalorder %s11, 1
    %p127 = por %p125, %p126
    %p128 = scmp.ne.s32.totalorder %s120, %s123
    %p129 = scmp.eq.s32.totalorder %s11, 0
    %p130 = por %p128, %p129
    %p131 = scmp.ne.s32.totalorder %s120, %s123
    %p132 = scmp.eq.s32.totalorder %s16, 1
    %p133 = por %p131, %p132
    %p134 = scmp.ne.s32.totalorder %s123, %s124
    %p135 = scmp.eq.s32.totalorder %s16, 0
    %p136 = por %p134, %p135
    %p137 = scmp.ne.s32.totalorder %s123, %s124
    %p138 = scmp.eq.s32.totalorder %s17, 1
    %p139 = por %p137, %p138
    %p141 = scmp.ne.s32.totalorder %s124, %s140
    %p142 = scmp.eq.s32.totalorder %s17, 0
    %p143 = por %p141, %p142
    %p144 = scmp.le.s32.totalorder 1, %s11
    %p145 = scmp.lt.s32.totalorder %s11, 3
    %p146 = pnand %p144, %p145
    %p147 = pneg %p146
    // Predicated region
    $region9: #{_lambda_.4} parent=5 // pred_check
      _
    $region10: #{_lambda_.4} parent=5 // pred_check_branch
      %149 = sbr.rel (%p146) target = $region12
    $region11: #{_lambda_.4} parent=5 // pred_region
      %s150 = ssub.s32 %s11, 1
      // Predicated region
      $region13: #{_lambda_.4} parent=11 // pred_check
        %p151 = pneg %p58
      $region14: #{_lambda_.4} parent=11 // pred_check_branch
        %153 = sbr.rel (%p151) target = $region16
      $region15: #{_lambda_.4} parent=11 // pred_region
        _
      $region16: #{_lambda_.4} parent=11 // pred_fallthru
        _
    $region12: #{_lambda_.4} parent=5 // pred_fallthru
      _
    %p154 = scmp.lt.s32.totalorder %s11, 2
    // Predicated region
    $region17: #{_lambda_.4} parent=5 // pred_check
      %p155 = pneg %p154
    $region18: #{_lambda_.4} parent=5 // pred_check_branch
      %157 = sbr.rel (%p155) target = $region20
    $region19: #{_lambda_.4} parent=5 // pred_region
      // Predicated region
      $region21: #{_lambda_.4} parent=19 // pred_check
        %p158 = pneg %p31
      $region22: #{_lambda_.4} parent=19 // pred_check_branch
        %160 = sbr.rel (%p158) target = $region24
      $region23: #{_lambda_.4} parent=19 // pred_region
        %p161 = scmp.lt.s32.totalorder %s11, 1
        %s162 = scalar_select %p161, %s11, 1
        %s163 = smul.addr %s162, 32
        %s164 = smul.addr %s163, 8
        %s165 = scalar_lea.vmem %s0, %s164
      $region24: #{_lambda_.4} parent=19 // pred_fallthru
        _
    $region20: #{_lambda_.4} parent=5 // pred_fallthru
      _
    %p166 = scmp.le.s32.totalorder 1, %s11
    %p167 = scmp.lt.s32.totalorder %s11, 3
    %p168 = pnand %p166, %p167
    %p169 = pneg %p168
    // Predicated region
    $region25: #{_lambda_.4} parent=5 // pred_check
      _
    $region26: #{_lambda_.4} parent=5 // pred_check_branch
      %171 = sbr.rel (%p168) target = $region28
    $region27: #{_lambda_.4} parent=5 // pred_region
      %s172 = ssub.s32 %s11, 1
      %p173 = scmp.lt.s32.totalorder %s16, 1
      %s174 = scalar_select %p173, %s16, 1
      %s175 = smul.addr %s174, 32
      %s176 = smul.addr %s175, 8
      %s177 = scalar_lea.vmem %s0, %s176
      %p178 = pneg %p37
      %p179 = pneg %p34
      %p180 = pneg %p58
      %p181 = pneg %p55
      %p182 = pneg %p84
      %p183 = pneg %p81
      %p184 = scmp.lt.s32.totalorder %s16, 1
      %s185 = scalar_select %p184, %s16, 1
      %s186 = smul.addr %s185, 32
      %s187 = smul.addr %s186, 8
      %s188 = scalar_lea.vmem %s2, %s187
      %p189 = pneg %p110
      %p190 = pneg %p107
      %p191 = scmp.lt.s32.totalorder %s16, 1
      %s192 = scalar_select %p191, %s16, 1
      %s193 = scalar_lea.vmem %s3, %s192
      %p194 = pneg %p136
      %p195 = pneg %p133
      %p196 = scmp.lt.s32.totalorder %s16, 1
      %s197 = scalar_select %p196, %s16, 1
      %s198 = scalar_lea.vmem %s4, %s197
      %p199 = scmp.lt.s32.totalorder %s16, 1
      %s200 = scalar_select %p199, %s16, 1
      %s201 = smul.addr %s200, 32
      %s202 = smul.addr %s201, 8
      %s203 = scalar_lea.vmem %s0, %s202
      %p204 = scmp.lt.s32.totalorder %s16, 1
      %s205 = scalar_select %p204, %s16, 1
      %s206 = smul.addr %s205, 32
      %s207 = smul.addr %s206, 8
      %s208 = scalar_lea.vmem %s2, %s207
      %p209 = scmp.lt.s32.totalorder %s16, 1
      %s210 = scalar_select %p209, %s16, 1
      %s211 = scalar_lea.vmem %s3, %s210
      %p212 = scmp.lt.s32.totalorder %s16, 1
      %s213 = scalar_select %p212, %s16, 1
      %s214 = scalar_lea.vmem %s4, %s213
      %v215 = vld [vmem:[%s203] sm:$0xff]
      %v216 = vld [vmem:[%s203 + $0x8] sm:$0xff]
      %v217 = vld [vmem:[%s203 + $0x10] sm:$0xff]
      %v218 = vld [vmem:[%s203 + $0x18] sm:$0xff]
      %v219 = vld [vmem:[%s203 + $0x20] sm:$0xff]
      %v220 = vld [vmem:[%s203 + $0x28] sm:$0xff]
      %v221 = vld [vmem:[%s203 + $0x30] sm:$0xff]
      %v222 = vld [vmem:[%s203 + $0x38] sm:$0xff]
      %v223 = vld [vmem:[%s203 + $0x40] sm:$0xff]
      %v224 = vld [vmem:[%s203 + $0x48] sm:$0xff]
      %v225 = vld [vmem:[%s203 + $0x50] sm:$0xff]
      %v226 = vld [vmem:[%s203 + $0x58] sm:$0xff]
      %v227 = vld [vmem:[%s203 + $0x60] sm:$0xff]
      %v228 = vld [vmem:[%s203 + $0x68] sm:$0xff]
      %v229 = vld [vmem:[%s203 + $0x70] sm:$0xff]
      %v230 = vld [vmem:[%s203 + $0x78] sm:$0xff]
      %v231 = vld [vmem:[%s203 + $0x80] sm:$0xff]
      %v232 = vld [vmem:[%s203 + $0x88] sm:$0xff]
      %v233 = vld [vmem:[%s203 + $0x90] sm:$0xff]
      %v234 = vld [vmem:[%s203 + $0x98] sm:$0xff]
      %v235 = vld [vmem:[%s203 + $0xa0] sm:$0xff]
      %v236 = vld [vmem:[%s203 + $0xa8] sm:$0xff]
      %v237 = vld [vmem:[%s203 + $0xb0] sm:$0xff]
      %v238 = vld [vmem:[%s203 + $0xb8] sm:$0xff]
      %v239 = vld [vmem:[%s203 + $0xc0] sm:$0xff]
      %v240 = vld [vmem:[%s203 + $0xc8] sm:$0xff]
      %v241 = vld [vmem:[%s203 + $0xd0] sm:$0xff]
      %v242 = vld [vmem:[%s203 + $0xd8] sm:$0xff]
      %v243 = vld [vmem:[%s203 + $0xe0] sm:$0xff]
      %v244 = vld [vmem:[%s203 + $0xe8] sm:$0xff]
      %v245 = vld [vmem:[%s203 + $0xf0] sm:$0xff]
      %v246 = vld [vmem:[%s203 + $0xf8] sm:$0xff]
      %v247 = vld [vmem:[%s1] sm:$0xff]
      %v248 = vld [vmem:[%s1 + $0x8] sm:$0xff]
      %v249 = vld [vmem:[%s1 + $0x10] sm:$0xff]
      %v250 = vld [vmem:[%s1 + $0x18] sm:$0xff]
      %v251 = vld [vmem:[%s1 + $0x20] sm:$0xff]
      %v252 = vld [vmem:[%s1 + $0x28] sm:$0xff]
      %v253 = vld [vmem:[%s1 + $0x30] sm:$0xff]
      %v254 = vld [vmem:[%s1 + $0x38] sm:$0xff]
      %v255 = vld [vmem:[%s1 + $0x40] sm:$0xff]
      %v256 = vld [vmem:[%s1 + $0x48] sm:$0xff]
      %v257 = vld [vmem:[%s1 + $0x50] sm:$0xff]
      %v258 = vld [vmem:[%s1 + $0x58] sm:$0xff]
      %v259 = vld [vmem:[%s1 + $0x60] sm:$0xff]
      %v260 = vld [vmem:[%s1 + $0x68] sm:$0xff]
      %v261 = vld [vmem:[%s1 + $0x70] sm:$0xff]
      %v262 = vld [vmem:[%s1 + $0x78] sm:$0xff]
      %263 = vmatpush.msra.mxu0 %v262
      %264 = vmatpush.msra.mxu0 %v261
      %265 = vmatpush.msra.mxu0 %v260
      %266 = vmatpush.msra.mxu0 %v259
      %267 = vmatpush.msra.mxu0 %v258
      %268 = vmatpush.msra.mxu0 %v257
      %269 = vmatpush.msra.mxu0 %v256
      %270 = vmatpush.msra.mxu0 %v255
      %271 = vmatpush.msra.mxu0 %v254
      %272 = vmatpush.msra.mxu0 %v253
      %273 = vmatpush.msra.mxu0 %v252
      %274 = vmatpush.msra.mxu0 %v251
      %275 = vmatpush.msra.mxu0 %v250
      %276 = vmatpush.msra.mxu0 %v249
      %277 = vmatpush.msra.mxu0 %v248
      %278 = vmatpush.msra.mxu0 %v247
      %279 = vmatmul.f32.gmra.mxu0 %v215
      %v280 = vpop.f32.mrf.mxu0
      %v281 = vadd.f32 0.0, %v280
      %282 = vmatmul.f32.gmra.mxu0 %v216
      %v283 = vpop.f32.mrf.mxu0
      %v284 = vadd.f32 0.0, %v283
      %285 = vmatmul.f32.gmra.mxu0 %v217
      %v286 = vpop.f32.mrf.mxu0
      %v287 = vadd.f32 0.0, %v286
      %288 = vmatmul.f32.gmra.mxu0 %v218
      %v289 = vpop.f32.mrf.mxu0
      %v290 = vadd.f32 0.0, %v289
      %291 = vmatmul.f32.gmra.mxu0 %v219
      %v292 = vpop.f32.mrf.mxu0
      %v293 = vadd.f32 0.0, %v292
      %294 = vmatmul.f32.gmra.mxu0 %v220
      %v295 = vpop.f32.mrf.mxu0
      %v296 = vadd.f32 0.0, %v295
      %297 = vmatmul.f32.gmra.mxu0 %v221
      %v298 = vpop.f32.mrf.mxu0
      %v299 = vadd.f32 0.0, %v298
      %300 = vmatmul.f32.gmra.mxu0 %v222
      %v301 = vpop.f32.mrf.mxu0
      %v302 = vadd.f32 0.0, %v301
      %303 = vmatmul.f32.gmra.mxu0 %v223
      %v304 = vpop.f32.mrf.mxu0
      %v305 = vadd.f32 0.0, %v304
      %306 = vmatmul.f32.gmra.mxu0 %v224
      %v307 = vpop.f32.mrf.mxu0
      %v308 = vadd.f32 0.0, %v307
      %309 = vmatmul.f32.gmra.mxu0 %v225
      %v310 = vpop.f32.mrf.mxu0
      %v311 = vadd.f32 0.0, %v310
      %312 = vmatmul.f32.gmra.mxu0 %v226
      %v313 = vpop.f32.mrf.mxu0
      %v314 = vadd.f32 0.0, %v313
      %315 = vmatmul.f32.gmra.mxu0 %v227
      %v316 = vpop.f32.mrf.mxu0
      %v317 = vadd.f32 0.0, %v316
      %318 = vmatmul.f32.gmra.mxu0 %v228
      %v319 = vpop.f32.mrf.mxu0
      %v320 = vadd.f32 0.0, %v319
      %321 = vmatmul.f32.gmra.mxu0 %v229
      %v322 = vpop.f32.mrf.mxu0
      %v323 = vadd.f32 0.0, %v322
      %324 = vmatmul.f32.gmra.mxu0 %v230
      %v325 = vpop.f32.mrf.mxu0
      %v326 = vadd.f32 0.0, %v325
      %327 = vmatmul.f32.gmra.mxu0 %v231
      %v328 = vpop.f32.mrf.mxu0
      %v329 = vadd.f32 0.0, %v328
      %330 = vmatmul.f32.gmra.mxu0 %v232
      %v331 = vpop.f32.mrf.mxu0
      %v332 = vadd.f32 0.0, %v331
      %333 = vmatmul.f32.gmra.mxu0 %v233
      %v334 = vpop.f32.mrf.mxu0
      %v335 = vadd.f32 0.0, %v334
      %336 = vmatmul.f32.gmra.mxu0 %v234
      %v337 = vpop.f32.mrf.mxu0
      %v338 = vadd.f32 0.0, %v337
      %339 = vmatmul.f32.gmra.mxu0 %v235
      %v340 = vpop.f32.mrf.mxu0
      %v341 = vadd.f32 0.0, %v340
      %342 = vmatmul.f32.gmra.mxu0 %v236
      %v343 = vpop.f32.mrf.mxu0
      %v344 = vadd.f32 0.0, %v343
      %345 = vmatmul.f32.gmra.mxu0 %v237
      %v346 = vpop.f32.mrf.mxu0
      %v347 = vadd.f32 0.0, %v346
      %348 = vmatmul.f32.gmra.mxu0 %v238
      %v349 = vpop.f32.mrf.mxu0
      %v350 = vadd.f32 0.0, %v349
      %351 = vmatmul.f32.gmra.mxu0 %v239
      %v352 = vpop.f32.mrf.mxu0
      %v353 = vadd.f32 0.0, %v352
      %354 = vmatmul.f32.gmra.mxu0 %v240
      %v355 = vpop.f32.mrf.mxu0
      %v356 = vadd.f32 0.0, %v355
      %357 = vmatmul.f32.gmra.mxu0 %v241
      %v358 = vpop.f32.mrf.mxu0
      %v359 = vadd.f32 0.0, %v358
      %360 = vmatmul.f32.gmra.mxu0 %v242
      %v361 = vpop.f32.mrf.mxu0
      %v362 = vadd.f32 0.0, %v361
      %363 = vmatmul.f32.gmra.mxu0 %v243
      %v364 = vpop.f32.mrf.mxu0
      %v365 = vadd.f32 0.0, %v364
      %366 = vmatmul.f32.gmra.mxu0 %v244
      %v367 = vpop.f32.mrf.mxu0
      %v368 = vadd.f32 0.0, %v367
      %369 = vmatmul.f32.gmra.mxu0 %v245
      %v370 = vpop.f32.mrf.mxu0
      %v371 = vadd.f32 0.0, %v370
      %372 = vmatmul.f32.gmra.mxu0 %v246
      %v373 = vpop.f32.mrf.mxu0
      %v374 = vadd.f32 0.0, %v373
      %375 = vdwg.mxu0
      %376 = vst [vmem:[%s208] sm:$0xff] %v281
      %377 = vst [vmem:[%s208 + $0x8] sm:$0xff] %v284
      %378 = vst [vmem:[%s208 + $0x10] sm:$0xff] %v287
      %379 = vst [vmem:[%s208 + $0x18] sm:$0xff] %v290
      %380 = vst [vmem:[%s208 + $0x20] sm:$0xff] %v293
      %381 = vst [vmem:[%s208 + $0x28] sm:$0xff] %v296
      %382 = vst [vmem:[%s208 + $0x30] sm:$0xff] %v299
      %383 = vst [vmem:[%s208 + $0x38] sm:$0xff] %v302
      %384 = vst [vmem:[%s208 + $0x40] sm:$0xff] %v305
      %385 = vst [vmem:[%s208 + $0x48] sm:$0xff] %v308
      %386 = vst [vmem:[%s208 + $0x50] sm:$0xff] %v311
      %387 = vst [vmem:[%s208 + $0x58] sm:$0xff] %v314
      %388 = vst [vmem:[%s208 + $0x60] sm:$0xff] %v317
      %389 = vst [vmem:[%s208 + $0x68] sm:$0xff] %v320
      %390 = vst [vmem:[%s208 + $0x70] sm:$0xff] %v323
      %391 = vst [vmem:[%s208 + $0x78] sm:$0xff] %v326
      %392 = vst [vmem:[%s208 + $0x80] sm:$0xff] %v329
      %393 = vst [vmem:[%s208 + $0x88] sm:$0xff] %v332
      %394 = vst [vmem:[%s208 + $0x90] sm:$0xff] %v335
      %395 = vst [vmem:[%s208 + $0x98] sm:$0xff] %v338
      %396 = vst [vmem:[%s208 + $0xa0] sm:$0xff] %v341
      %397 = vst [vmem:[%s208 + $0xa8] sm:$0xff] %v344
      %398 = vst [vmem:[%s208 + $0xb0] sm:$0xff] %v347
      %399 = vst [vmem:[%s208 + $0xb8] sm:$0xff] %v350
      %400 = vst [vmem:[%s208 + $0xc0] sm:$0xff] %v353
      %401 = vst [vmem:[%s208 + $0xc8] sm:$0xff] %v356
      %402 = vst [vmem:[%s208 + $0xd0] sm:$0xff] %v359
      %403 = vst [vmem:[%s208 + $0xd8] sm:$0xff] %v362
      %404 = vst [vmem:[%s208 + $0xe0] sm:$0xff] %v365
      %405 = vst [vmem:[%s208 + $0xe8] sm:$0xff] %v368
      %406 = vst [vmem:[%s208 + $0xf0] sm:$0xff] %v371
      %407 = vst [vmem:[%s208 + $0xf8] sm:$0xff] %v374
      %v408 = vadd.f32 %v281, %v284
      %v409 = vadd.f32 %v408, %v287
      %v410 = vadd.f32 %v409, %v290
      %v411 = vadd.f32 %v410, %v293
      %v412 = vadd.f32 %v411, %v296
      %v413 = vadd.f32 %v412, %v299
      %v414 = vadd.f32 %v413, %v302
      %v415 = vadd.f32 %v414, %v305
      %v416 = vadd.f32 %v415, %v308
      %v417 = vadd.f32 %v416, %v311
      %v418 = vadd.f32 %v417, %v314
      %v419 = vadd.f32 %v418, %v317
      %v420 = vadd.f32 %v419, %v320
      %v421 = vadd.f32 %v420, %v323
      %v422 = vadd.f32 %v421, %v326
      %v423 = vadd.f32 %v422, %v329
      %v424 = vadd.f32 %v423, %v332
      %v425 = vadd.f32 %v424, %v335
      %v426 = vadd.f32 %v425, %v338
      %v427 = vadd.f32 %v426, %v341
      %v428 = vadd.f32 %v427, %v344
      %v429 = vadd.f32 %v428, %v347
      %v430 = vadd.f32 %v429, %v350
      %v431 = vadd.f32 %v430, %v353
      %v432 = vadd.f32 %v431, %v356
      %v433 = vadd.f32 %v432, %v359
      %v434 = vadd.f32 %v433, %v362
      %v435 = vadd.f32 %v434, %v365
      %v436 = vadd.f32 %v435, %v368
      %v437 = vadd.f32 %v436, %v371
      %v438 = vadd.f32 %v437, %v374
      %v439 = vrot.slane %v438, 4
      %v440 = vadd.f32 %v438, %v439
      %v441 = vrot.slane %v440, 2
      %v442 = vadd.f32 %v440, %v441
      %v443 = vrot.slane %v442, 1
      %v444 = vadd.f32 %v442, %v443
      %445 = vst [vmem:[%s211] sm:$0x1] %v444
      %v446 = vmul.f32 %v281, %v281
      %v447 = vmul.f32 %v284, %v284
      %v448 = vmul.f32 %v287, %v287
      %v449 = vmul.f32 %v290, %v290
      %v450 = vmul.f32 %v293, %v293
      %v451 = vmul.f32 %v296, %v296
      %v452 = vmul.f32 %v299, %v299
      %v453 = vmul.f32 %v302, %v302
      %v454 = vmul.f32 %v305, %v305
      %v455 = vmul.f32 %v308, %v308
      %v456 = vmul.f32 %v311, %v311
      %v457 = vmul.f32 %v314, %v314
      %v458 = vmul.f32 %v317, %v317
      %v459 = vmul.f32 %v320, %v320
      %v460 = vmul.f32 %v323, %v323
      %v461 = vmul.f32 %v326, %v326
      %v462 = vmul.f32 %v329, %v329
      %v463 = vmul.f32 %v332, %v332
      %v464 = vmul.f32 %v335, %v335
      %v465 = vmul.f32 %v338, %v338
      %v466 = vmul.f32 %v341, %v341
      %v467 = vmul.f32 %v344, %v344
      %v468 = vmul.f32 %v347, %v347
      %v469 = vmul.f32 %v350, %v350
      %v470 = vmul.f32 %v353, %v353
      %v471 = vmul.f32 %v356, %v356
      %v472 = vmul.f32 %v359, %v359
      %v473 = vmul.f32 %v362, %v362
      %v474 = vmul.f32 %v365, %v365
      %v475 = vmul.f32 %v368, %v368
      %v476 = vmul.f32 %v371, %v371
      %v477 = vmul.f32 %v374, %v374
      %v478 = vadd.f32 %v446, %v447
      %v479 = vadd.f32 %v478, %v448
      %v480 = vadd.f32 %v479, %v449
      %v481 = vadd.f32 %v480, %v450
      %v482 = vadd.f32 %v481, %v451
      %v483 = vadd.f32 %v482, %v452
      %v484 = vadd.f32 %v483, %v453
      %v485 = vadd.f32 %v484, %v454
      %v486 = vadd.f32 %v485, %v455
      %v487 = vadd.f32 %v486, %v456
      %v488 = vadd.f32 %v487, %v457
      %v489 = vadd.f32 %v488, %v458
      %v490 = vadd.f32 %v489, %v459
      %v491 = vadd.f32 %v490, %v460
      %v492 = vadd.f32 %v491, %v461
      %v493 = vadd.f32 %v492, %v462
      %v494 = vadd.f32 %v493, %v463
      %v495 = vadd.f32 %v494, %v464
      %v496 = vadd.f32 %v495, %v465
      %v497 = vadd.f32 %v496, %v466
      %v498 = vadd.f32 %v497, %v467
      %v499 = vadd.f32 %v498, %v468
      %v500 = vadd.f32 %v499, %v469
      %v501 = vadd.f32 %v500, %v470
      %v502 = vadd.f32 %v501, %v471
      %v503 = vadd.f32 %v502, %v472
      %v504 = vadd.f32 %v503, %v473
      %v505 = vadd.f32 %v504, %v474
      %v506 = vadd.f32 %v505, %v475
      %v507 = vadd.f32 %v506, %v476
      %v508 = vadd.f32 %v507, %v477
      %v509 = vrot.slane %v508, 4
      %v510 = vadd.f32 %v508, %v509
      %v511 = vrot.slane %v510, 2
      %v512 = vadd.f32 %v510, %v511
      %v513 = vrot.slane %v512, 1
      %v514 = vadd.f32 %v512, %v513
      %515 = vst [vmem:[%s214] sm:$0x1] %v514
      %p516 = scmp.lt.s32.totalorder %s16, 1
      %s517 = scalar_select %p516, %s16, 1
      %s518 = smul.addr %s517, 32
      %s519 = smul.addr %s518, 8
      %s520 = scalar_lea.vmem %s2, %s519
      %p521 = scmp.lt.s32.totalorder %s16, 1
      %s522 = scalar_select %p521, %s16, 1
      %s523 = scalar_lea.vmem %s3, %s522
      %p524 = scmp.lt.s32.totalorder %s16, 1
      %s525 = scalar_select %p524, %s16, 1
      %s526 = scalar_lea.vmem %s4, %s525
      // Predicated region
      $region29: #{_lambda_.4} parent=27 // pred_check
        %p527 = pneg %p81
      $region30: #{_lambda_.4} parent=27 // pred_check_branch
        %529 = sbr.rel (%p527) target = $region32
      $region31: #{_lambda_.4} parent=27 // pred_region
        _
      $region32: #{_lambda_.4} parent=27 // pred_fallthru
        _
      // Predicated region
      $region33: #{_lambda_.4} parent=27 // pred_check
        %p530 = pneg %p107
      $region34: #{_lambda_.4} parent=27 // pred_check_branch
        %532 = sbr.rel (%p530) target = $region36
      $region35: #{_lambda_.4} parent=27 // pred_region
        _
      $region36: #{_lambda_.4} parent=27 // pred_fallthru
        _
      // Predicated region
      $region37: #{_lambda_.4} parent=27 // pred_check
        %p533 = pneg %p133
      $region38: #{_lambda_.4} parent=27 // pred_check_branch
        %535 = sbr.rel (%p533) target = $region40
      $region39: #{_lambda_.4} parent=27 // pred_region
        _
      $region40: #{_lambda_.4} parent=27 // pred_fallthru
        _
    $region28: #{_lambda_.4} parent=5 // pred_fallthru
      _
    %p536 = scmp.le.s32.totalorder 2, %s11
    // Predicated region
    $region41: #{_lambda_.4} parent=5 // pred_check
      %p537 = pneg %p536
    $region42: #{_lambda_.4} parent=5 // pred_check_branch
      %539 = sbr.rel (%p537) target = $region44
    $region43: #{_lambda_.4} parent=5 // pred_region
      %s540 = ssub.s32 %s11, 2
      // Predicated region
      $region45: #{_lambda_.4} parent=43 // pred_check
        %p541 = pneg %p87
      $region46: #{_lambda_.4} parent=43 // pred_check_branch
        %543 = sbr.rel (%p541) target = $region48
      $region47: #{_lambda_.4} parent=43 // pred_region
        %p544 = scmp.lt.s32.totalorder %s17, 1
        %s545 = scalar_select %p544, %s17, 1
        %s546 = smul.addr %s545, 32
        %s547 = smul.addr %s546, 8
        %s548 = scalar_lea.vmem %s2, %s547
      $region48: #{_lambda_.4} parent=43 // pred_fallthru
        _
      // Predicated region
      $region49: #{_lambda_.4} parent=43 // pred_check
        %p549 = pneg %p113
      $region50: #{_lambda_.4} parent=43 // pred_check_branch
        %551 = sbr.rel (%p549) target = $region52
      $region51: #{_lambda_.4} parent=43 // pred_region
        %p552 = scmp.lt.s32.totalorder %s17, 1
        %s553 = scalar_select %p552, %s17, 1
        %s554 = scalar_lea.vmem %s3, %s553
      $region52: #{_lambda_.4} parent=43 // pred_fallthru
        _
      // Predicated region
      $region53: #{_lambda_.4} parent=43 // pred_check
        %p555 = pneg %p139
      $region54: #{_lambda_.4} parent=43 // pred_check_branch
        %557 = sbr.rel (%p555) target = $region56
      $region55: #{_lambda_.4} parent=43 // pred_region
        %p558 = scmp.lt.s32.totalorder %s17, 1
        %s559 = scalar_select %p558, %s17, 1
        %s560 = scalar_lea.vmem %s4, %s559
      $region56: #{_lambda_.4} parent=43 // pred_fallthru
        _
    $region44: #{_lambda_.4} parent=5 // pred_fallthru
      _
  $region6: #{_lambda_.4} parent=0 // loop_footer
    %s15 = sadd.s32 1, %s11
  $region7: #{_lambda_.4} parent=0 // loop_footer_branch
    %10 = sbr.rel target = $region3
  $region8: #{_lambda_.4} parent=0 // loop_exit
    _

// kernel: _lambda_.7
$region0: #{_lambda_.7}
  #allocation0 [shape = 'u32[]', space=smem, size = 0x4, offset = 0x4, fixed_abs, tag = 'smem constant byte address 0x4 - core index']
  #allocation1 [shape = 'u32[72,128]{1,0:T(1,128)}', space=vmem, size = 0x9000, scoped, tag = 'internal scratch']
  %s0 = inlined_call_operand.vmem [shape: f32[2,16,16,128], index: 0, kind: input, shape index: {}]
  %s1 = inlined_call_operand.vmem [shape: f32[2,16,16,128], index: 1, kind: input, shape index: {}]
  %s2 = inlined_call_operand.vmem [shape: f32[1,128], index: 2, kind: input, shape index: {}]
  %s3 = inlined_call_operand.vmem [shape: f32[1,128], index: 3, kind: input, shape index: {}]
  %s4 = inlined_call_operand.vmem [shape: f32[2,16,16,128], index: 4, kind: output, shape index: {}]
  %s5 = sld [smem:[#allocation0]]
  $region49: #{_lambda_.7} parent=0
    _
  %s7 = ssub.s32 1, %s5
  %s8 = scalar_select 0, %s7, %s5
  loop: start=0, step=1, limit=4
  $region2: #{_lambda_.7} parent=0 // loop_pre_header
    _
  $region3: #{_lambda_.7} parent=0 // loop_header
    %s10 = sphi 0, %s14
    %p11 = scmp.ge.s32.totalorder %s10, 4
    %s20 = sphi 0, %s22
    %s23 = sphi 0, %s20
    %s24 = sphi 0, %s23
    %s40 = sphi 0, %s24
    %s46 = sphi 0, %s48
    %s49 = sphi 0, %s46
    %s50 = sphi 0, %s49
    %s66 = sphi 0, %s50
    %s70 = sphi 0, %s70
    %s72 = sphi 0, %s70
    %s73 = sphi 0, %s72
    %s87 = sphi 0, %s73
    %s91 = sphi 0, %s91
    %s93 = sphi 0, %s91
    %s94 = sphi 0, %s93
    %s108 = sphi 0, %s94
    %s114 = sphi 0, %s116
    %s117 = sphi 0, %s114
    %s118 = sphi 0, %s117
    %s134 = sphi 0, %s118
  $region4: #{_lambda_.7} parent=0 // loop_header_branch
    %13 = sbr.rel (%p11) target = $region8
  $region5: #{_lambda_.7} parent=0 // loop_body
    %s15 = ssub.s32 %s10, 1
    %s16 = ssub.s32 %s10, 2
    %s17 = sadd.s32 %s10, 1
    %s18 = ssub.s32 %s10, %s17
    %p19 = scmp.eq.s32.totalorder %s18, 0
    %s21 = sadd.s32 %s20, 1
    %s22 = scalar_select %p19, %s20, %s21
    %p25 = pneg %p19
    %p26 = scmp.eq.s32.totalorder %s10, 1
    %p27 = por %p25, %p26
    %p28 = scmp.ne.s32.totalorder %s20, %s23
    %p29 = scmp.eq.s32.totalorder %s10, 0
    %p30 = por %p28, %p29
    %p31 = scmp.ne.s32.totalorder %s20, %s23
    %p32 = scmp.eq.s32.totalorder %s15, 1
    %p33 = por %p31, %p32
    %p34 = scmp.ne.s32.totalorder %s23, %s24
    %p35 = scmp.eq.s32.totalorder %s15, 0
    %p36 = por %p34, %p35
    %p37 = scmp.ne.s32.totalorder %s23, %s24
    %p38 = scmp.eq.s32.totalorder %s16, 1
    %p39 = por %p37, %p38
    %p41 = scmp.ne.s32.totalorder %s24, %s40
    %p42 = scmp.eq.s32.totalorder %s16, 0
    %p43 = por %p41, %p42
    %s44 = ssub.s32 %s10, %s17
    %p45 = scmp.eq.s32.totalorder %s44, 0
    %s47 = sadd.s32 %s46, 1
    %s48 = scalar_select %p45, %s46, %s47
    %p51 = pneg %p45
    %p52 = scmp.eq.s32.totalorder %s10, 1
    %p53 = por %p51, %p52
    %p54 = scmp.ne.s32.totalorder %s46, %s49
    %p55 = scmp.eq.s32.totalorder %s10, 0
    %p56 = por %p54, %p55
    %p57 = scmp.ne.s32.totalorder %s46, %s49
    %p58 = scmp.eq.s32.totalorder %s15, 1
    %p59 = por %p57, %p58
    %p60 = scmp.ne.s32.totalorder %s49, %s50
    %p61 = scmp.eq.s32.totalorder %s15, 0
    %p62 = por %p60, %p61
    %p63 = scmp.ne.s32.totalorder %s49, %s50
    %p64 = scmp.eq.s32.totalorder %s16, 1
    %p65 = por %p63, %p64
    %p67 = scmp.ne.s32.totalorder %s50, %s66
    %p68 = scmp.eq.s32.totalorder %s16, 0
    %p69 = por %p67, %p68
    %s71 = sadd.s32 %s70, 1
    %p74 = scmp.eq.s32.totalorder %s10, 1
    %p75 = scmp.ne.s32.totalorder %s70, %s72
    %p76 = scmp.eq.s32.totalorder %s10, 0
    %p77 = por %p75, %p76
    %p78 = scmp.ne.s32.totalorder %s70, %s72
    %p79 = scmp.eq.s32.totalorder %s15, 1
    %p80 = por %p78, %p79
    %p81 = scmp.ne.s32.totalorder %s72, %s73
    %p82 = scmp.eq.s32.totalorder %s15, 0
    %p83 = por %p81, %p82
    %p84 = scmp.ne.s32.totalorder %s72, %s73
    %p85 = scmp.eq.s32.totalorder %s16, 1
    %p86 = por %p84, %p85
    %p88 = scmp.ne.s32.totalorder %s73, %s87
    %p89 = scmp.eq.s32.totalorder %s16, 0
    %p90 = por %p88, %p89
    %s92 = sadd.s32 %s91, 1
    %p95 = scmp.eq.s32.totalorder %s10, 1
    %p96 = scmp.ne.s32.totalorder %s91, %s93
    %p97 = scmp.eq.s32.totalorder %s10, 0
    %p98 = por %p96, %p97
    %p99 = scmp.ne.s32.totalorder %s91, %s93
    %p100 = scmp.eq.s32.totalorder %s15, 1
    %p101 = por %p99, %p100
    %p102 = scmp.ne.s32.totalorder %s93, %s94
    %p103 = scmp.eq.s32.totalorder %s15, 0
    %p104 = por %p102, %p103
    %p105 = scmp.ne.s32.totalorder %s93, %s94
    %p106 = scmp.eq.s32.totalorder %s16, 1
    %p107 = por %p105, %p106
    %p109 = scmp.ne.s32.totalorder %s94, %s108
    %p110 = scmp.eq.s32.totalorder %s16, 0
    %p111 = por %p109, %p110
    %s112 = ssub.s32 %s10, %s17
    %p113 = scmp.eq.s32.totalorder %s112, 0
    %s115 = sadd.s32 %s114, 1
    %s116 = scalar_select %p113, %s114, %s115
    %p119 = pneg %p113
    %p120 = scmp.eq.s32.totalorder %s10, 1
    %p121 = por %p119, %p120
    %p122 = scmp.ne.s32.totalorder %s114, %s117
    %p123 = scmp.eq.s32.totalorder %s10, 0
    %p124 = por %p122, %p123
    %p125 = scmp.ne.s32.totalorder %s114, %s117
    %p126 = scmp.eq.s32.totalorder %s15, 1
    %p127 = por %p125, %p126
    %p128 = scmp.ne.s32.totalorder %s117, %s118
    %p129 = scmp.eq.s32.totalorder %s15, 0
    %p130 = por %p128, %p129
    %p131 = scmp.ne.s32.totalorder %s117, %s118
    %p132 = scmp.eq.s32.totalorder %s16, 1
    %p133 = por %p131, %p132
    %p135 = scmp.ne.s32.totalorder %s118, %s134
    %p136 = scmp.eq.s32.totalorder %s16, 0
    %p137 = por %p135, %p136
    %p138 = scmp.le.s32.totalorder 1, %s10
    %p139 = scmp.lt.s32.totalorder %s10, 3
    %p140 = pnand %p138, %p139
    %p141 = pneg %p140
    // Predicated region
    $region9: #{_lambda_.7} parent=5 // pred_check
      _
    $region10: #{_lambda_.7} parent=5 // pred_check_branch
      %143 = sbr.rel (%p140) target = $region12
    $region11: #{_lambda_.7} parent=5 // pred_region
      %s144 = ssub.s32 %s10, 1
      // Predicated region
      $region13: #{_lambda_.7} parent=11 // pred_check
        %p145 = pneg %p83
      $region14: #{_lambda_.7} parent=11 // pred_check_branch
        %147 = sbr.rel (%p145) target = $region16
      $region15: #{_lambda_.7} parent=11 // pred_region
        _
      $region16: #{_lambda_.7} parent=11 // pred_fallthru
        _
      // Predicated region
      $region17: #{_lambda_.7} parent=11 // pred_check
        %p148 = pneg %p104
      $region18: #{_lambda_.7} parent=11 // pred_check_branch
        %150 = sbr.rel (%p148) target = $region20
      $region19: #{_lambda_.7} parent=11 // pred_region
        _
      $region20: #{_lambda_.7} parent=11 // pred_fallthru
        _
    $region12: #{_lambda_.7} parent=5 // pred_fallthru
      _
    %p151 = scmp.lt.s32.totalorder %s10, 2
    // Predicated region
    $region21: #{_lambda_.7} parent=5 // pred_check
      %p152 = pneg %p151
    $region22: #{_lambda_.7} parent=5 // pred_check_branch
      %154 = sbr.rel (%p152) target = $region24
    $region23: #{_lambda_.7} parent=5 // pred_region
      // Predicated region
      $region25: #{_lambda_.7} parent=23 // pred_check
        %p155 = pneg %p30
      $region26: #{_lambda_.7} parent=23 // pred_check_branch
        %157 = sbr.rel (%p155) target = $region28
      $region27: #{_lambda_.7} parent=23 // pred_region
        %p158 = scmp.lt.s32.totalorder %s10, 1
        %s159 = scalar_select %p158, %s10, 1
        %s160 = smul.addr %s159, 32
        %s161 = smul.addr %s160, 8
        %s162 = scalar_lea.vmem %s0, %s161
      $region28: #{_lambda_.7} parent=23 // pred_fallthru
        _
      // Predicated region
      $region29: #{_lambda_.7} parent=23 // pred_check
        %p163 = pneg %p56
      $region30: #{_lambda_.7} parent=23 // pred_check_branch
        %165 = sbr.rel (%p163) target = $region32
      $region31: #{_lambda_.7} parent=23 // pred_region
        %p166 = scmp.lt.s32.totalorder %s10, 1
        %s167 = scalar_select %p166, %s10, 1
        %s168 = smul.addr %s167, 32
        %s169 = smul.addr %s168, 8
        %s170 = scalar_lea.vmem %s1, %s169
      $region32: #{_lambda_.7} parent=23 // pred_fallthru
        _
    $region24: #{_lambda_.7} parent=5 // pred_fallthru
      _
    %p171 = scmp.le.s32.totalorder 1, %s10
    %p172 = scmp.lt.s32.totalorder %s10, 3
    %p173 = pnand %p171, %p172
    %p174 = pneg %p173
    // Predicated region
    $region33: #{_lambda_.7} parent=5 // pred_check
      _
    $region34: #{_lambda_.7} parent=5 // pred_check_branch
      %176 = sbr.rel (%p173) target = $region36
    $region35: #{_lambda_.7} parent=5 // pred_region
      %s177 = ssub.s32 %s10, 1
      %p178 = scmp.lt.s32.totalorder %s15, 1
      %s179 = scalar_select %p178, %s15, 1
      %s180 = smul.addr %s179, 32
      %s181 = smul.addr %s180, 8
      %s182 = scalar_lea.vmem %s0, %s181
      %p183 = pneg %p36
      %p184 = pneg %p33
      %p185 = scmp.lt.s32.totalorder %s15, 1
      %s186 = scalar_select %p185, %s15, 1
      %s187 = smul.addr %s186, 32
      %s188 = smul.addr %s187, 8
      %s189 = scalar_lea.vmem %s1, %s188
      %p190 = pneg %p62
      %p191 = pneg %p59
      %p192 = pneg %p83
      %p193 = pneg %p80
      %p194 = pneg %p104
      %p195 = pneg %p101
      %p196 = pneg %p130
      %p197 = pneg %p127
      %p198 = scmp.lt.s32.totalorder %s15, 1
      %s199 = scalar_select %p198, %s15, 1
      %s200 = smul.addr %s199, 32
      %s201 = smul.addr %s200, 8
      %s202 = scalar_lea.vmem %s4, %s201
      %p203 = scmp.lt.s32.totalorder %s15, 1
      %s204 = scalar_select %p203, %s15, 1
      %s205 = smul.addr %s204, 32
      %s206 = smul.addr %s205, 8
      %s207 = scalar_lea.vmem %s0, %s206
      %p208 = scmp.lt.s32.totalorder %s15, 1
      %s209 = scalar_select %p208, %s15, 1
      %s210 = smul.addr %s209, 32
      %s211 = smul.addr %s210, 8
      %s212 = scalar_lea.vmem %s1, %s211
      %p213 = scmp.lt.s32.totalorder %s15, 1
      %s214 = scalar_select %p213, %s15, 1
      %s215 = smul.addr %s214, 32
      %s216 = smul.addr %s215, 8
      %s217 = scalar_lea.vmem %s4, %s216
      %v218 = vld [vmem:[%s207] sm:$0xff]
      %v219 = vld [vmem:[%s207 + $0x8] sm:$0xff]
      %v220 = vld [vmem:[%s207 + $0x10] sm:$0xff]
      %v221 = vld [vmem:[%s207 + $0x18] sm:$0xff]
      %v222 = vld [vmem:[%s207 + $0x20] sm:$0xff]
      %v223 = vld [vmem:[%s207 + $0x28] sm:$0xff]
      %v224 = vld [vmem:[%s207 + $0x30] sm:$0xff]
      %v225 = vld [vmem:[%s207 + $0x38] sm:$0xff]
      %v226 = vld [vmem:[%s207 + $0x40] sm:$0xff]
      %v227 = vld [vmem:[%s207 + $0x48] sm:$0xff]
      %v228 = vld [vmem:[%s207 + $0x50] sm:$0xff]
      %v229 = vld [vmem:[%s207 + $0x58] sm:$0xff]
      %v230 = vld [vmem:[%s207 + $0x60] sm:$0xff]
      %v231 = vld [vmem:[%s207 + $0x68] sm:$0xff]
      %v232 = vld [vmem:[%s207 + $0x70] sm:$0xff]
      %v233 = vld [vmem:[%s207 + $0x78] sm:$0xff]
      %v234 = vld [vmem:[%s207 + $0x80] sm:$0xff]
      %v235 = vld [vmem:[%s207 + $0x88] sm:$0xff]
      %v236 = vld [vmem:[%s207 + $0x90] sm:$0xff]
      %v237 = vld [vmem:[%s207 + $0x98] sm:$0xff]
      %v238 = vld [vmem:[%s207 + $0xa0] sm:$0xff]
      %v239 = vld [vmem:[%s207 + $0xa8] sm:$0xff]
      %v240 = vld [vmem:[%s207 + $0xb0] sm:$0xff]
      %v241 = vld [vmem:[%s207 + $0xb8] sm:$0xff]
      %v242 = vld [vmem:[%s207 + $0xc0] sm:$0xff]
      %v243 = vld [vmem:[%s207 + $0xc8] sm:$0xff]
      %v244 = vld [vmem:[%s207 + $0xd0] sm:$0xff]
      %v245 = vld [vmem:[%s207 + $0xd8] sm:$0xff]
      %v246 = vld [vmem:[%s207 + $0xe0] sm:$0xff]
      %v247 = vld [vmem:[%s207 + $0xe8] sm:$0xff]
      %v248 = vld [vmem:[%s207 + $0xf0] sm:$0xff]
      %v249 = vld [vmem:[%s207 + $0xf8] sm:$0xff]
      %v250 = vld [vmem:[%s2] sm:$0x1]
      %v252 = vperm.slane %v250, 0
      %v254 = vmul.f32 %v218, %v252
      %v255 = vmul.f32 %v219, %v252
      %v256 = vmul.f32 %v220, %v252
      %v257 = vmul.f32 %v221, %v252
      %v258 = vmul.f32 %v222, %v252
      %v259 = vmul.f32 %v223, %v252
      %v260 = vmul.f32 %v224, %v252
      %v261 = vmul.f32 %v225, %v252
      %v262 = vmul.f32 %v226, %v252
      %v263 = vmul.f32 %v227, %v252
      %v264 = vmul.f32 %v228, %v252
      %v265 = vmul.f32 %v229, %v252
      %v266 = vmul.f32 %v230, %v252
      %v267 = vmul.f32 %v231, %v252
      %v268 = vmul.f32 %v232, %v252
      %v269 = vmul.f32 %v233, %v252
      %v270 = vmul.f32 %v234, %v252
      %v271 = vmul.f32 %v235, %v252
      %v272 = vmul.f32 %v236, %v252
      %v273 = vmul.f32 %v237, %v252
      %v274 = vmul.f32 %v238, %v252
      %v275 = vmul.f32 %v239, %v252
      %v276 = vmul.f32 %v240, %v252
      %v277 = vmul.f32 %v241, %v252
      %v278 = vmul.f32 %v242, %v252
      %v279 = vmul.f32 %v243, %v252
      %v280 = vmul.f32 %v244, %v252
      %v281 = vmul.f32 %v245, %v252
      %v282 = vmul.f32 %v246, %v252
      %v283 = vmul.f32 %v247, %v252
      %v284 = vmul.f32 %v248, %v252
      %v285 = vmul.f32 %v249, %v252
      %v286 = vld [vmem:[%s3] sm:$0x1]
      %v288 = vperm.slane %v286, 0
      %v290 = vadd.f32 %v254, %v288
      %v291 = vadd.f32 %v255, %v288
      %v292 = vadd.f32 %v256, %v288
      %v293 = vadd.f32 %v257, %v288
      %v294 = vadd.f32 %v258, %v288
      %v295 = vadd.f32 %v259, %v288
      %v296 = vadd.f32 %v260, %v288
      %v297 = vadd.f32 %v261, %v288
      %v298 = vadd.f32 %v262, %v288
      %v299 = vadd.f32 %v263, %v288
      %v300 = vadd.f32 %v264, %v288
      %v301 = vadd.f32 %v265, %v288
      %v302 = vadd.f32 %v266, %v288
      %v303 = vadd.f32 %v267, %v288
      %v304 = vadd.f32 %v268, %v288
      %v305 = vadd.f32 %v269, %v288
      %v306 = vadd.f32 %v270, %v288
      %v307 = vadd.f32 %v271, %v288
      %v308 = vadd.f32 %v272, %v288
      %v309 = vadd.f32 %v273, %v288
      %v310 = vadd.f32 %v274, %v288
      %v311 = vadd.f32 %v275, %v288
      %v312 = vadd.f32 %v276, %v288
      %v313 = vadd.f32 %v277, %v288
      %v314 = vadd.f32 %v278, %v288
      %v315 = vadd.f32 %v279, %v288
      %v316 = vadd.f32 %v280, %v288
      %v317 = vadd.f32 %v281, %v288
      %v318 = vadd.f32 %v282, %v288
      %v319 = vadd.f32 %v283, %v288
      %v320 = vadd.f32 %v284, %v288
      %v321 = vadd.f32 %v285, %v288
      %v322 = vld [vmem:[%s212] sm:$0xff]
      %v323 = vld [vmem:[%s212 + $0x8] sm:$0xff]
      %v324 = vld [vmem:[%s212 + $0x10] sm:$0xff]
      %v325 = vld [vmem:[%s212 + $0x18] sm:$0xff]
      %v326 = vld [vmem:[%s212 + $0x20] sm:$0xff]
      %v327 = vld [vmem:[%s212 + $0x28] sm:$0xff]
      %v328 = vld [vmem:[%s212 + $0x30] sm:$0xff]
      %v329 = vld [vmem:[%s212 + $0x38] sm:$0xff]
      %v330 = vld [vmem:[%s212 + $0x40] sm:$0xff]
      %v331 = vld [vmem:[%s212 + $0x48] sm:$0xff]
      %v332 = vld [vmem:[%s212 + $0x50] sm:$0xff]
      %v333 = vld [vmem:[%s212 + $0x58] sm:$0xff]
      %v334 = vld [vmem:[%s212 + $0x60] sm:$0xff]
      %v335 = vld [vmem:[%s212 + $0x68] sm:$0xff]
      %v336 = vld [vmem:[%s212 + $0x70] sm:$0xff]
      %v337 = vld [vmem:[%s212 + $0x78] sm:$0xff]
      %v338 = vld [vmem:[%s212 + $0x80] sm:$0xff]
      %v339 = vld [vmem:[%s212 + $0x88] sm:$0xff]
      %v340 = vld [vmem:[%s212 + $0x90] sm:$0xff]
      %v341 = vld [vmem:[%s212 + $0x98] sm:$0xff]
      %v342 = vld [vmem:[%s212 + $0xa0] sm:$0xff]
      %v343 = vld [vmem:[%s212 + $0xa8] sm:$0xff]
      %v344 = vld [vmem:[%s212 + $0xb0] sm:$0xff]
      %v345 = vld [vmem:[%s212 + $0xb8] sm:$0xff]
      %v346 = vld [vmem:[%s212 + $0xc0] sm:$0xff]
      %v347 = vld [vmem:[%s212 + $0xc8] sm:$0xff]
      %v348 = vld [vmem:[%s212 + $0xd0] sm:$0xff]
      %v349 = vld [vmem:[%s212 + $0xd8] sm:$0xff]
      %v350 = vld [vmem:[%s212 + $0xe0] sm:$0xff]
      %v351 = vld [vmem:[%s212 + $0xe8] sm:$0xff]
      %v352 = vld [vmem:[%s212 + $0xf0] sm:$0xff]
      %v353 = vld [vmem:[%s212 + $0xf8] sm:$0xff]
      %v354 = vadd.f32 %v290, %v322
      %v355 = vadd.f32 %v291, %v323
      %v356 = vadd.f32 %v292, %v324
      %v357 = vadd.f32 %v293, %v325
      %v358 = vadd.f32 %v294, %v326
      %v359 = vadd.f32 %v295, %v327
      %v360 = vadd.f32 %v296, %v328
      %v361 = vadd.f32 %v297, %v329
      %v362 = vadd.f32 %v298, %v330
      %v363 = vadd.f32 %v299, %v331
      %v364 = vadd.f32 %v300, %v332
      %v365 = vadd.f32 %v301, %v333
      %v366 = vadd.f32 %v302, %v334
      %v367 = vadd.f32 %v303, %v335
      %v368 = vadd.f32 %v304, %v336
      %v369 = vadd.f32 %v305, %v337
      %v370 = vadd.f32 %v306, %v338
      %v371 = vadd.f32 %v307, %v339
      %v372 = vadd.f32 %v308, %v340
      %v373 = vadd.f32 %v309, %v341
      %v374 = vadd.f32 %v310, %v342
      %v375 = vadd.f32 %v311, %v343
      %v376 = vadd.f32 %v312, %v344
      %v377 = vadd.f32 %v313, %v345
      %v378 = vadd.f32 %v314, %v346
      %v379 = vadd.f32 %v315, %v347
      %v380 = vadd.f32 %v316, %v348
      %v381 = vadd.f32 %v317, %v349
      %v382 = vadd.f32 %v318, %v350
      %v383 = vadd.f32 %v319, %v351
      %v384 = vadd.f32 %v320, %v352
      %v385 = vadd.f32 %v321, %v353
      %v386 = vmax.f32 %v354, 0.0
      %v387 = vmax.f32 %v355, 0.0
      %v388 = vmax.f32 %v356, 0.0
      %v389 = vmax.f32 %v357, 0.0
      %v390 = vmax.f32 %v358, 0.0
      %v391 = vmax.f32 %v359, 0.0
      %v392 = vmax.f32 %v360, 0.0
      %v393 = vmax.f32 %v361, 0.0
      %v394 = vmax.f32 %v362, 0.0
      %v395 = vmax.f32 %v363, 0.0
      %v396 = vmax.f32 %v364, 0.0
      %v397 = vmax.f32 %v365, 0.0
      %v398 = vmax.f32 %v366, 0.0
      %v399 = vmax.f32 %v367, 0.0
      %v400 = vmax.f32 %v368, 0.0
      %v401 = vmax.f32 %v369, 0.0
      %v402 = vmax.f32 %v370, 0.0
      %v403 = vmax.f32 %v371, 0.0
      %v404 = vmax.f32 %v372, 0.0
      %v405 = vmax.f32 %v373, 0.0
      %v406 = vmax.f32 %v374, 0.0
      %v407 = vmax.f32 %v375, 0.0
      %v408 = vmax.f32 %v376, 0.0
      %v409 = vmax.f32 %v377, 0.0
      %v410 = vmax.f32 %v378, 0.0
      %v411 = vmax.f32 %v379, 0.0
      %v412 = vmax.f32 %v380, 0.0
      %v413 = vmax.f32 %v381, 0.0
      %v414 = vmax.f32 %v382, 0.0
      %v415 = vmax.f32 %v383, 0.0
      %v416 = vmax.f32 %v384, 0.0
      %v417 = vmax.f32 %v385, 0.0
      %418 = vst [vmem:[%s217] sm:$0xff] %v386
      %419 = vst [vmem:[%s217 + $0x8] sm:$0xff] %v387
      %420 = vst [vmem:[%s217 + $0x10] sm:$0xff] %v388
      %421 = vst [vmem:[%s217 + $0x18] sm:$0xff] %v389
      %422 = vst [vmem:[%s217 + $0x20] sm:$0xff] %v390
      %423 = vst [vmem:[%s217 + $0x28] sm:$0xff] %v391
      %424 = vst [vmem:[%s217 + $0x30] sm:$0xff] %v392
      %425 = vst [vmem:[%s217 + $0x38] sm:$0xff] %v393
      %426 = vst [vmem:[%s217 + $0x40] sm:$0xff] %v394
      %427 = vst [vmem:[%s217 + $0x48] sm:$0xff] %v395
      %428 = vst [vmem:[%s217 + $0x50] sm:$0xff] %v396
      %429 = vst [vmem:[%s217 + $0x58] sm:$0xff] %v397
      %430 = vst [vmem:[%s217 + $0x60] sm:$0xff] %v398
      %431 = vst [vmem:[%s217 + $0x68] sm:$0xff] %v399
      %432 = vst [vmem:[%s217 + $0x70] sm:$0xff] %v400
      %433 = vst [vmem:[%s217 + $0x78] sm:$0xff] %v401
      %434 = vst [vmem:[%s217 + $0x80] sm:$0xff] %v402
      %435 = vst [vmem:[%s217 + $0x88] sm:$0xff] %v403
      %436 = vst [vmem:[%s217 + $0x90] sm:$0xff] %v404
      %437 = vst [vmem:[%s217 + $0x98] sm:$0xff] %v405
      %438 = vst [vmem:[%s217 + $0xa0] sm:$0xff] %v406
      %439 = vst [vmem:[%s217 + $0xa8] sm:$0xff] %v407
      %440 = vst [vmem:[%s217 + $0xb0] sm:$0xff] %v408
      %441 = vst [vmem:[%s217 + $0xb8] sm:$0xff] %v409
      %442 = vst [vmem:[%s217 + $0xc0] sm:$0xff] %v410
      %443 = vst [vmem:[%s217 + $0xc8] sm:$0xff] %v411
      %444 = vst [vmem:[%s217 + $0xd0] sm:$0xff] %v412
      %445 = vst [vmem:[%s217 + $0xd8] sm:$0xff] %v413
      %446 = vst [vmem:[%s217 + $0xe0] sm:$0xff] %v414
      %447 = vst [vmem:[%s217 + $0xe8] sm:$0xff] %v415
      %448 = vst [vmem:[%s217 + $0xf0] sm:$0xff] %v416
      %449 = vst [vmem:[%s217 + $0xf8] sm:$0xff] %v417
      %p450 = scmp.lt.s32.totalorder %s15, 1
      %s451 = scalar_select %p450, %s15, 1
      %s452 = smul.addr %s451, 32
      %s453 = smul.addr %s452, 8
      %s454 = scalar_lea.vmem %s4, %s453
      // Predicated region
      $region37: #{_lambda_.7} parent=35 // pred_check
        %p455 = pneg %p127
      $region38: #{_lambda_.7} parent=35 // pred_check_branch
        %457 = sbr.rel (%p455) target = $region40
      $region39: #{_lambda_.7} parent=35 // pred_region
        _
      $region40: #{_lambda_.7} parent=35 // pred_fallthru
        _
    $region36: #{_lambda_.7} parent=5 // pred_fallthru
      _
    %p458 = scmp.le.s32.totalorder 2, %s10
    // Predicated region
    $region41: #{_lambda_.7} parent=5 // pred_check
      %p459 = pneg %p458
    $region42: #{_lambda_.7} parent=5 // pred_check_branch
      %461 = sbr.rel (%p459) target = $region44
    $region43: #{_lambda_.7} parent=5 // pred_region
      %s462 = ssub.s32 %s10, 2
      // Predicated region
      $region45: #{_lambda_.7} parent=43 // pred_check
        %p463 = pneg %p133
      $region46: #{_lambda_.7} parent=43 // pred_check_branch
        %465 = sbr.rel (%p463) target = $region48
      $region47: #{_lambda_.7} parent=43 // pred_region
        %p466 = scmp.lt.s32.totalorder %s16, 1
        %s467 = scalar_select %p466, %s16, 1
        %s468 = smul.addr %s467, 32
        %s469 = smul.addr %s468, 8
        %s470 = scalar_lea.vmem %s4, %s469
      $region48: #{_lambda_.7} parent=43 // pred_fallthru
        _
    $region44: #{_lambda_.7} parent=5 // pred_fallthru
      _
  $region6: #{_lambda_.7} parent=0 // loop_footer
    %s14 = sadd.s32 1, %s10
  $region7: #{_lambda_.7} parent=0 // loop_footer_branch
    %9 = sbr.rel target = $region3
  $region8: #{_lambda_.7} parent=0 // loop_exit
    _

// kernel: _lambda_.5
$region0: #{_lambda_.5}
  #allocation0 [shape = 'u32[]', space=smem, size = 0x4, offset = 0x4, fixed_abs, tag = 'smem constant byte address 0x4 - core index']
  #allocation1 [shape = 'u32[72,128]{1,0:T(1,128)}', space=vmem, size = 0x9000, scoped, tag = 'internal scratch']
  %s0 = inlined_call_operand.vmem [shape: f32[2,16,16,128], index: 0, kind: input, shape index: {}]
  %s1 = inlined_call_operand.vmem [shape: f32[1,128], index: 1, kind: input, shape index: {}]
  %s2 = inlined_call_operand.vmem [shape: f32[1,128], index: 2, kind: input, shape index: {}]
  %s3 = inlined_call_operand.vmem [shape: f32[1152,128], index: 3, kind: input, shape index: {}]
  %s4 = inlined_call_operand.vmem [shape: f32[2,16,16,128], index: 4, kind: output, shape index: {0}]
  %s5 = inlined_call_operand.vmem [shape: f32[2,1,128], index: 5, kind: output, shape index: {1}]
  %s6 = inlined_call_operand.vmem [shape: f32[2,1,128], index: 6, kind: output, shape index: {2}]
  %7 = xla_tuple %s4, %s5, %s6
  %s8 = sld [smem:[#allocation0]]
  $region65: #{_lambda_.5} parent=0
    _
  %s10 = ssub.s32 1, %s8
  %s11 = scalar_select 0, %s10, %s8
  loop: start=0, step=1, limit=4
  $region2: #{_lambda_.5} parent=0 // loop_pre_header
    _
  $region3: #{_lambda_.5} parent=0 // loop_header
    %s13 = sphi 0, %s17
    %p14 = scmp.ge.s32.totalorder %s13, 4
    %s23 = sphi 0, %s25
    %s26 = sphi 0, %s23
    %s27 = sphi 0, %s26
    %s43 = sphi 0, %s27
    %s47 = sphi 0, %s47
    %s49 = sphi 0, %s47
    %s50 = sphi 0, %s49
    %s64 = sphi 0, %s50
    %s68 = sphi 0, %s68
    %s70 = sphi 0, %s68
    %s71 = sphi 0, %s70
    %s85 = sphi 0, %s71
    %s89 = sphi 0, %s89
    %s91 = sphi 0, %s89
    %s92 = sphi 0, %s91
    %s106 = sphi 0, %s92
    %s112 = sphi 0, %s114
    %s115 = sphi 0, %s112
    %s116 = sphi 0, %s115
    %s132 = sphi 0, %s116
    %s138 = sphi 0, %s140
    %s141 = sphi 0, %s138
    %s142 = sphi 0, %s141
    %s158 = sphi 0, %s142
    %s164 = sphi 0, %s166
    %s167 = sphi 0, %s164
    %s168 = sphi 0, %s167
    %s184 = sphi 0, %s168
  $region4: #{_lambda_.5} parent=0 // loop_header_branch
    %16 = sbr.rel (%p14) target = $region8
  $region5: #{_lambda_.5} parent=0 // loop_body
    %s18 = ssub.s32 %s13, 1
    %s19 = ssub.s32 %s13, 2
    %s20 = sadd.s32 %s13, 1
    %s21 = ssub.s32 %s13, %s20
    %p22 = scmp.eq.s32.totalorder %s21, 0
    %s24 = sadd.s32 %s23, 1
    %s25 = scalar_select %p22, %s23, %s24
    %p28 = pneg %p22
    %p29 = scmp.eq.s32.totalorder %s13, 1
    %p30 = por %p28, %p29
    %p31 = scmp.ne.s32.totalorder %s23, %s26
    %p32 = scmp.eq.s32.totalorder %s13, 0
    %p33 = por %p31, %p32
    %p34 = scmp.ne.s32.totalorder %s23, %s26
    %p35 = scmp.eq.s32.totalorder %s18, 1
    %p36 = por %p34, %p35
    %p37 = scmp.ne.s32.totalorder %s26, %s27
    %p38 = scmp.eq.s32.totalorder %s18, 0
    %p39 = por %p37, %p38
    %p40 = scmp.ne.s32.totalorder %s26, %s27
    %p41 = scmp.eq.s32.totalorder %s19, 1
    %p42 = por %p40, %p41
    %p44 = scmp.ne.s32.totalorder %s27, %s43
    %p45 = scmp.eq.s32.totalorder %s19, 0
    %p46 = por %p44, %p45
    %s48 = sadd.s32 %s47, 1
    %p51 = scmp.eq.s32.totalorder %s13, 1
    %p52 = scmp.ne.s32.totalorder %s47, %s49
    %p53 = scmp.eq.s32.totalorder %s13, 0
    %p54 = por %p52, %p53
    %p55 = scmp.ne.s32.totalorder %s47, %s49
    %p56 = scmp.eq.s32.totalorder %s18, 1
    %p57 = por %p55, %p56
    %p58 = scmp.ne.s32.totalorder %s49, %s50
    %p59 = scmp.eq.s32.totalorder %s18, 0
    %p60 = por %p58, %p59
    %p61 = scmp.ne.s32.totalorder %s49, %s50
    %p62 = scmp.eq.s32.totalorder %s19, 1
    %p63 = por %p61, %p62
    %p65 = scmp.ne.s32.totalorder %s50, %s64
    %p66 = scmp.eq.s32.totalorder %s19, 0
    %p67 = por %p65, %p66
    %s69 = sadd.s32 %s68, 1
    %p72 = scmp.eq.s32.totalorder %s13, 1
    %p73 = scmp.ne.s32.totalorder %s68, %s70
    %p74 = scmp.eq.s32.totalorder %s13, 0
    %p75 = por %p73, %p74
    %p76 = scmp.ne.s32.totalorder %s68, %s70
    %p77 = scmp.eq.s32.totalorder %s18, 1
    %p78 = por %p76, %p77
    %p79 = scmp.ne.s32.totalorder %s70, %s71
    %p80 = scmp.eq.s32.totalorder %s18, 0
    %p81 = por %p79, %p80
    %p82 = scmp.ne.s32.totalorder %s70, %s71
    %p83 = scmp.eq.s32.totalorder %s19, 1
    %p84 = por %p82, %p83
    %p86 = scmp.ne.s32.totalorder %s71, %s85
    %p87 = scmp.eq.s32.totalorder %s19, 0
    %p88 = por %p86, %p87
    %s90 = sadd.s32 %s89, 1
    %p93 = scmp.eq.s32.totalorder %s13, 1
    %p94 = scmp.ne.s32.totalorder %s89, %s91
    %p95 = scmp.eq.s32.totalorder %s13, 0
    %p96 = por %p94, %p95
    %p97 = scmp.ne.s32.totalorder %s89, %s91
    %p98 = scmp.eq.s32.totalorder %s18, 1
    %p99 = por %p97, %p98
    %p100 = scmp.ne.s32.totalorder %s91, %s92
    %p101 = scmp.eq.s32.totalorder %s18, 0
    %p102 = por %p100, %p101
    %p103 = scmp.ne.s32.totalorder %s91, %s92
    %p104 = scmp.eq.s32.totalorder %s19, 1
    %p105 = por %p103, %p104
    %p107 = scmp.ne.s32.totalorder %s92, %s106
    %p108 = scmp.eq.s32.totalorder %s19, 0
    %p109 = por %p107, %p108
    %s110 = ssub.s32 %s13, %s20
    %p111 = scmp.eq.s32.totalorder %s110, 0
    %s113 = sadd.s32 %s112, 1
    %s114 = scalar_select %p111, %s112, %s113
    %p117 = pneg %p111
    %p118 = scmp.eq.s32.totalorder %s13, 1
    %p119 = por %p117, %p118
    %p120 = scmp.ne.s32.totalorder %s112, %s115
    %p121 = scmp.eq.s32.totalorder %s13, 0
    %p122 = por %p120, %p121
    %p123 = scmp.ne.s32.totalorder %s112, %s115
    %p124 = scmp.eq.s32.totalorder %s18, 1
    %p125 = por %p123, %p124
    %p126 = scmp.ne.s32.totalorder %s115, %s116
    %p127 = scmp.eq.s32.totalorder %s18, 0
    %p128 = por %p126, %p127
    %p129 = scmp.ne.s32.totalorder %s115, %s116
    %p130 = scmp.eq.s32.totalorder %s19, 1
    %p131 = por %p129, %p130
    %p133 = scmp.ne.s32.totalorder %s116, %s132
    %p134 = scmp.eq.s32.totalorder %s19, 0
    %p135 = por %p133, %p134
    %s136 = ssub.s32 %s13, %s20
    %p137 = scmp.eq.s32.totalorder %s136, 0
    %s139 = sadd.s32 %s138, 1
    %s140 = scalar_select %p137, %s138, %s139
    %p143 = pneg %p137
    %p144 = scmp.eq.s32.totalorder %s13, 1
    %p145 = por %p143, %p144
    %p146 = scmp.ne.s32.totalorder %s138, %s141
    %p147 = scmp.eq.s32.totalorder %s13, 0
    %p148 = por %p146, %p147
    %p149 = scmp.ne.s32.totalorder %s138, %s141
    %p150 = scmp.eq.s32.totalorder %s18, 1
    %p151 = por %p149, %p150
    %p152 = scmp.ne.s32.totalorder %s141, %s142
    %p153 = scmp.eq.s32.totalorder %s18, 0
    %p154 = por %p152, %p153
    %p155 = scmp.ne.s32.totalorder %s141, %s142
    %p156 = scmp.eq.s32.totalorder %s19, 1
    %p157 = por %p155, %p156
    %p159 = scmp.ne.s32.totalorder %s142, %s158
    %p160 = scmp.eq.s32.totalorder %s19, 0
    %p161 = por %p159, %p160
    %s162 = ssub.s32 %s13, %s20
    %p163 = scmp.eq.s32.totalorder %s162, 0
    %s165 = sadd.s32 %s164, 1
    %s166 = scalar_select %p163, %s164, %s165
    %p169 = pneg %p163
    %p170 = scmp.eq.s32.totalorder %s13, 1
    %p171 = por %p169, %p170
    %p172 = scmp.ne.s32.totalorder %s164, %s167
    %p173 = scmp.eq.s32.totalorder %s13, 0
    %p174 = por %p172, %p173
    %p175 = scmp.ne.s32.totalorder %s164, %s167
    %p176 = scmp.eq.s32.totalorder %s18, 1
    %p177 = por %p175, %p176
    %p178 = scmp.ne.s32.totalorder %s167, %s168
    %p179 = scmp.eq.s32.totalorder %s18, 0
    %p180 = por %p178, %p179
    %p181 = scmp.ne.s32.totalorder %s167, %s168
    %p182 = scmp.eq.s32.totalorder %s19, 1
    %p183 = por %p181, %p182
    %p185 = scmp.ne.s32.totalorder %s168, %s184
    %p186 = scmp.eq.s32.totalorder %s19, 0
    %p187 = por %p185, %p186
    %p188 = scmp.le.s32.totalorder 1, %s13
    %p189 = scmp.lt.s32.totalorder %s13, 3
    %p190 = pnand %p188, %p189
    %p191 = pneg %p190
    // Predicated region
    $region9: #{_lambda_.5} parent=5 // pred_check
      _
    $region10: #{_lambda_.5} parent=5 // pred_check_branch
      %193 = sbr.rel (%p190) target = $region12
    $region11: #{_lambda_.5} parent=5 // pred_region
      %s194 = ssub.s32 %s13, 1
      // Predicated region
      $region13: #{_lambda_.5} parent=11 // pred_check
        %p195 = pneg %p60
      $region14: #{_lambda_.5} parent=11 // pred_check_branch
        %197 = sbr.rel (%p195) target = $region16
      $region15: #{_lambda_.5} parent=11 // pred_region
        _
      $region16: #{_lambda_.5} parent=11 // pred_fallthru
        _
      // Predicated region
      $region17: #{_lambda_.5} parent=11 // pred_check
        %p198 = pneg %p81
      $region18: #{_lambda_.5} parent=11 // pred_check_branch
        %200 = sbr.rel (%p198) target = $region20
      $region19: #{_lambda_.5} parent=11 // pred_region
        _
      $region20: #{_lambda_.5} parent=11 // pred_fallthru
        _
      // Predicated region
      $region21: #{_lambda_.5} parent=11 // pred_check
        %p201 = pneg %p102
      $region22: #{_lambda_.5} parent=11 // pred_check_branch
        %203 = sbr.rel (%p201) target = $region24
      $region23: #{_lambda_.5} parent=11 // pred_region
        _
      $region24: #{_lambda_.5} parent=11 // pred_fallthru
        _
    $region12: #{_lambda_.5} parent=5 // pred_fallthru
      _
    %p204 = scmp.lt.s32.totalorder %s13, 2
    // Predicated region
    $region25: #{_lambda_.5} parent=5 // pred_check
      %p205 = pneg %p204
    $region26: #{_lambda_.5} parent=5 // pred_check_branch
      %207 = sbr.rel (%p205) target = $region28
    $region27: #{_lambda_.5} parent=5 // pred_region
      // Predicated region
      $region29: #{_lambda_.5} parent=27 // pred_check
        %p208 = pneg %p33
      $region30: #{_lambda_.5} parent=27 // pred_check_branch
        %210 = sbr.rel (%p208) target = $region32
      $region31: #{_lambda_.5} parent=27 // pred_region
        %p211 = scmp.lt.s32.totalorder %s13, 1
        %s212 = scalar_select %p211, %s13, 1
        %s213 = smul.addr %s212, 32
        %s214 = smul.addr %s213, 8
        %s215 = scalar_lea.vmem %s0, %s214
      $region32: #{_lambda_.5} parent=27 // pred_fallthru
        _
    $region28: #{_lambda_.5} parent=5 // pred_fallthru
      _
    %p216 = scmp.le.s32.totalorder 1, %s13
    %p217 = scmp.lt.s32.totalorder %s13, 3
    %p218 = pnand %p216, %p217
    %p219 = pneg %p218
    // Predicated region
    $region33: #{_lambda_.5} parent=5 // pred_check
      _
    $region34: #{_lambda_.5} parent=5 // pred_check_branch
      %221 = sbr.rel (%p218) target = $region36
    $region35: #{_lambda_.5} parent=5 // pred_region
      %s222 = ssub.s32 %s13, 1
      %p223 = scmp.lt.s32.totalorder %s18, 1
      %s224 = scalar_select %p223, %s18, 1
      %s225 = smul.addr %s224, 32
      %s226 = smul.addr %s225, 8
      %s227 = scalar_lea.vmem %s0, %s226
      %p228 = pneg %p39
      %p229 = pneg %p36
      %p230 = pneg %p60
      %p231 = pneg %p57
      %p232 = pneg %p81
      %p233 = pneg %p78
      %p234 = pneg %p102
      %p235 = pneg %p99
      %p236 = pneg %p128
      %p237 = pneg %p125
      %p238 = scmp.lt.s32.totalorder %s18, 1
      %s239 = scalar_select %p238, %s18, 1
      %s240 = smul.addr %s239, 32
      %s241 = smul.addr %s240, 8
      %s242 = scalar_lea.vmem %s4, %s241
      %p243 = pneg %p154
      %p244 = pneg %p151
      %p245 = scmp.lt.s32.totalorder %s18, 1
      %s246 = scalar_select %p245, %s18, 1
      %s247 = scalar_lea.vmem %s5, %s246
      %p248 = pneg %p180
      %p249 = pneg %p177
      %p250 = scmp.lt.s32.totalorder %s18, 1
      %s251 = scalar_select %p250, %s18, 1
      %s252 = scalar_lea.vmem %s6, %s251
      %p253 = scmp.lt.s32.totalorder %s18, 1
      %s254 = scalar_select %p253, %s18, 1
      %s255 = smul.addr %s254, 32
      %s256 = smul.addr %s255, 8
      %s257 = scalar_lea.vmem %s0, %s256
      %p258 = scmp.lt.s32.totalorder %s18, 1
      %s259 = scalar_select %p258, %s18, 1
      %s260 = smul.addr %s259, 32
      %s261 = smul.addr %s260, 8
      %s262 = scalar_lea.vmem %s4, %s261
      %p263 = scmp.lt.s32.totalorder %s18, 1
      %s264 = scalar_select %p263, %s18, 1
      %s265 = scalar_lea.vmem %s5, %s264
      %p266 = scmp.lt.s32.totalorder %s18, 1
      %s267 = scalar_select %p266, %s18, 1
      %s268 = scalar_lea.vmem %s6, %s267
      %v269 = vld [vmem:[%s257] sm:$0xff]
      %v270 = vld [vmem:[%s257 + $0x8] sm:$0xff]
      %v271 = vld [vmem:[%s257 + $0x10] sm:$0xff]
      %v272 = vld [vmem:[%s257 + $0x18] sm:$0xff]
      %v273 = vld [vmem:[%s257 + $0x20] sm:$0xff]
      %v274 = vld [vmem:[%s257 + $0x28] sm:$0xff]
      %v275 = vld [vmem:[%s257 + $0x30] sm:$0xff]
      %v276 = vld [vmem:[%s257 + $0x38] sm:$0xff]
      %v277 = vld [vmem:[%s257 + $0x40] sm:$0xff]
      %v278 = vld [vmem:[%s257 + $0x48] sm:$0xff]
      %v279 = vld [vmem:[%s257 + $0x50] sm:$0xff]
      %v280 = vld [vmem:[%s257 + $0x58] sm:$0xff]
      %v281 = vld [vmem:[%s257 + $0x60] sm:$0xff]
      %v282 = vld [vmem:[%s257 + $0x68] sm:$0xff]
      %v283 = vld [vmem:[%s257 + $0x70] sm:$0xff]
      %v284 = vld [vmem:[%s257 + $0x78] sm:$0xff]
      %v285 = vld [vmem:[%s257 + $0x80] sm:$0xff]
      %v286 = vld [vmem:[%s257 + $0x88] sm:$0xff]
      %v287 = vld [vmem:[%s257 + $0x90] sm:$0xff]
      %v288 = vld [vmem:[%s257 + $0x98] sm:$0xff]
      %v289 = vld [vmem:[%s257 + $0xa0] sm:$0xff]
      %v290 = vld [vmem:[%s257 + $0xa8] sm:$0xff]
      %v291 = vld [vmem:[%s257 + $0xb0] sm:$0xff]
      %v292 = vld [vmem:[%s257 + $0xb8] sm:$0xff]
      %v293 = vld [vmem:[%s257 + $0xc0] sm:$0xff]
      %v294 = vld [vmem:[%s257 + $0xc8] sm:$0xff]
      %v295 = vld [vmem:[%s257 + $0xd0] sm:$0xff]
      %v296 = vld [vmem:[%s257 + $0xd8] sm:$0xff]
      %v297 = vld [vmem:[%s257 + $0xe0] sm:$0xff]
      %v298 = vld [vmem:[%s257 + $0xe8] sm:$0xff]
      %v299 = vld [vmem:[%s257 + $0xf0] sm:$0xff]
      %v300 = vld [vmem:[%s257 + $0xf8] sm:$0xff]
      %v301 = vld [vmem:[%s1] sm:$0x1]
      %v303 = vperm.slane %v301, 0
      %v305 = vmul.f32 %v269, %v303
      %v306 = vmul.f32 %v270, %v303
      %v307 = vmul.f32 %v271, %v303
      %v308 = vmul.f32 %v272, %v303
      %v309 = vmul.f32 %v273, %v303
      %v310 = vmul.f32 %v274, %v303
      %v311 = vmul.f32 %v275, %v303
      %v312 = vmul.f32 %v276, %v303
      %v313 = vmul.f32 %v277, %v303
      %v314 = vmul.f32 %v278, %v303
      %v315 = vmul.f32 %v279, %v303
      %v316 = vmul.f32 %v280, %v303
      %v317 = vmul.f32 %v281, %v303
      %v318 = vmul.f32 %v282, %v303
      %v319 = vmul.f32 %v283, %v303
      %v320 = vmul.f32 %v284, %v303
      %v321 = vmul.f32 %v285, %v303
      %v322 = vmul.f32 %v286, %v303
      %v323 = vmul.f32 %v287, %v303
      %v324 = vmul.f32 %v288, %v303
      %v325 = vmul.f32 %v289, %v303
      %v326 = vmul.f32 %v290, %v303
      %v327 = vmul.f32 %v291, %v303
      %v328 = vmul.f32 %v292, %v303
      %v329 = vmul.f32 %v293, %v303
      %v330 = vmul.f32 %v294, %v303
      %v331 = vmul.f32 %v295, %v303
      %v332 = vmul.f32 %v296, %v303
      %v333 = vmul.f32 %v297, %v303
      %v334 = vmul.f32 %v298, %v303
      %v335 = vmul.f32 %v299, %v303
      %v336 = vmul.f32 %v300, %v303
      %v337 = vld [vmem:[%s2] sm:$0x1]
      %v339 = vperm.slane %v337, 0
      %v341 = vadd.f32 %v305, %v339
      %v342 = vadd.f32 %v306, %v339
      %v343 = vadd.f32 %v307, %v339
      %v344 = vadd.f32 %v308, %v339
      %v345 = vadd.f32 %v309, %v339
      %v346 = vadd.f32 %v310, %v339
      %v347 = vadd.f32 %v311, %v339
      %v348 = vadd.f32 %v312, %v339
      %v349 = vadd.f32 %v313, %v339
      %v350 = vadd.f32 %v314, %v339
      %v351 = vadd.f32 %v315, %v339
      %v352 = vadd.f32 %v316, %v339
      %v353 = vadd.f32 %v317, %v339
      %v354 = vadd.f32 %v318, %v339
      %v355 = vadd.f32 %v319, %v339
      %v356 = vadd.f32 %v320, %v339
      %v357 = vadd.f32 %v321, %v339
      %v358 = vadd.f32 %v322, %v339
      %v359 = vadd.f32 %v323, %v339
      %v360 = vadd.f32 %v324, %v339
      %v361 = vadd.f32 %v325, %v339
      %v362 = vadd.f32 %v326, %v339
      %v363 = vadd.f32 %v327, %v339
      %v364 = vadd.f32 %v328, %v339
      %v365 = vadd.f32 %v329, %v339
      %v366 = vadd.f32 %v330, %v339
      %v367 = vadd.f32 %v331, %v339
      %v368 = vadd.f32 %v332, %v339
      %v369 = vadd.f32 %v333, %v339
      %v370 = vadd.f32 %v334, %v339
      %v371 = vadd.f32 %v335, %v339
      %v372 = vadd.f32 %v336, %v339
      %v373 = vmax.f32 %v341, 0.0
      %v374 = vmax.f32 %v342, 0.0
      %v375 = vmax.f32 %v343, 0.0
      %v376 = vmax.f32 %v344, 0.0
      %v377 = vmax.f32 %v345, 0.0
      %v378 = vmax.f32 %v346, 0.0
      %v379 = vmax.f32 %v347, 0.0
      %v380 = vmax.f32 %v348, 0.0
      %v381 = vmax.f32 %v349, 0.0
      %v382 = vmax.f32 %v350, 0.0
      %v383 = vmax.f32 %v351, 0.0
      %v384 = vmax.f32 %v352, 0.0
      %v385 = vmax.f32 %v353, 0.0
      %v386 = vmax.f32 %v354, 0.0
      %v387 = vmax.f32 %v355, 0.0
      %v388 = vmax.f32 %v356, 0.0
      %v389 = vmax.f32 %v357, 0.0
      %v390 = vmax.f32 %v358, 0.0
      %v391 = vmax.f32 %v359, 0.0
      %v392 = vmax.f32 %v360, 0.0
      %v393 = vmax.f32 %v361, 0.0
      %v394 = vmax.f32 %v362, 0.0
      %v395 = vmax.f32 %v363, 0.0
      %v396 = vmax.f32 %v364, 0.0
      %v397 = vmax.f32 %v365, 0.0
      %v398 = vmax.f32 %v366, 0.0
      %v399 = vmax.f32 %v367, 0.0
      %v400 = vmax.f32 %v368, 0.0
      %v401 = vmax.f32 %v369, 0.0
      %v402 = vmax.f32 %v370, 0.0
      %v403 = vmax.f32 %v371, 0.0
      %v404 = vmax.f32 %v372, 0.0
      %vm437 = vcmask 1040384
      %v438 = vrot.slane %v373, 7
      %v439 = vrot.slane %v374, 7
      %v440 = vsel %vm437, %v438, %v439
      %v441 = vrot.slane %v375, 7
      %v442 = vrot.slane %v376, 7
      %v443 = vsel %vm437, %v441, %v442
      %v444 = vrot.slane %v377, 7
      %v445 = vrot.slane %v378, 7
      %v446 = vsel %vm437, %v444, %v445
      %v447 = vrot.slane %v379, 7
      %v448 = vrot.slane %v380, 7
      %v449 = vsel %vm437, %v447, %v448
      %v450 = vrot.slane %v381, 7
      %v451 = vrot.slane %v382, 7
      %v452 = vsel %vm437, %v450, %v451
      %v453 = vrot.slane %v383, 7
      %v454 = vrot.slane %v384, 7
      %v455 = vsel %vm437, %v453, %v454
      %v456 = vrot.slane %v385, 7
      %v457 = vrot.slane %v386, 7
      %v458 = vsel %vm437, %v456, %v457
      %v459 = vrot.slane %v387, 7
      %v460 = vrot.slane %v388, 7
      %v461 = vsel %vm437, %v459, %v460
      %v462 = vrot.slane %v389, 7
      %v463 = vrot.slane %v390, 7
      %v464 = vsel %vm437, %v462, %v463
      %v465 = vrot.slane %v391, 7
      %v466 = vrot.slane %v392, 7
      %v467 = vsel %vm437, %v465, %v466
      %v468 = vrot.slane %v393, 7
      %v469 = vrot.slane %v394, 7
      %v470 = vsel %vm437, %v468, %v469
      %v471 = vrot.slane %v395, 7
      %v472 = vrot.slane %v396, 7
      %v473 = vsel %vm437, %v471, %v472
      %v474 = vrot.slane %v397, 7
      %v475 = vrot.slane %v398, 7
      %v476 = vsel %vm437, %v474, %v475
      %v477 = vrot.slane %v399, 7
      %v478 = vrot.slane %v400, 7
      %v479 = vsel %vm437, %v477, %v478
      %v480 = vrot.slane %v401, 7
      %v481 = vrot.slane %v402, 7
      %v482 = vsel %vm437, %v480, %v481
      %v483 = vrot.slane %v403, 7
      %v484 = vrot.slane %v404, 7
      %v485 = vsel %vm437, %v483, %v484
      %v518 = vsel %vm437, 0.0, %v438
      %v519 = vsel %vm437, 0.0, %v441
      %v520 = vsel %vm437, 0.0, %v444
      %v521 = vsel %vm437, 0.0, %v447
      %v522 = vsel %vm437, 0.0, %v450
      %v523 = vsel %vm437, 0.0, %v453
      %v524 = vsel %vm437, 0.0, %v456
      %v525 = vsel %vm437, 0.0, %v459
      %v526 = vsel %vm437, 0.0, %v462
      %v527 = vsel %vm437, 0.0, %v465
      %v528 = vsel %vm437, 0.0, %v468
      %v529 = vsel %vm437, 0.0, %v471
      %v530 = vsel %vm437, 0.0, %v474
      %v531 = vsel %vm437, 0.0, %v477
      %v532 = vsel %vm437, 0.0, %v480
      %v533 = vsel %vm437, 0.0, %v483
      %vm534 = vcmask 1046528
      %v535 = vrot.slane %v373, 1
      %v536 = vrot.slane %v374, 1
      %v537 = vsel %vm534, %v535, %v536
      %v538 = vrot.slane %v375, 1
      %v539 = vrot.slane %v376, 1
      %v540 = vsel %vm534, %v538, %v539
      %v541 = vrot.slane %v377, 1
      %v542 = vrot.slane %v378, 1
      %v543 = vsel %vm534, %v541, %v542
      %v544 = vrot.slane %v379, 1
      %v545 = vrot.slane %v380, 1
      %v546 = vsel %vm534, %v544, %v545
      %v547 = vrot.slane %v381, 1
      %v548 = vrot.slane %v382, 1
      %v549 = vsel %vm534, %v547, %v548
      %v550 = vrot.slane %v383, 1
      %v551 = vrot.slane %v384, 1
      %v552 = vsel %vm534, %v550, %v551
      %v553 = vrot.slane %v385, 1
      %v554 = vrot.slane %v386, 1
      %v555 = vsel %vm534, %v553, %v554
      %v556 = vrot.slane %v387, 1
      %v557 = vrot.slane %v388, 1
      %v558 = vsel %vm534, %v556, %v557
      %v559 = vrot.slane %v389, 1
      %v560 = vrot.slane %v390, 1
      %v561 = vsel %vm534, %v559, %v560
      %v562 = vrot.slane %v391, 1
      %v563 = vrot.slane %v392, 1
      %v564 = vsel %vm534, %v562, %v563
      %v565 = vrot.slane %v393, 1
      %v566 = vrot.slane %v394, 1
      %v567 = vsel %vm534, %v565, %v566
      %v568 = vrot.slane %v395, 1
      %v569 = vrot.slane %v396, 1
      %v570 = vsel %vm534, %v568, %v569
      %v571 = vrot.slane %v397, 1
      %v572 = vrot.slane %v398, 1
      %v573 = vsel %vm534, %v571, %v572
      %v574 = vrot.slane %v399, 1
      %v575 = vrot.slane %v400, 1
      %v576 = vsel %vm534, %v574, %v575
      %v577 = vrot.slane %v401, 1
      %v578 = vrot.slane %v402, 1
      %v579 = vsel %vm534, %v577, %v578
      %v580 = vrot.slane %v403, 1
      %v581 = vrot.slane %v404, 1
      %v582 = vsel %vm534, %v580, %v581
      %v615 = vsel %vm534, %v536, 0.0
      %v616 = vsel %vm534, %v539, 0.0
      %v617 = vsel %vm534, %v542, 0.0
      %v618 = vsel %vm534, %v545, 0.0
      %v619 = vsel %vm534, %v548, 0.0
      %v620 = vsel %vm534, %v551, 0.0
      %v621 = vsel %vm534, %v554, 0.0
      %v622 = vsel %vm534, %v557, 0.0
      %v623 = vsel %vm534, %v560, 0.0
      %v624 = vsel %vm534, %v563, 0.0
      %v625 = vsel %vm534, %v566, 0.0
      %v626 = vsel %vm534, %v569, 0.0
      %v627 = vsel %vm534, %v572, 0.0
      %v628 = vsel %vm534, %v575, 0.0
      %v629 = vsel %vm534, %v578, 0.0
      %v630 = vsel %vm534, %v581, 0.0
      %v631 = vld [vmem:[%s3] sm:$0xff]
      %v632 = vld [vmem:[%s3 + $0x8] sm:$0xff]
      %v633 = vld [vmem:[%s3 + $0x10] sm:$0xff]
      %v634 = vld [vmem:[%s3 + $0x18] sm:$0xff]
      %v635 = vld [vmem:[%s3 + $0x20] sm:$0xff]
      %v636 = vld [vmem:[%s3 + $0x28] sm:$0xff]
      %v637 = vld [vmem:[%s3 + $0x30] sm:$0xff]
      %v638 = vld [vmem:[%s3 + $0x38] sm:$0xff]
      %v639 = vld [vmem:[%s3 + $0x40] sm:$0xff]
      %v640 = vld [vmem:[%s3 + $0x48] sm:$0xff]
      %v641 = vld [vmem:[%s3 + $0x50] sm:$0xff]
      %v642 = vld [vmem:[%s3 + $0x58] sm:$0xff]
      %v643 = vld [vmem:[%s3 + $0x60] sm:$0xff]
      %v644 = vld [vmem:[%s3 + $0x68] sm:$0xff]
      %v645 = vld [vmem:[%s3 + $0x70] sm:$0xff]
      %v646 = vld [vmem:[%s3 + $0x78] sm:$0xff]
      %v647 = vld [vmem:[%s3 + $0x80] sm:$0xff]
      %v648 = vld [vmem:[%s3 + $0x88] sm:$0xff]
      %v649 = vld [vmem:[%s3 + $0x90] sm:$0xff]
      %v650 = vld [vmem:[%s3 + $0x98] sm:$0xff]
      %v651 = vld [vmem:[%s3 + $0xa0] sm:$0xff]
      %v652 = vld [vmem:[%s3 + $0xa8] sm:$0xff]
      %v653 = vld [vmem:[%s3 + $0xb0] sm:$0xff]
      %v654 = vld [vmem:[%s3 + $0xb8] sm:$0xff]
      %v655 = vld [vmem:[%s3 + $0xc0] sm:$0xff]
      %v656 = vld [vmem:[%s3 + $0xc8] sm:$0xff]
      %v657 = vld [vmem:[%s3 + $0xd0] sm:$0xff]
      %v658 = vld [vmem:[%s3 + $0xd8] sm:$0xff]
      %v659 = vld [vmem:[%s3 + $0xe0] sm:$0xff]
      %v660 = vld [vmem:[%s3 + $0xe8] sm:$0xff]
      %v661 = vld [vmem:[%s3 + $0xf0] sm:$0xff]
      %v662 = vld [vmem:[%s3 + $0xf8] sm:$0xff]
      %v663 = vld [vmem:[%s3 + $0x100] sm:$0xff]
      %v664 = vld [vmem:[%s3 + $0x108] sm:$0xff]
      %v665 = vld [vmem:[%s3 + $0x110] sm:$0xff]
      %v666 = vld [vmem:[%s3 + $0x118] sm:$0xff]
      %v667 = vld [vmem:[%s3 + $0x120] sm:$0xff]
      %v668 = vld [vmem:[%s3 + $0x128] sm:$0xff]
      %v669 = vld [vmem:[%s3 + $0x130] sm:$0xff]
      %v670 = vld [vmem:[%s3 + $0x138] sm:$0xff]
      %v671 = vld [vmem:[%s3 + $0x140] sm:$0xff]
      %v672 = vld [vmem:[%s3 + $0x148] sm:$0xff]
      %v673 = vld [vmem:[%s3 + $0x150] sm:$0xff]
      %v674 = vld [vmem:[%s3 + $0x158] sm:$0xff]
      %v675 = vld [vmem:[%s3 + $0x160] sm:$0xff]
      %v676 = vld [vmem:[%s3 + $0x168] sm:$0xff]
      %v677 = vld [vmem:[%s3 + $0x170] sm:$0xff]
      %v678 = vld [vmem:[%s3 + $0x178] sm:$0xff]
      %v679 = vld [vmem:[%s3 + $0x180] sm:$0xff]
      %v680 = vld [vmem:[%s3 + $0x188] sm:$0xff]
      %v681 = vld [vmem:[%s3 + $0x190] sm:$0xff]
      %v682 = vld [vmem:[%s3 + $0x198] sm:$0xff]
      %v683 = vld [vmem:[%s3 + $0x1a0] sm:$0xff]
      %v684 = vld [vmem:[%s3 + $0x1a8] sm:$0xff]
      %v685 = vld [vmem:[%s3 + $0x1b0] sm:$0xff]
      %v686 = vld [vmem:[%s3 + $0x1b8] sm:$0xff]
      %v687 = vld [vmem:[%s3 + $0x1c0] sm:$0xff]
      %v688 = vld [vmem:[%s3 + $0x1c8] sm:$0xff]
      %v689 = vld [vmem:[%s3 + $0x1d0] sm:$0xff]
      %v690 = vld [vmem:[%s3 + $0x1d8] sm:$0xff]
      %v691 = vld [vmem:[%s3 + $0x1e0] sm:$0xff]
      %v692 = vld [vmem:[%s3 + $0x1e8] sm:$0xff]
      %v693 = vld [vmem:[%s3 + $0x1f0] sm:$0xff]
      %v694 = vld [vmem:[%s3 + $0x1f8] sm:$0xff]
      %v695 = vld [vmem:[%s3 + $0x200] sm:$0xff]
      %v696 = vld [vmem:[%s3 + $0x208] sm:$0xff]
      %v697 = vld [vmem:[%s3 + $0x210] sm:$0xff]
      %v698 = vld [vmem:[%s3 + $0x218] sm:$0xff]
      %v699 = vld [vmem:[%s3 + $0x220] sm:$0xff]
      %v700 = vld [vmem:[%s3 + $0x228] sm:$0xff]
      %v701 = vld [vmem:[%s3 + $0x230] sm:$0xff]
      %v702 = vld [vmem:[%s3 + $0x238] sm:$0xff]
      %v703 = vld [vmem:[%s3 + $0x240] sm:$0xff]
      %v704 = vld [vmem:[%s3 + $0x248] sm:$0xff]
      %v705 = vld [vmem:[%s3 + $0x250] sm:$0xff]
      %v706 = vld [vmem:[%s3 + $0x258] sm:$0xff]
      %v707 = vld [vmem:[%s3 + $0x260] sm:$0xff]
      %v708 = vld [vmem:[%s3 + $0x268] sm:$0xff]
      %v709 = vld [vmem:[%s3 + $0x270] sm:$0xff]
      %v710 = vld [vmem:[%s3 + $0x278] sm:$0xff]
      %v711 = vld [vmem:[%s3 + $0x280] sm:$0xff]
      %v712 = vld [vmem:[%s3 + $0x288] sm:$0xff]
      %v713 = vld [vmem:[%s3 + $0x290] sm:$0xff]
      %v714 = vld [vmem:[%s3 + $0x298] sm:$0xff]
      %v715 = vld [vmem:[%s3 + $0x2a0] sm:$0xff]
      %v716 = vld [vmem:[%s3 + $0x2a8] sm:$0xff]
      %v717 = vld [vmem:[%s3 + $0x2b0] sm:$0xff]
      %v718 = vld [vmem:[%s3 + $0x2b8] sm:$0xff]
      %v719 = vld [vmem:[%s3 + $0x2c0] sm:$0xff]
      %v720 = vld [vmem:[%s3 + $0x2c8] sm:$0xff]
      %v721 = vld [vmem:[%s3 + $0x2d0] sm:$0xff]
      %v722 = vld [vmem:[%s3 + $0x2d8] sm:$0xff]
      %v723 = vld [vmem:[%s3 + $0x2e0] sm:$0xff]
      %v724 = vld [vmem:[%s3 + $0x2e8] sm:$0xff]
      %v725 = vld [vmem:[%s3 + $0x2f0] sm:$0xff]
      %v726 = vld [vmem:[%s3 + $0x2f8] sm:$0xff]
      %v727 = vld [vmem:[%s3 + $0x300] sm:$0xff]
      %v728 = vld [vmem:[%s3 + $0x308] sm:$0xff]
      %v729 = vld [vmem:[%s3 + $0x310] sm:$0xff]
      %v730 = vld [vmem:[%s3 + $0x318] sm:$0xff]
      %v731 = vld [vmem:[%s3 + $0x320] sm:$0xff]
      %v732 = vld [vmem:[%s3 + $0x328] sm:$0xff]
      %v733 = vld [vmem:[%s3 + $0x330] sm:$0xff]
      %v734 = vld [vmem:[%s3 + $0x338] sm:$0xff]
      %v735 = vld [vmem:[%s3 + $0x340] sm:$0xff]
      %v736 = vld [vmem:[%s3 + $0x348] sm:$0xff]
      %v737 = vld [vmem:[%s3 + $0x350] sm:$0xff]
      %v738 = vld [vmem:[%s3 + $0x358] sm:$0xff]
      %v739 = vld [vmem:[%s3 + $0x360] sm:$0xff]
      %v740 = vld [vmem:[%s3 + $0x368] sm:$0xff]
      %v741 = vld [vmem:[%s3 + $0x370] sm:$0xff]
      %v742 = vld [vmem:[%s3 + $0x378] sm:$0xff]
      %v743 = vld [vmem:[%s3 + $0x380] sm:$0xff]
      %v744 = vld [vmem:[%s3 + $0x388] sm:$0xff]
      %v745 = vld [vmem:[%s3 + $0x390] sm:$0xff]
      %v746 = vld [vmem:[%s3 + $0x398] sm:$0xff]
      %v747 = vld [vmem:[%s3 + $0x3a0] sm:$0xff]
      %v748 = vld [vmem:[%s3 + $0x3a8] sm:$0xff]
      %v749 = vld [vmem:[%s3 + $0x3b0] sm:$0xff]
      %v750 = vld [vmem:[%s3 + $0x3b8] sm:$0xff]
      %v751 = vld [vmem:[%s3 + $0x3c0] sm:$0xff]
      %v752 = vld [vmem:[%s3 + $0x3c8] sm:$0xff]
      %v753 = vld [vmem:[%s3 + $0x3d0] sm:$0xff]
      %v754 = vld [vmem:[%s3 + $0x3d8] sm:$0xff]
      %v755 = vld [vmem:[%s3 + $0x3e0] sm:$0xff]
      %v756 = vld [vmem:[%s3 + $0x3e8] sm:$0xff]
      %v757 = vld [vmem:[%s3 + $0x3f0] sm:$0xff]
      %v758 = vld [vmem:[%s3 + $0x3f8] sm:$0xff]
      %v759 = vld [vmem:[%s3 + $0x400] sm:$0xff]
      %v760 = vld [vmem:[%s3 + $0x408] sm:$0xff]
      %v761 = vld [vmem:[%s3 + $0x410] sm:$0xff]
      %v762 = vld [vmem:[%s3 + $0x418] sm:$0xff]
      %v763 = vld [vmem:[%s3 + $0x420] sm:$0xff]
      %v764 = vld [vmem:[%s3 + $0x428] sm:$0xff]
      %v765 = vld [vmem:[%s3 + $0x430] sm:$0xff]
      %v766 = vld [vmem:[%s3 + $0x438] sm:$0xff]
      %v767 = vld [vmem:[%s3 + $0x440] sm:$0xff]
      %v768 = vld [vmem:[%s3 + $0x448] sm:$0xff]
      %v769 = vld [vmem:[%s3 + $0x450] sm:$0xff]
      %v770 = vld [vmem:[%s3 + $0x458] sm:$0xff]
      %v771 = vld [vmem:[%s3 + $0x460] sm:$0xff]
      %v772 = vld [vmem:[%s3 + $0x468] sm:$0xff]
      %v773 = vld [vmem:[%s3 + $0x470] sm:$0xff]
      %v774 = vld [vmem:[%s3 + $0x478] sm:$0xff]
      %775 = vmatpush.msra.mxu0 %v646
      %776 = vmatpush.msra.mxu0 %v645
      %777 = vmatpush.msra.mxu0 %v644
      %778 = vmatpush.msra.mxu0 %v643
      %779 = vmatpush.msra.mxu0 %v642
      %780 = vmatpush.msra.mxu0 %v641
      %781 = vmatpush.msra.mxu0 %v640
      %782 = vmatpush.msra.mxu0 %v639
      %783 = vmatpush.msra.mxu0 %v638
      %784 = vmatpush.msra.mxu0 %v637
      %785 = vmatpush.msra.mxu0 %v636
      %786 = vmatpush.msra.mxu0 %v635
      %787 = vmatpush.msra.mxu0 %v634
      %788 = vmatpush.msra.mxu0 %v633
      %789 = vmatpush.msra.mxu0 %v632
      %790 = vmatpush.msra.mxu0 %v631
      %791 = vmatmul.f32.gmra.mxu0 0.0
      %v792 = vpop.f32.mrf.mxu0
      %v793 = vadd.f32 0.0, %v792
      %794 = vmatmul.f32.gmra.mxu0 0.0
      %v795 = vpop.f32.mrf.mxu0
      %v796 = vadd.f32 0.0, %v795
      %797 = vmatmul.f32.gmra.mxu0 %v518
      %v798 = vpop.f32.mrf.mxu0
      %v799 = vadd.f32 0.0, %v798
      %800 = vmatmul.f32.gmra.mxu0 %v440
      %v801 = vpop.f32.mrf.mxu0
      %v802 = vadd.f32 0.0, %v801
      %803 = vmatmul.f32.gmra.mxu0 %v519
      %v804 = vpop.f32.mrf.mxu0
      %v805 = vadd.f32 0.0, %v804
      %806 = vmatmul.f32.gmra.mxu0 %v443
      %v807 = vpop.f32.mrf.mxu0
      %v808 = vadd.f32 0.0, %v807
      %809 = vmatmul.f32.gmra.mxu0 %v520
      %v810 = vpop.f32.mrf.mxu0
      %v811 = vadd.f32 0.0, %v810
      %812 = vmatmul.f32.gmra.mxu0 %v446
      %v813 = vpop.f32.mrf.mxu0
      %v814 = vadd.f32 0.0, %v813
      %815 = vmatmul.f32.gmra.mxu0 %v521
      %v816 = vpop.f32.mrf.mxu0
      %v817 = vadd.f32 0.0, %v816
      %818 = vmatmul.f32.gmra.mxu0 %v449
      %v819 = vpop.f32.mrf.mxu0
      %v820 = vadd.f32 0.0, %v819
      %821 = vmatmul.f32.gmra.mxu0 %v522
      %v822 = vpop.f32.mrf.mxu0
      %v823 = vadd.f32 0.0, %v822
      %824 = vmatmul.f32.gmra.mxu0 %v452
      %v825 = vpop.f32.mrf.mxu0
      %v826 = vadd.f32 0.0, %v825
      %827 = vmatmul.f32.gmra.mxu0 %v523
      %v828 = vpop.f32.mrf.mxu0
      %v829 = vadd.f32 0.0, %v828
      %830 = vmatmul.f32.gmra.mxu0 %v455
      %v831 = vpop.f32.mrf.mxu0
      %v832 = vadd.f32 0.0, %v831
      %833 = vmatmul.f32.gmra.mxu0 %v524
      %v834 = vpop.f32.mrf.mxu0
      %v835 = vadd.f32 0.0, %v834
      %836 = vmatmul.f32.gmra.mxu0 %v458
      %v837 = vpop.f32.mrf.mxu0
      %v838 = vadd.f32 0.0, %v837
      %839 = vmatmul.f32.gmra.mxu0 %v525
      %v840 = vpop.f32.mrf.mxu0
      %v841 = vadd.f32 0.0, %v840
      %842 = vmatmul.f32.gmra.mxu0 %v461
      %v843 = vpop.f32.mrf.mxu0
      %v844 = vadd.f32 0.0, %v843
      %845 = vmatmul.f32.gmra.mxu0 %v526
      %v846 = vpop.f32.mrf.mxu0
      %v847 = vadd.f32 0.0, %v846
      %848 = vmatmul.f32.gmra.mxu0 %v464
      %v849 = vpop.f32.mrf.mxu0
      %v850 = vadd.f32 0.0, %v849
      %851 = vmatmul.f32.gmra.mxu0 %v527
      %v852 = vpop.f32.mrf.mxu0
      %v853 = vadd.f32 0.0, %v852
      %854 = vmatmul.f32.gmra.mxu0 %v467
      %v855 = vpop.f32.mrf.mxu0
      %v856 = vadd.f32 0.0, %v855
      %857 = vmatmul.f32.gmra.mxu0 %v528
      %v858 = vpop.f32.mrf.mxu0
      %v859 = vadd.f32 0.0, %v858
      %860 = vmatmul.f32.gmra.mxu0 %v470
      %v861 = vpop.f32.mrf.mxu0
      %v862 = vadd.f32 0.0, %v861
      %863 = vmatmul.f32.gmra.mxu0 %v529
      %v864 = vpop.f32.mrf.mxu0
      %v865 = vadd.f32 0.0, %v864
      %866 = vmatmul.f32.gmra.mxu0 %v473
      %v867 = vpop.f32.mrf.mxu0
      %v868 = vadd.f32 0.0, %v867
      %869 = vmatmul.f32.gmra.mxu0 %v530
      %v870 = vpop.f32.mrf.mxu0
      %v871 = vadd.f32 0.0, %v870
      %872 = vmatmul.f32.gmra.mxu0 %v476
      %v873 = vpop.f32.mrf.mxu0
      %v874 = vadd.f32 0.0, %v873
      %875 = vmatmul.f32.gmra.mxu0 %v531
      %v876 = vpop.f32.mrf.mxu0
      %v877 = vadd.f32 0.0, %v876
      %878 = vmatmul.f32.gmra.mxu0 %v479
      %v879 = vpop.f32.mrf.mxu0
      %v880 = vadd.f32 0.0, %v879
      %881 = vmatmul.f32.gmra.mxu0 %v532
      %v882 = vpop.f32.mrf.mxu0
      %v883 = vadd.f32 0.0, %v882
      %884 = vmatmul.f32.gmra.mxu0 %v482
      %v885 = vpop.f32.mrf.mxu0
      %v886 = vadd.f32 0.0, %v885
      %887 = vdwg.mxu0
      %888 = vmatpush.msra.mxu0 %v662
      %889 = vmatpush.msra.mxu0 %v661
      %890 = vmatpush.msra.mxu0 %v660
      %891 = vmatpush.msra.mxu0 %v659
      %892 = vmatpush.msra.mxu0 %v658
      %893 = vmatpush.msra.mxu0 %v657
      %894 = vmatpush.msra.mxu0 %v656
      %895 = vmatpush.msra.mxu0 %v655
      %896 = vmatpush.msra.mxu0 %v654
      %897 = vmatpush.msra.mxu0 %v653
      %898 = vmatpush.msra.mxu0 %v652
      %899 = vmatpush.msra.mxu0 %v651
      %900 = vmatpush.msra.mxu0 %v650
      %901 = vmatpush.msra.mxu0 %v649
      %902 = vmatpush.msra.mxu0 %v648
      %903 = vmatpush.msra.mxu0 %v647
      %904 = vmatmul.f32.gmra.mxu0 0.0
      %v905 = vpop.f32.mrf.mxu0
      %v906 = vadd.f32 %v793, %v905
      %907 = vmatmul.f32.gmra.mxu0 0.0
      %v908 = vpop.f32.mrf.mxu0
      %v909 = vadd.f32 %v796, %v908
      %910 = vmatmul.f32.gmra.mxu0 %v373
      %v911 = vpop.f32.mrf.mxu0
      %v912 = vadd.f32 %v799, %v911
      %913 = vmatmul.f32.gmra.mxu0 %v374
      %v914 = vpop.f32.mrf.mxu0
      %v915 = vadd.f32 %v802, %v914
      %916 = vmatmul.f32.gmra.mxu0 %v375
      %v917 = vpop.f32.mrf.mxu0
      %v918 = vadd.f32 %v805, %v917
      %919 = vmatmul.f32.gmra.mxu0 %v376
      %v920 = vpop.f32.mrf.mxu0
      %v921 = vadd.f32 %v808, %v920
      %922 = vmatmul.f32.gmra.mxu0 %v377
      %v923 = vpop.f32.mrf.mxu0
      %v924 = vadd.f32 %v811, %v923
      %925 = vmatmul.f32.gmra.mxu0 %v378
      %v926 = vpop.f32.mrf.mxu0
      %v927 = vadd.f32 %v814, %v926
      %928 = vmatmul.f32.gmra.mxu0 %v379
      %v929 = vpop.f32.mrf.mxu0
      %v930 = vadd.f32 %v817, %v929
      %931 = vmatmul.f32.gmra.mxu0 %v380
      %v932 = vpop.f32.mrf.mxu0
      %v933 = vadd.f32 %v820, %v932
      %934 = vmatmul.f32.gmra.mxu0 %v381
      %v935 = vpop.f32.mrf.mxu0
      %v936 = vadd.f32 %v823, %v935
      %937 = vmatmul.f32.gmra.mxu0 %v382
      %v938 = vpop.f32.mrf.mxu0
      %v939 = vadd.f32 %v826, %v938
      %940 = vmatmul.f32.gmra.mxu0 %v383
      %v941 = vpop.f32.mrf.mxu0
      %v942 = vadd.f32 %v829, %v941
      %943 = vmatmul.f32.gmra.mxu0 %v384
      %v944 = vpop.f32.mrf.mxu0
      %v945 = vadd.f32 %v832, %v944
      %946 = vmatmul.f32.gmra.mxu0 %v385
      %v947 = vpop.f32.mrf.mxu0
      %v948 = vadd.f32 %v835, %v947
      %949 = vmatmul.f32.gmra.mxu0 %v386
      %v950 = vpop.f32.mrf.mxu0
      %v951 = vadd.f32 %v838, %v950
      %952 = vmatmul.f32.gmra.mxu0 %v387
      %v953 = vpop.f32.mrf.mxu0
      %v954 = vadd.f32 %v841, %v953
      %955 = vmatmul.f32.gmra.mxu0 %v388
      %v956 = vpop.f32.mrf.mxu0
      %v957 = vadd.f32 %v844, %v956
      %958 = vmatmul.f32.gmra.mxu0 %v389
      %v959 = vpop.f32.mrf.mxu0
      %v960 = vadd.f32 %v847, %v959
      %961 = vmatmul.f32.gmra.mxu0 %v390
      %v962 = vpop.f32.mrf.mxu0
      %v963 = vadd.f32 %v850, %v962
      %964 = vmatmul.f32.gmra.mxu0 %v391
      %v965 = vpop.f32.mrf.mxu0
      %v966 = vadd.f32 %v853, %v965
      %967 = vmatmul.f32.gmra.mxu0 %v392
      %v968 = vpop.f32.mrf.mxu0
      %v969 = vadd.f32 %v856, %v968
      %970 = vmatmul.f32.gmra.mxu0 %v393
      %v971 = vpop.f32.mrf.mxu0
      %v972 = vadd.f32 %v859, %v971
      %973 = vmatmul.f32.gmra.mxu0 %v394
      %v974 = vpop.f32.mrf.mxu0
      %v975 = vadd.f32 %v862, %v974
      %976 = vmatmul.f32.gmra.mxu0 %v395
      %v977 = vpop.f32.mrf.mxu0
      %v978 = vadd.f32 %v865, %v977
      %979 = vmatmul.f32.gmra.mxu0 %v396
      %v980 = vpop.f32.mrf.mxu0
      %v981 = vadd.f32 %v868, %v980
      %982 = vmatmul.f32.gmra.mxu0 %v397
      %v983 = vpop.f32.mrf.mxu0
      %v984 = vadd.f32 %v871, %v983
      %985 = vmatmul.f32.gmra.mxu0 %v398
      %v986 = vpop.f32.mrf.mxu0
      %v987 = vadd.f32 %v874, %v986
      %988 = vmatmul.f32.gmra.mxu0 %v399
      %v989 = vpop.f32.mrf.mxu0
      %v990 = vadd.f32 %v877, %v989
      %991 = vmatmul.f32.gmra.mxu0 %v400
      %v992 = vpop.f32.mrf.mxu0
      %v993 = vadd.f32 %v880, %v992
      %994 = vmatmul.f32.gmra.mxu0 %v401
      %v995 = vpop.f32.mrf.mxu0
      %v996 = vadd.f32 %v883, %v995
      %997 = vmatmul.f32.gmra.mxu0 %v402
      %v998 = vpop.f32.mrf.mxu0
      %v999 = vadd.f32 %v886, %v998
      %1000 = vdwg.mxu0
      %1001 = vmatpush.msra.mxu0 %v678
      %1002 = vmatpush.msra.mxu0 %v677
      %1003 = vmatpush.msra.mxu0 %v676
      %1004 = vmatpush.msra.mxu0 %v675
      %1005 = vmatpush.msra.mxu0 %v674
      %1006 = vmatpush.msra.mxu0 %v673
      %1007 = vmatpush.msra.mxu0 %v672
      %1008 = vmatpush.msra.mxu0 %v671
      %1009 = vmatpush.msra.mxu0 %v670
      %1010 = vmatpush.msra.mxu0 %v669
      %1011 = vmatpush.msra.mxu0 %v668
      %1012 = vmatpush.msra.mxu0 %v667
      %1013 = vmatpush.msra.mxu0 %v666
      %1014 = vmatpush.msra.mxu0 %v665
      %1015 = vmatpush.msra.mxu0 %v664
      %1016 = vmatpush.msra.mxu0 %v663
      %1017 = vmatmul.f32.gmra.mxu0 0.0
      %v1018 = vpop.f32.mrf.mxu0
      %v1019 = vadd.f32 %v906, %v1018
      %1020 = vmatmul.f32.gmra.mxu0 0.0
      %v1021 = vpop.f32.mrf.mxu0
      %v1022 = vadd.f32 %v909, %v1021
      %1023 = vmatmul.f32.gmra.mxu0 %v537
      %v1024 = vpop.f32.mrf.mxu0
      %v1025 = vadd.f32 %v912, %v1024
      %1026 = vmatmul.f32.gmra.mxu0 %v615
      %v1027 = vpop.f32.mrf.mxu0
      %v1028 = vadd.f32 %v915, %v1027
      %1029 = vmatmul.f32.gmra.mxu0 %v540
      %v1030 = vpop.f32.mrf.mxu0
      %v1031 = vadd.f32 %v918, %v1030
      %1032 = vmatmul.f32.gmra.mxu0 %v616
      %v1033 = vpop.f32.mrf.mxu0
      %v1034 = vadd.f32 %v921, %v1033
      %1035 = vmatmul.f32.gmra.mxu0 %v543
      %v1036 = vpop.f32.mrf.mxu0
      %v1037 = vadd.f32 %v924, %v1036
      %1038 = vmatmul.f32.gmra.mxu0 %v617
      %v1039 = vpop.f32.mrf.mxu0
      %v1040 = vadd.f32 %v927, %v1039
      %1041 = vmatmul.f32.gmra.mxu0 %v546
      %v1042 = vpop.f32.mrf.mxu0
      %v1043 = vadd.f32 %v930, %v1042
      %1044 = vmatmul.f32.gmra.mxu0 %v618
      %v1045 = vpop.f32.mrf.mxu0
      %v1046 = vadd.f32 %v933, %v1045
      %1047 = vmatmul.f32.gmra.mxu0 %v549
      %v1048 = vpop.f32.mrf.mxu0
      %v1049 = vadd.f32 %v936, %v1048
      %1050 = vmatmul.f32.gmra.mxu0 %v619
      %v1051 = vpop.f32.mrf.mxu0
      %v1052 = vadd.f32 %v939, %v1051
      %1053 = vmatmul.f32.gmra.mxu0 %v552
      %v1054 = vpop.f32.mrf.mxu0
      %v1055 = vadd.f32 %v942, %v1054
      %1056 = vmatmul.f32.gmra.mxu0 %v620
      %v1057 = vpop.f32.mrf.mxu0
      %v1058 = vadd.f32 %v945, %v1057
      %1059 = vmatmul.f32.gmra.mxu0 %v555
      %v1060 = vpop.f32.mrf.mxu0
      %v1061 = vadd.f32 %v948, %v1060
      %1062 = vmatmul.f32.gmra.mxu0 %v621
      %v1063 = vpop.f32.mrf.mxu0
      %v1064 = vadd.f32 %v951, %v1063
      %1065 = vmatmul.f32.gmra.mxu0 %v558
      %v1066 = vpop.f32.mrf.mxu0
      %v1067 = vadd.f32 %v954, %v1066
      %1068 = vmatmul.f32.gmra.mxu0 %v622
      %v1069 = vpop.f32.mrf.mxu0
      %v1070 = vadd.f32 %v957, %v1069
      %1071 = vmatmul.f32.gmra.mxu0 %v561
      %v1072 = vpop.f32.mrf.mxu0
      %v1073 = vadd.f32 %v960, %v1072
      %1074 = vmatmul.f32.gmra.mxu0 %v623
      %v1075 = vpop.f32.mrf.mxu0
      %v1076 = vadd.f32 %v963, %v1075
      %1077 = vmatmul.f32.gmra.mxu0 %v564
      %v1078 = vpop.f32.mrf.mxu0
      %v1079 = vadd.f32 %v966, %v1078
      %1080 = vmatmul.f32.gmra.mxu0 %v624
      %v1081 = vpop.f32.mrf.mxu0
      %v1082 = vadd.f32 %v969, %v1081
      %1083 = vmatmul.f32.gmra.mxu0 %v567
      %v1084 = vpop.f32.mrf.mxu0
      %v1085 = vadd.f32 %v972, %v1084
      %1086 = vmatmul.f32.gmra.mxu0 %v625
      %v1087 = vpop.f32.mrf.mxu0
      %v1088 = vadd.f32 %v975, %v1087
      %1089 = vmatmul.f32.gmra.mxu0 %v570
      %v1090 = vpop.f32.mrf.mxu0
      %v1091 = vadd.f32 %v978, %v1090
      %1092 = vmatmul.f32.gmra.mxu0 %v626
      %v1093 = vpop.f32.mrf.mxu0
      %v1094 = vadd.f32 %v981, %v1093
      %1095 = vmatmul.f32.gmra.mxu0 %v573
      %v1096 = vpop.f32.mrf.mxu0
      %v1097 = vadd.f32 %v984, %v1096
      %1098 = vmatmul.f32.gmra.mxu0 %v627
      %v1099 = vpop.f32.mrf.mxu0
      %v1100 = vadd.f32 %v987, %v1099
      %1101 = vmatmul.f32.gmra.mxu0 %v576
      %v1102 = vpop.f32.mrf.mxu0
      %v1103 = vadd.f32 %v990, %v1102
      %1104 = vmatmul.f32.gmra.mxu0 %v628
      %v1105 = vpop.f32.mrf.mxu0
      %v1106 = vadd.f32 %v993, %v1105
      %1107 = vmatmul.f32.gmra.mxu0 %v579
      %v1108 = vpop.f32.mrf.mxu0
      %v1109 = vadd.f32 %v996, %v1108
      %1110 = vmatmul.f32.gmra.mxu0 %v629
      %v1111 = vpop.f32.mrf.mxu0
      %v1112 = vadd.f32 %v999, %v1111
      %1113 = vdwg.mxu0
      %1114 = vmatpush.msra.mxu0 %v694
      %1115 = vmatpush.msra.mxu0 %v693
      %1116 = vmatpush.msra.mxu0 %v692
      %1117 = vmatpush.msra.mxu0 %v691
      %1118 = vmatpush.msra.mxu0 %v690
      %1119 = vmatpush.msra.mxu0 %v689
      %1120 = vmatpush.msra.mxu0 %v688
      %1121 = vmatpush.msra.mxu0 %v687
      %1122 = vmatpush.msra.mxu0 %v686
      %1123 = vmatpush.msra.mxu0 %v685
      %1124 = vmatpush.msra.mxu0 %v684
      %1125 = vmatpush.msra.mxu0 %v683
      %1126 = vmatpush.msra.mxu0 %v682
      %1127 = vmatpush.msra.mxu0 %v681
      %1128 = vmatpush.msra.mxu0 %v680
      %1129 = vmatpush.msra.mxu0 %v679
      %1130 = vmatmul.f32.gmra.mxu0 %v518
      %v1131 = vpop.f32.mrf.mxu0
      %v1132 = vadd.f32 %v1019, %v1131
      %1133 = vmatmul.f32.gmra.mxu0 %v440
      %v1134 = vpop.f32.mrf.mxu0
      %v1135 = vadd.f32 %v1022, %v1134
      %1136 = vmatmul.f32.gmra.mxu0 %v519
      %v1137 = vpop.f32.mrf.mxu0
      %v1138 = vadd.f32 %v1025, %v1137
      %1139 = vmatmul.f32.gmra.mxu0 %v443
      %v1140 = vpop.f32.mrf.mxu0
      %v1141 = vadd.f32 %v1028, %v1140
      %1142 = vmatmul.f32.gmra.mxu0 %v520
      %v1143 = vpop.f32.mrf.mxu0
      %v1144 = vadd.f32 %v1031, %v1143
      %1145 = vmatmul.f32.gmra.mxu0 %v446
      %v1146 = vpop.f32.mrf.mxu0
      %v1147 = vadd.f32 %v1034, %v1146
      %1148 = vmatmul.f32.gmra.mxu0 %v521
      %v1149 = vpop.f32.mrf.mxu0
      %v1150 = vadd.f32 %v1037, %v1149
      %1151 = vmatmul.f32.gmra.mxu0 %v449
      %v1152 = vpop.f32.mrf.mxu0
      %v1153 = vadd.f32 %v1040, %v1152
      %1154 = vmatmul.f32.gmra.mxu0 %v522
      %v1155 = vpop.f32.mrf.mxu0
      %v1156 = vadd.f32 %v1043, %v1155
      %1157 = vmatmul.f32.gmra.mxu0 %v452
      %v1158 = vpop.f32.mrf.mxu0
      %v1159 = vadd.f32 %v1046, %v1158
      %1160 = vmatmul.f32.gmra.mxu0 %v523
      %v1161 = vpop.f32.mrf.mxu0
      %v1162 = vadd.f32 %v1049, %v1161
      %1163 = vmatmul.f32.gmra.mxu0 %v455
      %v1164 = vpop.f32.mrf.mxu0
      %v1165 = vadd.f32 %v1052, %v1164
      %1166 = vmatmul.f32.gmra.mxu0 %v524
      %v1167 = vpop.f32.mrf.mxu0
      %v1168 = vadd.f32 %v1055, %v1167
      %1169 = vmatmul.f32.gmra.mxu0 %v458
      %v1170 = vpop.f32.mrf.mxu0
      %v1171 = vadd.f32 %v1058, %v1170
      %1172 = vmatmul.f32.gmra.mxu0 %v525
      %v1173 = vpop.f32.mrf.mxu0
      %v1174 = vadd.f32 %v1061, %v1173
      %1175 = vmatmul.f32.gmra.mxu0 %v461
      %v1176 = vpop.f32.mrf.mxu0
      %v1177 = vadd.f32 %v1064, %v1176
      %1178 = vmatmul.f32.gmra.mxu0 %v526
      %v1179 = vpop.f32.mrf.mxu0
      %v1180 = vadd.f32 %v1067, %v1179
      %1181 = vmatmul.f32.gmra.mxu0 %v464
      %v1182 = vpop.f32.mrf.mxu0
      %v1183 = vadd.f32 %v1070, %v1182
      %1184 = vmatmul.f32.gmra.mxu0 %v527
      %v1185 = vpop.f32.mrf.mxu0
      %v1186 = vadd.f32 %v1073, %v1185
      %1187 = vmatmul.f32.gmra.mxu0 %v467
      %v1188 = vpop.f32.mrf.mxu0
      %v1189 = vadd.f32 %v1076, %v1188
      %1190 = vmatmul.f32.gmra.mxu0 %v528
      %v1191 = vpop.f32.mrf.mxu0
      %v1192 = vadd.f32 %v1079, %v1191
      %1193 = vmatmul.f32.gmra.mxu0 %v470
      %v1194 = vpop.f32.mrf.mxu0
      %v1195 = vadd.f32 %v1082, %v1194
      %1196 = vmatmul.f32.gmra.mxu0 %v529
      %v1197 = vpop.f32.mrf.mxu0
      %v1198 = vadd.f32 %v1085, %v1197
      %1199 = vmatmul.f32.gmra.mxu0 %v473
      %v1200 = vpop.f32.mrf.mxu0
      %v1201 = vadd.f32 %v1088, %v1200
      %1202 = vmatmul.f32.gmra.mxu0 %v530
      %v1203 = vpop.f32.mrf.mxu0
      %v1204 = vadd.f32 %v1091, %v1203
      %1205 = vmatmul.f32.gmra.mxu0 %v476
      %v1206 = vpop.f32.mrf.mxu0
      %v1207 = vadd.f32 %v1094, %v1206
      %1208 = vmatmul.f32.gmra.mxu0 %v531
      %v1209 = vpop.f32.mrf.mxu0
      %v1210 = vadd.f32 %v1097, %v1209
      %1211 = vmatmul.f32.gmra.mxu0 %v479
      %v1212 = vpop.f32.mrf.mxu0
      %v1213 = vadd.f32 %v1100, %v1212
      %1214 = vmatmul.f32.gmra.mxu0 %v532
      %v1215 = vpop.f32.mrf.mxu0
      %v1216 = vadd.f32 %v1103, %v1215
      %1217 = vmatmul.f32.gmra.mxu0 %v482
      %v1218 = vpop.f32.mrf.mxu0
      %v1219 = vadd.f32 %v1106, %v1218
      %1220 = vmatmul.f32.gmra.mxu0 %v533
      %v1221 = vpop.f32.mrf.mxu0
      %v1222 = vadd.f32 %v1109, %v1221
      %1223 = vmatmul.f32.gmra.mxu0 %v485
      %v1224 = vpop.f32.mrf.mxu0
      %v1225 = vadd.f32 %v1112, %v1224
      %1226 = vdwg.mxu0
      %1227 = vmatpush.msra.mxu0 %v710
      %1228 = vmatpush.msra.mxu0 %v709
      %1229 = vmatpush.msra.mxu0 %v708
      %1230 = vmatpush.msra.mxu0 %v707
      %1231 = vmatpush.msra.mxu0 %v706
      %1232 = vmatpush.msra.mxu0 %v705
      %1233 = vmatpush.msra.mxu0 %v704
      %1234 = vmatpush.msra.mxu0 %v703
      %1235 = vmatpush.msra.mxu0 %v702
      %1236 = vmatpush.msra.mxu0 %v701
      %1237 = vmatpush.msra.mxu0 %v700
      %1238 = vmatpush.msra.mxu0 %v699
      %1239 = vmatpush.msra.mxu0 %v698
      %1240 = vmatpush.msra.mxu0 %v697
      %1241 = vmatpush.msra.mxu0 %v696
      %1242 = vmatpush.msra.mxu0 %v695
      %1243 = vmatmul.f32.gmra.mxu0 %v373
      %v1244 = vpop.f32.mrf.mxu0
      %v1245 = vadd.f32 %v1132, %v1244
      %1246 = vmatmul.f32.gmra.mxu0 %v374
      %v1247 = vpop.f32.mrf.mxu0
      %v1248 = vadd.f32 %v1135, %v1247
      %1249 = vmatmul.f32.gmra.mxu0 %v375
      %v1250 = vpop.f32.mrf.mxu0
      %v1251 = vadd.f32 %v1138, %v1250
      %1252 = vmatmul.f32.gmra.mxu0 %v376
      %v1253 = vpop.f32.mrf.mxu0
      %v1254 = vadd.f32 %v1141, %v1253
      %1255 = vmatmul.f32.gmra.mxu0 %v377
      %v1256 = vpop.f32.mrf.mxu0
      %v1257 = vadd.f32 %v1144, %v1256
      %1258 = vmatmul.f32.gmra.mxu0 %v378
      %v1259 = vpop.f32.mrf.mxu0
      %v1260 = vadd.f32 %v1147, %v1259
      %1261 = vmatmul.f32.gmra.mxu0 %v379
      %v1262 = vpop.f32.mrf.mxu0
      %v1263 = vadd.f32 %v1150, %v1262
      %1264 = vmatmul.f32.gmra.mxu0 %v380
      %v1265 = vpop.f32.mrf.mxu0
      %v1266 = vadd.f32 %v1153, %v1265
      %1267 = vmatmul.f32.gmra.mxu0 %v381
      %v1268 = vpop.f32.mrf.mxu0
      %v1269 = vadd.f32 %v1156, %v1268
      %1270 = vmatmul.f32.gmra.mxu0 %v382
      %v1271 = vpop.f32.mrf.mxu0
      %v1272 = vadd.f32 %v1159, %v1271
      %1273 = vmatmul.f32.gmra.mxu0 %v383
      %v1274 = vpop.f32.mrf.mxu0
      %v1275 = vadd.f32 %v1162, %v1274
      %1276 = vmatmul.f32.gmra.mxu0 %v384
      %v1277 = vpop.f32.mrf.mxu0
      %v1278 = vadd.f32 %v1165, %v1277
      %1279 = vmatmul.f32.gmra.mxu0 %v385
      %v1280 = vpop.f32.mrf.mxu0
      %v1281 = vadd.f32 %v1168, %v1280
      %1282 = vmatmul.f32.gmra.mxu0 %v386
      %v1283 = vpop.f32.mrf.mxu0
      %v1284 = vadd.f32 %v1171, %v1283
      %1285 = vmatmul.f32.gmra.mxu0 %v387
      %v1286 = vpop.f32.mrf.mxu0
      %v1287 = vadd.f32 %v1174, %v1286
      %1288 = vmatmul.f32.gmra.mxu0 %v388
      %v1289 = vpop.f32.mrf.mxu0
      %v1290 = vadd.f32 %v1177, %v1289
      %1291 = vmatmul.f32.gmra.mxu0 %v389
      %v1292 = vpop.f32.mrf.mxu0
      %v1293 = vadd.f32 %v1180, %v1292
      %1294 = vmatmul.f32.gmra.mxu0 %v390
      %v1295 = vpop.f32.mrf.mxu0
      %v1296 = vadd.f32 %v1183, %v1295
      %1297 = vmatmul.f32.gmra.mxu0 %v391
      %v1298 = vpop.f32.mrf.mxu0
      %v1299 = vadd.f32 %v1186, %v1298
      %1300 = vmatmul.f32.gmra.mxu0 %v392
      %v1301 = vpop.f32.mrf.mxu0
      %v1302 = vadd.f32 %v1189, %v1301
      %1303 = vmatmul.f32.gmra.mxu0 %v393
      %v1304 = vpop.f32.mrf.mxu0
      %v1305 = vadd.f32 %v1192, %v1304
      %1306 = vmatmul.f32.gmra.mxu0 %v394
      %v1307 = vpop.f32.mrf.mxu0
      %v1308 = vadd.f32 %v1195, %v1307
      %1309 = vmatmul.f32.gmra.mxu0 %v395
      %v1310 = vpop.f32.mrf.mxu0
      %v1311 = vadd.f32 %v1198, %v1310
      %1312 = vmatmul.f32.gmra.mxu0 %v396
      %v1313 = vpop.f32.mrf.mxu0
      %v1314 = vadd.f32 %v1201, %v1313
      %1315 = vmatmul.f32.gmra.mxu0 %v397
      %v1316 = vpop.f32.mrf.mxu0
      %v1317 = vadd.f32 %v1204, %v1316
      %1318 = vmatmul.f32.gmra.mxu0 %v398
      %v1319 = vpop.f32.mrf.mxu0
      %v1320 = vadd.f32 %v1207, %v1319
      %1321 = vmatmul.f32.gmra.mxu0 %v399
      %v1322 = vpop.f32.mrf.mxu0
      %v1323 = vadd.f32 %v1210, %v1322
      %1324 = vmatmul.f32.gmra.mxu0 %v400
      %v1325 = vpop.f32.mrf.mxu0
      %v1326 = vadd.f32 %v1213, %v1325
      %1327 = vmatmul.f32.gmra.mxu0 %v401
      %v1328 = vpop.f32.mrf.mxu0
      %v1329 = vadd.f32 %v1216, %v1328
      %1330 = vmatmul.f32.gmra.mxu0 %v402
      %v1331 = vpop.f32.mrf.mxu0
      %v1332 = vadd.f32 %v1219, %v1331
      %1333 = vmatmul.f32.gmra.mxu0 %v403
      %v1334 = vpop.f32.mrf.mxu0
      %v1335 = vadd.f32 %v1222, %v1334
      %1336 = vmatmul.f32.gmra.mxu0 %v404
      %v1337 = vpop.f32.mrf.mxu0
      %v1338 = vadd.f32 %v1225, %v1337
      %1339 = vdwg.mxu0
      %1340 = vmatpush.msra.mxu0 %v726
      %1341 = vmatpush.msra.mxu0 %v725
      %1342 = vmatpush.msra.mxu0 %v724
      %1343 = vmatpush.msra.mxu0 %v723
      %1344 = vmatpush.msra.mxu0 %v722
      %1345 = vmatpush.msra.mxu0 %v721
      %1346 = vmatpush.msra.mxu0 %v720
      %1347 = vmatpush.msra.mxu0 %v719
      %1348 = vmatpush.msra.mxu0 %v718
      %1349 = vmatpush.msra.mxu0 %v717
      %1350 = vmatpush.msra.mxu0 %v716
      %1351 = vmatpush.msra.mxu0 %v715
      %1352 = vmatpush.msra.mxu0 %v714
      %1353 = vmatpush.msra.mxu0 %v713
      %1354 = vmatpush.msra.mxu0 %v712
      %1355 = vmatpush.msra.mxu0 %v711
      %1356 = vmatmul.f32.gmra.mxu0 %v537
      %v1357 = vpop.f32.mrf.mxu0
      %v1358 = vadd.f32 %v1245, %v1357
      %1359 = vmatmul.f32.gmra.mxu0 %v615
      %v1360 = vpop.f32.mrf.mxu0
      %v1361 = vadd.f32 %v1248, %v1360
      %1362 = vmatmul.f32.gmra.mxu0 %v540
      %v1363 = vpop.f32.mrf.mxu0
      %v1364 = vadd.f32 %v1251, %v1363
      %1365 = vmatmul.f32.gmra.mxu0 %v616
      %v1366 = vpop.f32.mrf.mxu0
      %v1367 = vadd.f32 %v1254, %v1366
      %1368 = vmatmul.f32.gmra.mxu0 %v543
      %v1369 = vpop.f32.mrf.mxu0
      %v1370 = vadd.f32 %v1257, %v1369
      %1371 = vmatmul.f32.gmra.mxu0 %v617
      %v1372 = vpop.f32.mrf.mxu0
      %v1373 = vadd.f32 %v1260, %v1372
      %1374 = vmatmul.f32.gmra.mxu0 %v546
      %v1375 = vpop.f32.mrf.mxu0
      %v1376 = vadd.f32 %v1263, %v1375
      %1377 = vmatmul.f32.gmra.mxu0 %v618
      %v1378 = vpop.f32.mrf.mxu0
      %v1379 = vadd.f32 %v1266, %v1378
      %1380 = vmatmul.f32.gmra.mxu0 %v549
      %v1381 = vpop.f32.mrf.mxu0
      %v1382 = vadd.f32 %v1269, %v1381
      %1383 = vmatmul.f32.gmra.mxu0 %v619
      %v1384 = vpop.f32.mrf.mxu0
      %v1385 = vadd.f32 %v1272, %v1384
      %1386 = vmatmul.f32.gmra.mxu0 %v552
      %v1387 = vpop.f32.mrf.mxu0
      %v1388 = vadd.f32 %v1275, %v1387
      %1389 = vmatmul.f32.gmra.mxu0 %v620
      %v1390 = vpop.f32.mrf.mxu0
      %v1391 = vadd.f32 %v1278, %v1390
      %1392 = vmatmul.f32.gmra.mxu0 %v555
      %v1393 = vpop.f32.mrf.mxu0
      %v1394 = vadd.f32 %v1281, %v1393
      %1395 = vmatmul.f32.gmra.mxu0 %v621
      %v1396 = vpop.f32.mrf.mxu0
      %v1397 = vadd.f32 %v1284, %v1396
      %1398 = vmatmul.f32.gmra.mxu0 %v558
      %v1399 = vpop.f32.mrf.mxu0
      %v1400 = vadd.f32 %v1287, %v1399
      %1401 = vmatmul.f32.gmra.mxu0 %v622
      %v1402 = vpop.f32.mrf.mxu0
      %v1403 = vadd.f32 %v1290, %v1402
      %1404 = vmatmul.f32.gmra.mxu0 %v561
      %v1405 = vpop.f32.mrf.mxu0
      %v1406 = vadd.f32 %v1293, %v1405
      %1407 = vmatmul.f32.gmra.mxu0 %v623
      %v1408 = vpop.f32.mrf.mxu0
      %v1409 = vadd.f32 %v1296, %v1408
      %1410 = vmatmul.f32.gmra.mxu0 %v564
      %v1411 = vpop.f32.mrf.mxu0
      %v1412 = vadd.f32 %v1299, %v1411
      %1413 = vmatmul.f32.gmra.mxu0 %v624
      %v1414 = vpop.f32.mrf.mxu0
      %v1415 = vadd.f32 %v1302, %v1414
      %1416 = vmatmul.f32.gmra.mxu0 %v567
      %v1417 = vpop.f32.mrf.mxu0
      %v1418 = vadd.f32 %v1305, %v1417
      %1419 = vmatmul.f32.gmra.mxu0 %v625
      %v1420 = vpop.f32.mrf.mxu0
      %v1421 = vadd.f32 %v1308, %v1420
      %1422 = vmatmul.f32.gmra.mxu0 %v570
      %v1423 = vpop.f32.mrf.mxu0
      %v1424 = vadd.f32 %v1311, %v1423
      %1425 = vmatmul.f32.gmra.mxu0 %v626
      %v1426 = vpop.f32.mrf.mxu0
      %v1427 = vadd.f32 %v1314, %v1426
      %1428 = vmatmul.f32.gmra.mxu0 %v573
      %v1429 = vpop.f32.mrf.mxu0
      %v1430 = vadd.f32 %v1317, %v1429
      %1431 = vmatmul.f32.gmra.mxu0 %v627
      %v1432 = vpop.f32.mrf.mxu0
      %v1433 = vadd.f32 %v1320, %v1432
      %1434 = vmatmul.f32.gmra.mxu0 %v576
      %v1435 = vpop.f32.mrf.mxu0
      %v1436 = vadd.f32 %v1323, %v1435
      %1437 = vmatmul.f32.gmra.mxu0 %v628
      %v1438 = vpop.f32.mrf.mxu0
      %v1439 = vadd.f32 %v1326, %v1438
      %1440 = vmatmul.f32.gmra.mxu0 %v579
      %v1441 = vpop.f32.mrf.mxu0
      %v1442 = vadd.f32 %v1329, %v1441
      %1443 = vmatmul.f32.gmra.mxu0 %v629
      %v1444 = vpop.f32.mrf.mxu0
      %v1445 = vadd.f32 %v1332, %v1444
      %1446 = vmatmul.f32.gmra.mxu0 %v582
      %v1447 = vpop.f32.mrf.mxu0
      %v1448 = vadd.f32 %v1335, %v1447
      %1449 = vmatmul.f32.gmra.mxu0 %v630
      %v1450 = vpop.f32.mrf.mxu0
      %v1451 = vadd.f32 %v1338, %v1450
      %1452 = vdwg.mxu0
      %1453 = vmatpush.msra.mxu0 %v742
      %1454 = vmatpush.msra.mxu0 %v741
      %1455 = vmatpush.msra.mxu0 %v740
      %1456 = vmatpush.msra.mxu0 %v739
      %1457 = vmatpush.msra.mxu0 %v738
      %1458 = vmatpush.msra.mxu0 %v737
      %1459 = vmatpush.msra.mxu0 %v736
      %1460 = vmatpush.msra.mxu0 %v735
      %1461 = vmatpush.msra.mxu0 %v734
      %1462 = vmatpush.msra.mxu0 %v733
      %1463 = vmatpush.msra.mxu0 %v732
      %1464 = vmatpush.msra.mxu0 %v731
      %1465 = vmatpush.msra.mxu0 %v730
      %1466 = vmatpush.msra.mxu0 %v729
      %1467 = vmatpush.msra.mxu0 %v728
      %1468 = vmatpush.msra.mxu0 %v727
      %1469 = vmatmul.f32.gmra.mxu0 %v519
      %v1470 = vpop.f32.mrf.mxu0
      %v1471 = vadd.f32 %v1358, %v1470
      %1472 = vmatmul.f32.gmra.mxu0 %v443
      %v1473 = vpop.f32.mrf.mxu0
      %v1474 = vadd.f32 %v1361, %v1473
      %1475 = vmatmul.f32.gmra.mxu0 %v520
      %v1476 = vpop.f32.mrf.mxu0
      %v1477 = vadd.f32 %v1364, %v1476
      %1478 = vmatmul.f32.gmra.mxu0 %v446
      %v1479 = vpop.f32.mrf.mxu0
      %v1480 = vadd.f32 %v1367, %v1479
      %1481 = vmatmul.f32.gmra.mxu0 %v521
      %v1482 = vpop.f32.mrf.mxu0
      %v1483 = vadd.f32 %v1370, %v1482
      %1484 = vmatmul.f32.gmra.mxu0 %v449
      %v1485 = vpop.f32.mrf.mxu0
      %v1486 = vadd.f32 %v1373, %v1485
      %1487 = vmatmul.f32.gmra.mxu0 %v522
      %v1488 = vpop.f32.mrf.mxu0
      %v1489 = vadd.f32 %v1376, %v1488
      %1490 = vmatmul.f32.gmra.mxu0 %v452
      %v1491 = vpop.f32.mrf.mxu0
      %v1492 = vadd.f32 %v1379, %v1491
      %1493 = vmatmul.f32.gmra.mxu0 %v523
      %v1494 = vpop.f32.mrf.mxu0
      %v1495 = vadd.f32 %v1382, %v1494
      %1496 = vmatmul.f32.gmra.mxu0 %v455
      %v1497 = vpop.f32.mrf.mxu0
      %v1498 = vadd.f32 %v1385, %v1497
      %1499 = vmatmul.f32.gmra.mxu0 %v524
      %v1500 = vpop.f32.mrf.mxu0
      %v1501 = vadd.f32 %v1388, %v1500
      %1502 = vmatmul.f32.gmra.mxu0 %v458
      %v1503 = vpop.f32.mrf.mxu0
      %v1504 = vadd.f32 %v1391, %v1503
      %1505 = vmatmul.f32.gmra.mxu0 %v525
      %v1506 = vpop.f32.mrf.mxu0
      %v1507 = vadd.f32 %v1394, %v1506
      %1508 = vmatmul.f32.gmra.mxu0 %v461
      %v1509 = vpop.f32.mrf.mxu0
      %v1510 = vadd.f32 %v1397, %v1509
      %1511 = vmatmul.f32.gmra.mxu0 %v526
      %v1512 = vpop.f32.mrf.mxu0
      %v1513 = vadd.f32 %v1400, %v1512
      %1514 = vmatmul.f32.gmra.mxu0 %v464
      %v1515 = vpop.f32.mrf.mxu0
      %v1516 = vadd.f32 %v1403, %v1515
      %1517 = vmatmul.f32.gmra.mxu0 %v527
      %v1518 = vpop.f32.mrf.mxu0
      %v1519 = vadd.f32 %v1406, %v1518
      %1520 = vmatmul.f32.gmra.mxu0 %v467
      %v1521 = vpop.f32.mrf.mxu0
      %v1522 = vadd.f32 %v1409, %v1521
      %1523 = vmatmul.f32.gmra.mxu0 %v528
      %v1524 = vpop.f32.mrf.mxu0
      %v1525 = vadd.f32 %v1412, %v1524
      %1526 = vmatmul.f32.gmra.mxu0 %v470
      %v1527 = vpop.f32.mrf.mxu0
      %v1528 = vadd.f32 %v1415, %v1527
      %1529 = vmatmul.f32.gmra.mxu0 %v529
      %v1530 = vpop.f32.mrf.mxu0
      %v1531 = vadd.f32 %v1418, %v1530
      %1532 = vmatmul.f32.gmra.mxu0 %v473
      %v1533 = vpop.f32.mrf.mxu0
      %v1534 = vadd.f32 %v1421, %v1533
      %1535 = vmatmul.f32.gmra.mxu0 %v530
      %v1536 = vpop.f32.mrf.mxu0
      %v1537 = vadd.f32 %v1424, %v1536
      %1538 = vmatmul.f32.gmra.mxu0 %v476
      %v1539 = vpop.f32.mrf.mxu0
      %v1540 = vadd.f32 %v1427, %v1539
      %1541 = vmatmul.f32.gmra.mxu0 %v531
      %v1542 = vpop.f32.mrf.mxu0
      %v1543 = vadd.f32 %v1430, %v1542
      %1544 = vmatmul.f32.gmra.mxu0 %v479
      %v1545 = vpop.f32.mrf.mxu0
      %v1546 = vadd.f32 %v1433, %v1545
      %1547 = vmatmul.f32.gmra.mxu0 %v532
      %v1548 = vpop.f32.mrf.mxu0
      %v1549 = vadd.f32 %v1436, %v1548
      %1550 = vmatmul.f32.gmra.mxu0 %v482
      %v1551 = vpop.f32.mrf.mxu0
      %v1552 = vadd.f32 %v1439, %v1551
      %1553 = vmatmul.f32.gmra.mxu0 %v533
      %v1554 = vpop.f32.mrf.mxu0
      %v1555 = vadd.f32 %v1442, %v1554
      %1556 = vmatmul.f32.gmra.mxu0 %v485
      %v1557 = vpop.f32.mrf.mxu0
      %v1558 = vadd.f32 %v1445, %v1557
      %1559 = vmatmul.f32.gmra.mxu0 0.0
      %v1560 = vpop.f32.mrf.mxu0
      %v1561 = vadd.f32 %v1448, %v1560
      %1562 = vmatmul.f32.gmra.mxu0 0.0
      %v1563 = vpop.f32.mrf.mxu0
      %v1564 = vadd.f32 %v1451, %v1563
      %1565 = vdwg.mxu0
      %1566 = vmatpush.msra.mxu0 %v758
      %1567 = vmatpush.msra.mxu0 %v757
      %1568 = vmatpush.msra.mxu0 %v756
      %1569 = vmatpush.msra.mxu0 %v755
      %1570 = vmatpush.msra.mxu0 %v754
      %1571 = vmatpush.msra.mxu0 %v753
      %1572 = vmatpush.msra.mxu0 %v752
      %1573 = vmatpush.msra.mxu0 %v751
      %1574 = vmatpush.msra.mxu0 %v750
      %1575 = vmatpush.msra.mxu0 %v749
      %1576 = vmatpush.msra.mxu0 %v748
      %1577 = vmatpush.msra.mxu0 %v747
      %1578 = vmatpush.msra.mxu0 %v746
      %1579 = vmatpush.msra.mxu0 %v745
      %1580 = vmatpush.msra.mxu0 %v744
      %1581 = vmatpush.msra.mxu0 %v743
      %1582 = vmatmul.f32.gmra.mxu0 %v375
      %v1583 = vpop.f32.mrf.mxu0
      %v1584 = vadd.f32 %v1471, %v1583
      %1585 = vmatmul.f32.gmra.mxu0 %v376
      %v1586 = vpop.f32.mrf.mxu0
      %v1587 = vadd.f32 %v1474, %v1586
      %1588 = vmatmul.f32.gmra.mxu0 %v377
      %v1589 = vpop.f32.mrf.mxu0
      %v1590 = vadd.f32 %v1477, %v1589
      %1591 = vmatmul.f32.gmra.mxu0 %v378
      %v1592 = vpop.f32.mrf.mxu0
      %v1593 = vadd.f32 %v1480, %v1592
      %1594 = vmatmul.f32.gmra.mxu0 %v379
      %v1595 = vpop.f32.mrf.mxu0
      %v1596 = vadd.f32 %v1483, %v1595
      %1597 = vmatmul.f32.gmra.mxu0 %v380
      %v1598 = vpop.f32.mrf.mxu0
      %v1599 = vadd.f32 %v1486, %v1598
      %1600 = vmatmul.f32.gmra.mxu0 %v381
      %v1601 = vpop.f32.mrf.mxu0
      %v1602 = vadd.f32 %v1489, %v1601
      %1603 = vmatmul.f32.gmra.mxu0 %v382
      %v1604 = vpop.f32.mrf.mxu0
      %v1605 = vadd.f32 %v1492, %v1604
      %1606 = vmatmul.f32.gmra.mxu0 %v383
      %v1607 = vpop.f32.mrf.mxu0
      %v1608 = vadd.f32 %v1495, %v1607
      %1609 = vmatmul.f32.gmra.mxu0 %v384
      %v1610 = vpop.f32.mrf.mxu0
      %v1611 = vadd.f32 %v1498, %v1610
      %1612 = vmatmul.f32.gmra.mxu0 %v385
      %v1613 = vpop.f32.mrf.mxu0
      %v1614 = vadd.f32 %v1501, %v1613
      %1615 = vmatmul.f32.gmra.mxu0 %v386
      %v1616 = vpop.f32.mrf.mxu0
      %v1617 = vadd.f32 %v1504, %v1616
      %1618 = vmatmul.f32.gmra.mxu0 %v387
      %v1619 = vpop.f32.mrf.mxu0
      %v1620 = vadd.f32 %v1507, %v1619
      %1621 = vmatmul.f32.gmra.mxu0 %v388
      %v1622 = vpop.f32.mrf.mxu0
      %v1623 = vadd.f32 %v1510, %v1622
      %1624 = vmatmul.f32.gmra.mxu0 %v389
      %v1625 = vpop.f32.mrf.mxu0
      %v1626 = vadd.f32 %v1513, %v1625
      %1627 = vmatmul.f32.gmra.mxu0 %v390
      %v1628 = vpop.f32.mrf.mxu0
      %v1629 = vadd.f32 %v1516, %v1628
      %1630 = vmatmul.f32.gmra.mxu0 %v391
      %v1631 = vpop.f32.mrf.mxu0
      %v1632 = vadd.f32 %v1519, %v1631
      %1633 = vmatmul.f32.gmra.mxu0 %v392
      %v1634 = vpop.f32.mrf.mxu0
      %v1635 = vadd.f32 %v1522, %v1634
      %1636 = vmatmul.f32.gmra.mxu0 %v393
      %v1637 = vpop.f32.mrf.mxu0
      %v1638 = vadd.f32 %v1525, %v1637
      %1639 = vmatmul.f32.gmra.mxu0 %v394
      %v1640 = vpop.f32.mrf.mxu0
      %v1641 = vadd.f32 %v1528, %v1640
      %1642 = vmatmul.f32.gmra.mxu0 %v395
      %v1643 = vpop.f32.mrf.mxu0
      %v1644 = vadd.f32 %v1531, %v1643
      %1645 = vmatmul.f32.gmra.mxu0 %v396
      %v1646 = vpop.f32.mrf.mxu0
      %v1647 = vadd.f32 %v1534, %v1646
      %1648 = vmatmul.f32.gmra.mxu0 %v397
      %v1649 = vpop.f32.mrf.mxu0
      %v1650 = vadd.f32 %v1537, %v1649
      %1651 = vmatmul.f32.gmra.mxu0 %v398
      %v1652 = vpop.f32.mrf.mxu0
      %v1653 = vadd.f32 %v1540, %v1652
      %1654 = vmatmul.f32.gmra.mxu0 %v399
      %v1655 = vpop.f32.mrf.mxu0
      %v1656 = vadd.f32 %v1543, %v1655
      %1657 = vmatmul.f32.gmra.mxu0 %v400
      %v1658 = vpop.f32.mrf.mxu0
      %v1659 = vadd.f32 %v1546, %v1658
      %1660 = vmatmul.f32.gmra.mxu0 %v401
      %v1661 = vpop.f32.mrf.mxu0
      %v1662 = vadd.f32 %v1549, %v1661
      %1663 = vmatmul.f32.gmra.mxu0 %v402
      %v1664 = vpop.f32.mrf.mxu0
      %v1665 = vadd.f32 %v1552, %v1664
      %1666 = vmatmul.f32.gmra.mxu0 %v403
      %v1667 = vpop.f32.mrf.mxu0
      %v1668 = vadd.f32 %v1555, %v1667
      %1669 = vmatmul.f32.gmra.mxu0 %v404
      %v1670 = vpop.f32.mrf.mxu0
      %v1671 = vadd.f32 %v1558, %v1670
      %1672 = vmatmul.f32.gmra.mxu0 0.0
      %v1673 = vpop.f32.mrf.mxu0
      %v1674 = vadd.f32 %v1561, %v1673
      %1675 = vmatmul.f32.gmra.mxu0 0.0
      %v1676 = vpop.f32.mrf.mxu0
      %v1677 = vadd.f32 %v1564, %v1676
      %1678 = vdwg.mxu0
      %1679 = vmatpush.msra.mxu0 %v774
      %1680 = vmatpush.msra.mxu0 %v773
      %1681 = vmatpush.msra.mxu0 %v772
      %1682 = vmatpush.msra.mxu0 %v771
      %1683 = vmatpush.msra.mxu0 %v770
      %1684 = vmatpush.msra.mxu0 %v769
      %1685 = vmatpush.msra.mxu0 %v768
      %1686 = vmatpush.msra.mxu0 %v767
      %1687 = vmatpush.msra.mxu0 %v766
      %1688 = vmatpush.msra.mxu0 %v765
      %1689 = vmatpush.msra.mxu0 %v764
      %1690 = vmatpush.msra.mxu0 %v763
      %1691 = vmatpush.msra.mxu0 %v762
      %1692 = vmatpush.msra.mxu0 %v761
      %1693 = vmatpush.msra.mxu0 %v760
      %1694 = vmatpush.msra.mxu0 %v759
      %1695 = vmatmul.f32.gmra.mxu0 %v540
      %v1696 = vpop.f32.mrf.mxu0
      %v1697 = vadd.f32 %v1584, %v1696
      %1698 = vmatmul.f32.gmra.mxu0 %v616
      %v1699 = vpop.f32.mrf.mxu0
      %v1700 = vadd.f32 %v1587, %v1699
      %1701 = vmatmul.f32.gmra.mxu0 %v543
      %v1702 = vpop.f32.mrf.mxu0
      %v1703 = vadd.f32 %v1590, %v1702
      %1704 = vmatmul.f32.gmra.mxu0 %v617
      %v1705 = vpop.f32.mrf.mxu0
      %v1706 = vadd.f32 %v1593, %v1705
      %1707 = vmatmul.f32.gmra.mxu0 %v546
      %v1708 = vpop.f32.mrf.mxu0
      %v1709 = vadd.f32 %v1596, %v1708
      %1710 = vmatmul.f32.gmra.mxu0 %v618
      %v1711 = vpop.f32.mrf.mxu0
      %v1712 = vadd.f32 %v1599, %v1711
      %1713 = vmatmul.f32.gmra.mxu0 %v549
      %v1714 = vpop.f32.mrf.mxu0
      %v1715 = vadd.f32 %v1602, %v1714
      %1716 = vmatmul.f32.gmra.mxu0 %v619
      %v1717 = vpop.f32.mrf.mxu0
      %v1718 = vadd.f32 %v1605, %v1717
      %1719 = vmatmul.f32.gmra.mxu0 %v552
      %v1720 = vpop.f32.mrf.mxu0
      %v1721 = vadd.f32 %v1608, %v1720
      %1722 = vmatmul.f32.gmra.mxu0 %v620
      %v1723 = vpop.f32.mrf.mxu0
      %v1724 = vadd.f32 %v1611, %v1723
      %1725 = vmatmul.f32.gmra.mxu0 %v555
      %v1726 = vpop.f32.mrf.mxu0
      %v1727 = vadd.f32 %v1614, %v1726
      %1728 = vmatmul.f32.gmra.mxu0 %v621
      %v1729 = vpop.f32.mrf.mxu0
      %v1730 = vadd.f32 %v1617, %v1729
      %1731 = vmatmul.f32.gmra.mxu0 %v558
      %v1732 = vpop.f32.mrf.mxu0
      %v1733 = vadd.f32 %v1620, %v1732
      %1734 = vmatmul.f32.gmra.mxu0 %v622
      %v1735 = vpop.f32.mrf.mxu0
      %v1736 = vadd.f32 %v1623, %v1735
      %1737 = vmatmul.f32.gmra.mxu0 %v561
      %v1738 = vpop.f32.mrf.mxu0
      %v1739 = vadd.f32 %v1626, %v1738
      %1740 = vmatmul.f32.gmra.mxu0 %v623
      %v1741 = vpop.f32.mrf.mxu0
      %v1742 = vadd.f32 %v1629, %v1741
      %1743 = vmatmul.f32.gmra.mxu0 %v564
      %v1744 = vpop.f32.mrf.mxu0
      %v1745 = vadd.f32 %v1632, %v1744
      %1746 = vmatmul.f32.gmra.mxu0 %v624
      %v1747 = vpop.f32.mrf.mxu0
      %v1748 = vadd.f32 %v1635, %v1747
      %1749 = vmatmul.f32.gmra.mxu0 %v567
      %v1750 = vpop.f32.mrf.mxu0
      %v1751 = vadd.f32 %v1638, %v1750
      %1752 = vmatmul.f32.gmra.mxu0 %v625
      %v1753 = vpop.f32.mrf.mxu0
      %v1754 = vadd.f32 %v1641, %v1753
      %1755 = vmatmul.f32.gmra.mxu0 %v570
      %v1756 = vpop.f32.mrf.mxu0
      %v1757 = vadd.f32 %v1644, %v1756
      %1758 = vmatmul.f32.gmra.mxu0 %v626
      %v1759 = vpop.f32.mrf.mxu0
      %v1760 = vadd.f32 %v1647, %v1759
      %1761 = vmatmul.f32.gmra.mxu0 %v573
      %v1762 = vpop.f32.mrf.mxu0
      %v1763 = vadd.f32 %v1650, %v1762
      %1764 = vmatmul.f32.gmra.mxu0 %v627
      %v1765 = vpop.f32.mrf.mxu0
      %v1766 = vadd.f32 %v1653, %v1765
      %1767 = vmatmul.f32.gmra.mxu0 %v576
      %v1768 = vpop.f32.mrf.mxu0
      %v1769 = vadd.f32 %v1656, %v1768
      %1770 = vmatmul.f32.gmra.mxu0 %v628
      %v1771 = vpop.f32.mrf.mxu0
      %v1772 = vadd.f32 %v1659, %v1771
      %1773 = vmatmul.f32.gmra.mxu0 %v579
      %v1774 = vpop.f32.mrf.mxu0
      %v1775 = vadd.f32 %v1662, %v1774
      %1776 = vmatmul.f32.gmra.mxu0 %v629
      %v1777 = vpop.f32.mrf.mxu0
      %v1778 = vadd.f32 %v1665, %v1777
      %1779 = vmatmul.f32.gmra.mxu0 %v582
      %v1780 = vpop.f32.mrf.mxu0
      %v1781 = vadd.f32 %v1668, %v1780
      %1782 = vmatmul.f32.gmra.mxu0 %v630
      %v1783 = vpop.f32.mrf.mxu0
      %v1784 = vadd.f32 %v1671, %v1783
      %1785 = vmatmul.f32.gmra.mxu0 0.0
      %v1786 = vpop.f32.mrf.mxu0
      %v1787 = vadd.f32 %v1674, %v1786
      %1788 = vmatmul.f32.gmra.mxu0 0.0
      %v1789 = vpop.f32.mrf.mxu0
      %v1790 = vadd.f32 %v1677, %v1789
      %1791 = vdwg.mxu0
      %1792 = vst [vmem:[%s262] sm:$0xff] %v1697
      %1793 = vst [vmem:[%s262 + $0x8] sm:$0xff] %v1700
      %1794 = vst [vmem:[%s262 + $0x10] sm:$0xff] %v1703
      %1795 = vst [vmem:[%s262 + $0x18] sm:$0xff] %v1706
      %1796 = vst [vmem:[%s262 + $0x20] sm:$0xff] %v1709
      %1797 = vst [vmem:[%s262 + $0x28] sm:$0xff] %v1712
      %1798 = vst [vmem:[%s262 + $0x30] sm:$0xff] %v1715
      %1799 = vst [vmem:[%s262 + $0x38] sm:$0xff] %v1718
      %1800 = vst [vmem:[%s262 + $0x40] sm:$0xff] %v1721
      %1801 = vst [vmem:[%s262 + $0x48] sm:$0xff] %v1724
      %1802 = vst [vmem:[%s262 + $0x50] sm:$0xff] %v1727
      %1803 = vst [vmem:[%s262 + $0x58] sm:$0xff] %v1730
      %1804 = vst [vmem:[%s262 + $0x60] sm:$0xff] %v1733
      %1805 = vst [vmem:[%s262 + $0x68] sm:$0xff] %v1736
      %1806 = vst [vmem:[%s262 + $0x70] sm:$0xff] %v1739
      %1807 = vst [vmem:[%s262 + $0x78] sm:$0xff] %v1742
      %1808 = vst [vmem:[%s262 + $0x80] sm:$0xff] %v1745
      %1809 = vst [vmem:[%s262 + $0x88] sm:$0xff] %v1748
      %1810 = vst [vmem:[%s262 + $0x90] sm:$0xff] %v1751
      %1811 = vst [vmem:[%s262 + $0x98] sm:$0xff] %v1754
      %1812 = vst [vmem:[%s262 + $0xa0] sm:$0xff] %v1757
      %1813 = vst [vmem:[%s262 + $0xa8] sm:$0xff] %v1760
      %1814 = vst [vmem:[%s262 + $0xb0] sm:$0xff] %v1763
      %1815 = vst [vmem:[%s262 + $0xb8] sm:$0xff] %v1766
      %1816 = vst [vmem:[%s262 + $0xc0] sm:$0xff] %v1769
      %1817 = vst [vmem:[%s262 + $0xc8] sm:$0xff] %v1772
      %1818 = vst [vmem:[%s262 + $0xd0] sm:$0xff] %v1775
      %1819 = vst [vmem:[%s262 + $0xd8] sm:$0xff] %v1778
      %1820 = vst [vmem:[%s262 + $0xe0] sm:$0xff] %v1781
      %1821 = vst [vmem:[%s262 + $0xe8] sm:$0xff] %v1784
      %1822 = vst [vmem:[%s262 + $0xf0] sm:$0xff] %v1787
      %1823 = vst [vmem:[%s262 + $0xf8] sm:$0xff] %v1790
      %v1824 = vadd.f32 %v1697, %v1700
      %v1825 = vadd.f32 %v1824, %v1703
      %v1826 = vadd.f32 %v1825, %v1706
      %v1827 = vadd.f32 %v1826, %v1709
      %v1828 = vadd.f32 %v1827, %v1712
      %v1829 = vadd.f32 %v1828, %v1715
      %v1830 = vadd.f32 %v1829, %v1718
      %v1831 = vadd.f32 %v1830, %v1721
      %v1832 = vadd.f32 %v1831, %v1724
      %v1833 = vadd.f32 %v1832, %v1727
      %v1834 = vadd.f32 %v1833, %v1730
      %v1835 = vadd.f32 %v1834, %v1733
      %v1836 = vadd.f32 %v1835, %v1736
      %v1837 = vadd.f32 %v1836, %v1739
      %v1838 = vadd.f32 %v1837, %v1742
      %v1839 = vadd.f32 %v1838, %v1745
      %v1840 = vadd.f32 %v1839, %v1748
      %v1841 = vadd.f32 %v1840, %v1751
      %v1842 = vadd.f32 %v1841, %v1754
      %v1843 = vadd.f32 %v1842, %v1757
      %v1844 = vadd.f32 %v1843, %v1760
      %v1845 = vadd.f32 %v1844, %v1763
      %v1846 = vadd.f32 %v1845, %v1766
      %v1847 = vadd.f32 %v1846, %v1769
      %v1848 = vadd.f32 %v1847, %v1772
      %v1849 = vadd.f32 %v1848, %v1775
      %v1850 = vadd.f32 %v1849, %v1778
      %v1851 = vadd.f32 %v1850, %v1781
      %v1852 = vadd.f32 %v1851, %v1784
      %v1853 = vadd.f32 %v1852, %v1787
      %v1854 = vadd.f32 %v1853, %v1790
      %v1855 = vrot.slane %v1854, 4
      %v1856 = vadd.f32 %v1854, %v1855
      %v1857 = vrot.slane %v1856, 2
      %v1858 = vadd.f32 %v1856, %v1857
      %v1859 = vrot.slane %v1858, 1
      %v1860 = vadd.f32 %v1858, %v1859
      %1861 = vst [vmem:[%s265] sm:$0x1] %v1860
      %v1862 = vmul.f32 %v1697, %v1697
      %v1863 = vmul.f32 %v1700, %v1700
      %v1864 = vmul.f32 %v1703, %v1703
      %v1865 = vmul.f32 %v1706, %v1706
      %v1866 = vmul.f32 %v1709, %v1709
      %v1867 = vmul.f32 %v1712, %v1712
      %v1868 = vmul.f32 %v1715, %v1715
      %v1869 = vmul.f32 %v1718, %v1718
      %v1870 = vmul.f32 %v1721, %v1721
      %v1871 = vmul.f32 %v1724, %v1724
      %v1872 = vmul.f32 %v1727, %v1727
      %v1873 = vmul.f32 %v1730, %v1730
      %v1874 = vmul.f32 %v1733, %v1733
      %v1875 = vmul.f32 %v1736, %v1736
      %v1876 = vmul.f32 %v1739, %v1739
      %v1877 = vmul.f32 %v1742, %v1742
      %v1878 = vmul.f32 %v1745, %v1745
      %v1879 = vmul.f32 %v1748, %v1748
      %v1880 = vmul.f32 %v1751, %v1751
      %v1881 = vmul.f32 %v1754, %v1754
      %v1882 = vmul.f32 %v1757, %v1757
      %v1883 = vmul.f32 %v1760, %v1760
      %v1884 = vmul.f32 %v1763, %v1763
      %v1885 = vmul.f32 %v1766, %v1766
      %v1886 = vmul.f32 %v1769, %v1769
      %v1887 = vmul.f32 %v1772, %v1772
      %v1888 = vmul.f32 %v1775, %v1775
      %v1889 = vmul.f32 %v1778, %v1778
      %v1890 = vmul.f32 %v1781, %v1781
      %v1891 = vmul.f32 %v1784, %v1784
      %v1892 = vmul.f32 %v1787, %v1787
      %v1893 = vmul.f32 %v1790, %v1790
      %v1894 = vadd.f32 %v1862, %v1863
      %v1895 = vadd.f32 %v1894, %v1864
      %v1896 = vadd.f32 %v1895, %v1865
      %v1897 = vadd.f32 %v1896, %v1866
      %v1898 = vadd.f32 %v1897, %v1867
      %v1899 = vadd.f32 %v1898, %v1868
      %v1900 = vadd.f32 %v1899, %v1869
      %v1901 = vadd.f32 %v1900, %v1870
      %v1902 = vadd.f32 %v1901, %v1871
      %v1903 = vadd.f32 %v1902, %v1872
      %v1904 = vadd.f32 %v1903, %v1873
      %v1905 = vadd.f32 %v1904, %v1874
      %v1906 = vadd.f32 %v1905, %v1875
      %v1907 = vadd.f32 %v1906, %v1876
      %v1908 = vadd.f32 %v1907, %v1877
      %v1909 = vadd.f32 %v1908, %v1878
      %v1910 = vadd.f32 %v1909, %v1879
      %v1911 = vadd.f32 %v1910, %v1880
      %v1912 = vadd.f32 %v1911, %v1881
      %v1913 = vadd.f32 %v1912, %v1882
      %v1914 = vadd.f32 %v1913, %v1883
      %v1915 = vadd.f32 %v1914, %v1884
      %v1916 = vadd.f32 %v1915, %v1885
      %v1917 = vadd.f32 %v1916, %v1886
      %v1918 = vadd.f32 %v1917, %v1887
      %v1919 = vadd.f32 %v1918, %v1888
      %v1920 = vadd.f32 %v1919, %v1889
      %v1921 = vadd.f32 %v1920, %v1890
      %v1922 = vadd.f32 %v1921, %v1891
      %v1923 = vadd.f32 %v1922, %v1892
      %v1924 = vadd.f32 %v1923, %v1893
      %v1925 = vrot.slane %v1924, 4
      %v1926 = vadd.f32 %v1924, %v1925
      %v1927 = vrot.slane %v1926, 2
      %v1928 = vadd.f32 %v1926, %v1927
      %v1929 = vrot.slane %v1928, 1
      %v1930 = vadd.f32 %v1928, %v1929
      %1931 = vst [vmem:[%s268] sm:$0x1] %v1930
      %p1932 = scmp.lt.s32.totalorder %s18, 1
      %s1933 = scalar_select %p1932, %s18, 1
      %s1934 = smul.addr %s1933, 32
      %s1935 = smul.addr %s1934, 8
      %s1936 = scalar_lea.vmem %s4, %s1935
      %p1937 = scmp.lt.s32.totalorder %s18, 1
      %s1938 = scalar_select %p1937, %s18, 1
      %s1939 = scalar_lea.vmem %s5, %s1938
      %p1940 = scmp.lt.s32.totalorder %s18, 1
      %s1941 = scalar_select %p1940, %s18, 1
      %s1942 = scalar_lea.vmem %s6, %s1941
      // Predicated region
      $region37: #{_lambda_.5} parent=35 // pred_check
        %p1943 = pneg %p125
      $region38: #{_lambda_.5} parent=35 // pred_check_branch
        %1945 = sbr.rel (%p1943) target = $region40
      $region39: #{_lambda_.5} parent=35 // pred_region
        _
      $region40: #{_lambda_.5} parent=35 // pred_fallthru
        _
      // Predicated region
      $region41: #{_lambda_.5} parent=35 // pred_check
        %p1946 = pneg %p151
      $region42: #{_lambda_.5} parent=35 // pred_check_branch
        %1948 = sbr.rel (%p1946) target = $region44
      $region43: #{_lambda_.5} parent=35 // pred_region
        _
      $region44: #{_lambda_.5} parent=35 // pred_fallthru
        _
      // Predicated region
      $region45: #{_lambda_.5} parent=35 // pred_check
        %p1949 = pneg %p177
      $region46: #{_lambda_.5} parent=35 // pred_check_branch
        %1951 = sbr.rel (%p1949) target = $region48
      $region47: #{_lambda_.5} parent=35 // pred_region
        _
      $region48: #{_lambda_.5} parent=35 // pred_fallthru
        _
    $region36: #{_lambda_.5} parent=5 // pred_fallthru
      _
    %p1952 = scmp.le.s32.totalorder 2, %s13
    // Predicated region
    $region49: #{_lambda_.5} parent=5 // pred_check
      %p1953 = pneg %p1952
    $region50: #{_lambda_.5} parent=5 // pred_check_branch
      %1955 = sbr.rel (%p1953) target = $region52
    $region51: #{_lambda_.5} parent=5 // pred_region
      %s1956 = ssub.s32 %s13, 2
      // Predicated region
      $region53: #{_lambda_.5} parent=51 // pred_check
        %p1957 = pneg %p131
      $region54: #{_lambda_.5} parent=51 // pred_check_branch
        %1959 = sbr.rel (%p1957) target = $region56
      $region55: #{_lambda_.5} parent=51 // pred_region
        %p1960 = scmp.lt.s32.totalorder %s19, 1
        %s1961 = scalar_select %p1960, %s19, 1
        %s1962 = smul.addr %s1961, 32
        %s1963 = smul.addr %s1962, 8
        %s1964 = scalar_lea.vmem %s4, %s1963
      $region56: #{_lambda_.5} parent=51 // pred_fallthru
        _
      // Predicated region
      $region57: #{_lambda_.5} parent=51 // pred_check
        %p1965 = pneg %p157
      $region58: #{_lambda_.5} parent=51 // pred_check_branch
        %1967 = sbr.rel (%p1965) target = $region60
      $region59: #{_lambda_.5} parent=51 // pred_region
        %p1968 = scmp.lt.s32.totalorder %s19, 1
        %s1969 = scalar_select %p1968, %s19, 1
        %s1970 = scalar_lea.vmem %s5, %s1969
      $region60: #{_lambda_.5} parent=51 // pred_fallthru
        _
      // Predicated region
      $region61: #{_lambda_.5} parent=51 // pred_check
        %p1971 = pneg %p183
      $region62: #{_lambda_.5} parent=51 // pred_check_branch
        %1973 = sbr.rel (%p1971) target = $region64
      $region63: #{_lambda_.5} parent=51 // pred_region
        %p1974 = scmp.lt.s32.totalorder %s19, 1
        %s1975 = scalar_select %p1974, %s19, 1
        %s1976 = scalar_lea.vmem %s6, %s1975
      $region64: #{_lambda_.5} parent=51 // pred_fallthru
        _
    $region52: #{_lambda_.5} parent=5 // pred_fallthru
      _
  $region6: #{_lambda_.5} parent=0 // loop_footer
    %s17 = sadd.s32 1, %s13
  $region7: #{_lambda_.5} parent=0 // loop_footer_branch
    %12 = sbr.rel target = $region3
  $region8: #{_lambda_.5} parent=0 // loop_exit
    _

</llo_original>
